<compile_context>
chip_gen: v7x
topology: tpu7x:2x2x1
jax: 0.10.0
libtpu: 0.0.40
codegen_flags: <defaults>
</compile_context>

<pallas_src>
import functools

import jax
import jax.numpy as jnp
from jax.experimental import pallas as pl
from jax.experimental.pallas import tpu as pltpu

# ------------------------- small synthetic config -------------------------
VOCAB      = 64
HIDDEN     = 32
NUM_HEADS  = 4
HEAD_DIM   = HIDDEN // NUM_HEADS
FF         = 64
NUM_LAYERS = 2
MAX_POS    = 16
PROJ       = 16          # cxrbert.config.projection_size
NUM_LABELS = 3
SEQ        = 8
BATCH      = 2
LN_EPS     = 1e-12


# ------------------------------ fused kernel ------------------------------
def _fused_forward_kernel(
    # inputs
    x_emb_ref, addmask_ref, emb_ln_g_ref, emb_ln_b_ref,
    qkv_w_ref, qkv_b_ref, o_w_ref, o_b_ref, ln1_g_ref, ln1_b_ref,
    fi_w_ref, fi_b_ref, fo_w_ref, fo_b_ref, ln2_g_ref, ln2_b_ref,
    p1_w_ref, p1_b_ref, pln_g_ref, pln_b_ref, p2_w_ref, p2_b_ref,
    cls_w_ref, cls_b_ref, onehot_ref,
    # outputs
    loss_ref, logits_ref,
    # scratch
    qkv_scr, ctx_scr,
    *, batch, seq, num_heads,
):
    hidden = x_emb_ref.shape[-1]
    head_dim = hidden // num_heads
    num_layers = qkv_w_ref.shape[0]
    scale = 1.0 / float(head_dim) ** 0.5

    def ln(x, g, b):
        mu = jnp.mean(x, axis=-1, keepdims=True)
        var = jnp.mean((x - mu) * (x - mu), axis=-1, keepdims=True)
        return (x - mu) * jax.lax.rsqrt(var + LN_EPS) * g + b

    # Embedding LayerNorm (no residual -> no zeros array, no extra DMA).
    x = ln(x_emb_ref[...], emb_ln_g_ref[...], emb_ln_b_ref[...])     # (B*S, H)

    # Additive mask rows, loaded once (hoisted out of the layer loop).
    neg_mask = [addmask_ref[b:b + 1, :] for b in range(batch)]        # each (1, S)

    for l in range(num_layers):
        # Fused QKV projection: one MXU pass, 96-lane-wide output.
        qkv_scr[...] = (
            jnp.dot(x, qkv_w_ref[l], preferred_element_type=jnp.float32)
            + qkv_b_ref[l])                                           # (B*S, 3H)

        # Attention: unrolled over (batch, head); everything stays in VMEM.
        for b in range(batch):
            r0, r1 = b * seq, (b + 1) * seq
            am = neg_mask[b]                                          # (1, S)
            for h in range(num_heads):
                c0 = h * head_dim
                q = qkv_scr[r0:r1, c0:c0 + head_dim]                  # (S, Dh)
                k = qkv_scr[r0:r1, hidden + c0:hidden + c0 + head_dim]
                v = qkv_scr[r0:r1, 2 * hidden + c0:2 * hidden + c0 + head_dim]
                s = jnp.dot(q, k.T, preferred_element_type=jnp.float32) * scale + am
                m = jnp.max(s, axis=-1, keepdims=True)
                p = jnp.exp(s - m)
                p = p * pl.reciprocal(jnp.sum(p, axis=-1, keepdims=True),
                                      approx=True)
                ctx_scr[r0:r1, c0:c0 + head_dim] = jnp.dot(
                    p, v, preferred_element_type=jnp.float32)

        ctx = ctx_scr[...]                                            # (B*S, H)
        attn_out = (jnp.dot(ctx, o_w_ref[l], preferred_element_type=jnp.float32)
                    + o_b_ref[l])
        x = ln(x + attn_out, ln1_g_ref[l], ln1_b_ref[l])              # fused residual

        inter = (jnp.dot(x, fi_w_ref[l], preferred_element_type=jnp.float32)
                 + fi_b_ref[l])
        # TODO(synk): HF BERT uses exact (erf) GELU; tanh-approx GELU used here.
        inter = jax.nn.gelu(inter, approximate=True)
        ff_out = (jnp.dot(inter, fo_w_ref[l], preferred_element_type=jnp.float32)
                  + fo_b_ref[l])
        x = ln(x + ff_out, ln2_g_ref[l], ln2_b_ref[l])

    # Extract CLS rows (row b*seq of x) via a selection matmul -- avoids
    # unaligned sublane concatenation inside the kernel.
    rid = jax.lax.broadcasted_iota(jnp.int32, (batch, batch * seq), 0)
    cid = jax.lax.broadcasted_iota(jnp.int32, (batch, batch * seq), 1)
    sel = (cid == rid * seq).astype(jnp.float32)                      # (B, B*S)
    cls = jnp.dot(sel, x, preferred_element_type=jnp.float32)         # (B, H)

    # CXR-BERT projection head: Linear -> GELU -> LayerNorm -> Linear
    ph = jnp.dot(cls, p1_w_ref[...], preferred_element_type=jnp.float32) + p1_b_ref[...]
    ph = jax.nn.gelu(ph, approximate=True)
    ph = ln(ph, pln_g_ref[...], pln_b_ref[...])
    cls_proj = (jnp.dot(ph, p2_w_ref[...], preferred_element_type=jnp.float32)
                + p2_b_ref[...])                                      # (B, PROJ)

    # NLI classifier + CrossEntropyLoss (stable LSE), fused.
    logits = (jnp.dot(cls_proj, cls_w_ref[...], preferred_element_type=jnp.float32)
              + cls_b_ref[...])                                       # (B, C)
    logits_ref[...] = logits

    oh = onehot_ref[...]
    mx = jnp.max(logits, axis=-1, keepdims=True)
    lse = mx + jnp.log(jnp.sum(jnp.exp(logits - mx), axis=-1, keepdims=True))
    picked = jnp.sum(oh * logits, axis=-1, keepdims=True)
    loss_ref[...] = jnp.mean(lse - picked, keepdims=True)             # (1, 1)


def _full_spec(shape):
    ndim = len(shape)
    return pl.BlockSpec(tuple(shape), lambda i: (0,) * ndim)


# ------------------------------ parameters ------------------------------
def _dense(key, fan_in, fan_out):
    w = jax.random.normal(key, (fan_in, fan_out), jnp.float32) * 0.02
    b = jnp.zeros((fan_out,), jnp.float32)
    return {"w": w, "b": b}


def init_params(key):
    ks = iter(jax.random.split(key, 16 + 8 * NUM_LAYERS))
    params = {
        "word_emb": jax.random.normal(next(ks), (VOCAB, HIDDEN), jnp.float32) * 0.02,
        "pos_emb":  jax.random.normal(next(ks), (MAX_POS, HIDDEN), jnp.float32) * 0.02,
        "type_emb": jax.random.normal(next(ks), (2, HIDDEN), jnp.float32) * 0.02,
        "emb_ln_g": jnp.ones((HIDDEN,), jnp.float32),
        "emb_ln_b": jnp.zeros((HIDDEN,), jnp.float32),
        "layers": [],
        # CXR-BERT cls projection head: Linear -> GELU -> LayerNorm -> Linear
        "proj1": _dense(next(ks), HIDDEN, PROJ),
        "proj_ln_g": jnp.ones((PROJ,), jnp.float32),
        "proj_ln_b": jnp.zeros((PROJ,), jnp.float32),
        "proj2": _dense(next(ks), PROJ, PROJ),
        # NLI classifier
        "cls": _dense(next(ks), PROJ, NUM_LABELS),
    }
    for _ in range(NUM_LAYERS):
        params["layers"].append({
            "q": _dense(next(ks), HIDDEN, HIDDEN),
            "k": _dense(next(ks), HIDDEN, HIDDEN),
            "v": _dense(next(ks), HIDDEN, HIDDEN),
            "o": _dense(next(ks), HIDDEN, HIDDEN),
            "ln1_g": jnp.ones((HIDDEN,), jnp.float32),
            "ln1_b": jnp.zeros((HIDDEN,), jnp.float32),
            "i": _dense(next(ks), HIDDEN, FF),
            "f": _dense(next(ks), FF, HIDDEN),
            "ln2_g": jnp.ones((HIDDEN,), jnp.float32),
            "ln2_b": jnp.zeros((HIDDEN,), jnp.float32),
        })
    return params


# ------------------------------ forward pass ------------------------------
def cxrbert_nli_forward(params, input_ids, attention_mask, labels):
    B, S = input_ids.shape
    mask_f = attention_mask.astype(jnp.float32)
    addmask = (1.0 - mask_f) * (-10000.0)                             # (B, S) additive

    # BERT embeddings (gather is glue; everything after is one Pallas kernel).
    # TODO(synk): token-type ids are all 0 here; real NLI pairs would use 0/1.
    h = (jnp.take(params["word_emb"], input_ids, axis=0)
         + params["pos_emb"][None, :S, :]
         + params["type_emb"][0][None, None, :])
    x_emb = h.reshape(B * S, HIDDEN)

    layers = params["layers"]
    qkv_w = jnp.stack([jnp.concatenate(
        [lp["q"]["w"], lp["k"]["w"], lp["v"]["w"]], axis=1) for lp in layers])
    qkv_b = jnp.stack([jnp.concatenate(
        [lp["q"]["b"], lp["k"]["b"], lp["v"]["b"]])[None, :] for lp in layers])
    o_w   = jnp.stack([lp["o"]["w"] for lp in layers])
    o_b   = jnp.stack([lp["o"]["b"][None, :] for lp in layers])
    ln1_g = jnp.stack([lp["ln1_g"][None, :] for lp in layers])
    ln1_b = jnp.stack([lp["ln1_b"][None, :] for lp in layers])
    fi_w  = jnp.stack([lp["i"]["w"] for lp in layers])
    fi_b  = jnp.stack([lp["i"]["b"][None, :] for lp in layers])
    fo_w  = jnp.stack([lp["f"]["w"] for lp in layers])
    fo_b  = jnp.stack([lp["f"]["b"][None, :] for lp in layers])
    ln2_g = jnp.stack([lp["ln2_g"][None, :] for lp in layers])
    ln2_b = jnp.stack([lp["ln2_b"][None, :] for lp in layers])

    onehot = jax.nn.one_hot(labels, NUM_LABELS, dtype=jnp.float32)

    args = (
        x_emb, addmask,
        params["emb_ln_g"][None, :], params["emb_ln_b"][None, :],
        qkv_w, qkv_b, o_w, o_b, ln1_g, ln1_b,
        fi_w, fi_b, fo_w, fo_b, ln2_g, ln2_b,
        params["proj1"]["w"], params["proj1"]["b"][None, :],
        params["proj_ln_g"][None, :], params["proj_ln_b"][None, :],
        params["proj2"]["w"], params["proj2"]["b"][None, :],
        params["cls"]["w"], params["cls"]["b"][None, :],
        onehot,
    )

    loss, logits = pl.pallas_call(
        functools.partial(_fused_forward_kernel,
                          batch=B, seq=S, num_heads=NUM_HEADS),
        out_shape=(jax.ShapeDtypeStruct((1, 1), jnp.float32),
                   jax.ShapeDtypeStruct((B, NUM_LABELS), jnp.float32)),
        grid=(1,),
        in_specs=[_full_spec(a.shape) for a in args],
        out_specs=(_full_spec((1, 1)), _full_spec((B, NUM_LABELS))),
        scratch_shapes=[
            pltpu.VMEM((B * S, 3 * HIDDEN), jnp.float32),  # fused QKV
            pltpu.VMEM((B * S, HIDDEN), jnp.float32),      # attention context
        ],
        compiler_params=pltpu.CompilerParams(
            dimension_semantics=("arbitrary",)),
    )(*args)

    # TODO(synk): outputs.hidden_states / outputs.attentions are not requested
    # by the module's forward (no output flags) -> None.
    hidden_states, attentions = None, None
    return loss[0, 0], logits, hidden_states, attentions


# ---------------------------------- main ----------------------------------
if __name__ == "__main__":
    key = jax.random.PRNGKey(0)
    pkey, ikey, lkey = jax.random.split(key, 3)

    params = init_params(pkey)
    input_ids = jax.random.randint(ikey, (BATCH, SEQ), 0, VOCAB, dtype=jnp.int32)
    attention_mask = jnp.array(
        [[1] * SEQ, [1] * (SEQ - 2) + [0] * 2], dtype=jnp.int32)
    labels = jax.random.randint(lkey, (BATCH,), 0, NUM_LABELS, dtype=jnp.int32)

    fwd = jax.jit(cxrbert_nli_forward)
    loss, logits, hidden_states, attentions = fwd(
        params, input_ids, attention_mask, labels)
    jax.block_until_ready((loss, logits))
    print("KERNEL_OK")
</pallas_src>

<mosaic_0001>
module attributes {stable_mosaic.version = 11 : i64} {
  func.func @_fused_forward_kernel(%arg0: i32, %arg1: memref<16x32xf32, #tpu.memory_space<vmem>>, %arg2: memref<2x8xf32, #tpu.memory_space<vmem>>, %arg3: memref<1x32xf32, #tpu.memory_space<vmem>>, %arg4: memref<1x32xf32, #tpu.memory_space<vmem>>, %arg5: memref<2x32x96xf32, #tpu.memory_space<vmem>>, %arg6: memref<2x1x96xf32, #tpu.memory_space<vmem>>, %arg7: memref<2x32x32xf32, #tpu.memory_space<vmem>>, %arg8: memref<2x1x32xf32, #tpu.memory_space<vmem>>, %arg9: memref<2x1x32xf32, #tpu.memory_space<vmem>>, %arg10: memref<2x1x32xf32, #tpu.memory_space<vmem>>, %arg11: memref<2x32x64xf32, #tpu.memory_space<vmem>>, %arg12: memref<2x1x64xf32, #tpu.memory_space<vmem>>, %arg13: memref<2x64x32xf32, #tpu.memory_space<vmem>>, %arg14: memref<2x1x32xf32, #tpu.memory_space<vmem>>, %arg15: memref<2x1x32xf32, #tpu.memory_space<vmem>>, %arg16: memref<2x1x32xf32, #tpu.memory_space<vmem>>, %arg17: memref<32x16xf32, #tpu.memory_space<vmem>>, %arg18: memref<1x16xf32, #tpu.memory_space<vmem>>, %arg19: memref<1x16xf32, #tpu.memory_space<vmem>>, %arg20: memref<1x16xf32, #tpu.memory_space<vmem>>, %arg21: memref<16x16xf32, #tpu.memory_space<vmem>>, %arg22: memref<1x16xf32, #tpu.memory_space<vmem>>, %arg23: memref<16x3xf32, #tpu.memory_space<vmem>>, %arg24: memref<1x3xf32, #tpu.memory_space<vmem>>, %arg25: memref<2x3xf32, #tpu.memory_space<vmem>>, %arg26: memref<1x1xf32, #tpu.memory_space<vmem>>, %arg27: memref<2x3xf32, #tpu.memory_space<vmem>>, %arg28: memref<16x96xf32, #tpu.memory_space<vmem>>, %arg29: memref<16x32xf32, #tpu.memory_space<vmem>>) attributes {dimension_semantics = [#tpu.dimension_semantics<arbitrary>], iteration_bounds = array<i64: 1>, scalar_prefetch = 0 : i64, scratch_operands = 2 : i64, tpu.core_type = #tpu.core_type<tc>, window_params = [{pipeline_mode = #tpu.pipeline_mode<synchronous>, transform_indices = @transform_0, window_bounds = array<i64: 16, 32>}, {pipeline_mode = #tpu.pipeline_mode<synchronous>, transform_indices = @transform_1, window_bounds = array<i64: 2, 8>}, {pipeline_mode = #tpu.pipeline_mode<synchronous>, transform_indices = @transform_2, window_bounds = array<i64: 1, 32>}, {pipeline_mode = #tpu.pipeline_mode<synchronous>, transform_indices = @transform_3, window_bounds = array<i64: 1, 32>}, {pipeline_mode = #tpu.pipeline_mode<synchronous>, transform_indices = @transform_4, window_bounds = array<i64: 2, 32, 96>}, {pipeline_mode = #tpu.pipeline_mode<synchronous>, transform_indices = @transform_5, window_bounds = array<i64: 2, 1, 96>}, {pipeline_mode = #tpu.pipeline_mode<synchronous>, transform_indices = @transform_6, window_bounds = array<i64: 2, 32, 32>}, {pipeline_mode = #tpu.pipeline_mode<synchronous>, transform_indices = @transform_7, window_bounds = array<i64: 2, 1, 32>}, {pipeline_mode = #tpu.pipeline_mode<synchronous>, transform_indices = @transform_8, window_bounds = array<i64: 2, 1, 32>}, {pipeline_mode = #tpu.pipeline_mode<synchronous>, transform_indices = @transform_9, window_bounds = array<i64: 2, 1, 32>}, {pipeline_mode = #tpu.pipeline_mode<synchronous>, transform_indices = @transform_10, window_bounds = array<i64: 2, 32, 64>}, {pipeline_mode = #tpu.pipeline_mode<synchronous>, transform_indices = @transform_11, window_bounds = array<i64: 2, 1, 64>}, {pipeline_mode = #tpu.pipeline_mode<synchronous>, transform_indices = @transform_12, window_bounds = array<i64: 2, 64, 32>}, {pipeline_mode = #tpu.pipeline_mode<synchronous>, transform_indices = @transform_13, window_bounds = array<i64: 2, 1, 32>}, {pipeline_mode = #tpu.pipeline_mode<synchronous>, transform_indices = @transform_14, window_bounds = array<i64: 2, 1, 32>}, {pipeline_mode = #tpu.pipeline_mode<synchronous>, transform_indices = @transform_15, window_bounds = array<i64: 2, 1, 32>}, {pipeline_mode = #tpu.pipeline_mode<synchronous>, transform_indices = @transform_16, window_bounds = array<i64: 32, 16>}, {pipeline_mode = #tpu.pipeline_mode<synchronous>, transform_indices = @transform_17, window_bounds = array<i64: 1, 16>}, {pipeline_mode = #tpu.pipeline_mode<synchronous>, transform_indices = @transform_18, window_bounds = array<i64: 1, 16>}, {pipeline_mode = #tpu.pipeline_mode<synchronous>, transform_indices = @transform_19, window_bounds = array<i64: 1, 16>}, {pipeline_mode = #tpu.pipeline_mode<synchronous>, transform_indices = @transform_20, window_bounds = array<i64: 16, 16>}, {pipeline_mode = #tpu.pipeline_mode<synchronous>, transform_indices = @transform_21, window_bounds = array<i64: 1, 16>}, {pipeline_mode = #tpu.pipeline_mode<synchronous>, transform_indices = @transform_22, window_bounds = array<i64: 16, 3>}, {pipeline_mode = #tpu.pipeline_mode<synchronous>, transform_indices = @transform_23, window_bounds = array<i64: 1, 3>}, {pipeline_mode = #tpu.pipeline_mode<synchronous>, transform_indices = @transform_24, window_bounds = array<i64: 2, 3>}, {pipeline_mode = #tpu.pipeline_mode<synchronous>, transform_indices = @transform_25, window_bounds = array<i64: 1, 1>}, {pipeline_mode = #tpu.pipeline_mode<synchronous>, transform_indices = @transform_26, window_bounds = array<i64: 2, 3>}]} {
    %c0 = arith.constant 0 : index
    %c0_0 = arith.constant 0 : index
    %0 = vector.load %arg1[%c0, %c0_0] : memref<16x32xf32, #tpu.memory_space<vmem>>, vector<16x32xf32>
    %c0_1 = arith.constant 0 : index
    %c0_2 = arith.constant 0 : index
    %1 = vector.load %arg3[%c0_1, %c0_2] : memref<1x32xf32, #tpu.memory_space<vmem>>, vector<1x32xf32>
    %c0_3 = arith.constant 0 : index
    %c0_4 = arith.constant 0 : index
    %2 = vector.load %arg4[%c0_3, %c0_4] : memref<1x32xf32, #tpu.memory_space<vmem>>, vector<1x32xf32>
    %cst = arith.constant dense<0.000000e+00> : vector<16xf32>
    %3 = vector.multi_reduction <add>, %0, %cst [1] : vector<16x32xf32> to vector<16xf32>
    %4 = vector.shape_cast %3 : vector<16xf32> to vector<16x1xf32>
    %cst_5 = arith.constant 3.200000e+01 : f32
    %5 = vector.broadcast %cst_5 : f32 to vector<16x1xf32>
    %6 = arith.divf %4, %5 : vector<16x1xf32>
    %7 = vector.broadcast %6 : vector<16x1xf32> to vector<16x32xf32>
    %8 = arith.subf %0, %7 : vector<16x32xf32>
    %9 = vector.broadcast %6 : vector<16x1xf32> to vector<16x32xf32>
    %10 = arith.subf %0, %9 : vector<16x32xf32>
    %11 = arith.mulf %8, %10 : vector<16x32xf32>
    %cst_6 = arith.constant dense<0.000000e+00> : vector<16xf32>
    %12 = vector.multi_reduction <add>, %11, %cst_6 [1] : vector<16x32xf32> to vector<16xf32>
    %13 = vector.shape_cast %12 : vector<16xf32> to vector<16x1xf32>
    %cst_7 = arith.constant 3.200000e+01 : f32
    %14 = vector.broadcast %cst_7 : f32 to vector<16x1xf32>
    %15 = arith.divf %13, %14 : vector<16x1xf32>
    %16 = vector.broadcast %6 : vector<16x1xf32> to vector<16x32xf32>
    %17 = arith.subf %0, %16 : vector<16x32xf32>
    %cst_8 = arith.constant 9.99999996E-13 : f32
    %18 = vector.broadcast %cst_8 : f32 to vector<16x1xf32>
    %19 = arith.addf %15, %18 : vector<16x1xf32>
    %20 = math.rsqrt %19 : vector<16x1xf32>
    %21 = vector.broadcast %20 : vector<16x1xf32> to vector<16x32xf32>
    %22 = arith.mulf %17, %21 : vector<16x32xf32>
    %23 = vector.broadcast %1 : vector<1x32xf32> to vector<16x32xf32>
    %24 = arith.mulf %22, %23 : vector<16x32xf32>
    %25 = vector.broadcast %2 : vector<1x32xf32> to vector<16x32xf32>
    %26 = arith.addf %24, %25 : vector<16x32xf32>
    %c0_9 = arith.constant 0 : index
    %c0_10 = arith.constant 0 : index
    %27 = vector.load %arg2[%c0_9, %c0_10] : memref<2x8xf32, #tpu.memory_space<vmem>>, vector<1x8xf32>
    %c1 = arith.constant 1 : index
    %c0_11 = arith.constant 0 : index
    %28 = vector.load %arg2[%c1, %c0_11] : memref<2x8xf32, #tpu.memory_space<vmem>>, vector<1x8xf32>
    %c0_12 = arith.constant 0 : index
    %c0_13 = arith.constant 0 : index
    %c0_14 = arith.constant 0 : index
    %29 = vector.load %arg5[%c0_12, %c0_13, %c0_14] : memref<2x32x96xf32, #tpu.memory_space<vmem>>, vector<1x32x96xf32>
    %30 = vector.shape_cast %29 : vector<1x32x96xf32> to vector<32x96xf32>
    %cst_15 = arith.constant dense<0.000000e+00> : vector<16x96xf32>
    %31 = tpu.matmul %26, %30, %cst_15 {dimension_numbers = #tpu.dot_dimension_numbers<[1], [0], [0], [1], [0, 0, 1, 1], [], []>} : vector<16x32xf32>, vector<32x96xf32>, vector<16x96xf32> -> vector<16x96xf32>
    %c0_16 = arith.constant 0 : index
    %c0_17 = arith.constant 0 : index
    %c0_18 = arith.constant 0 : index
    %32 = vector.load %arg6[%c0_16, %c0_17, %c0_18] : memref<2x1x96xf32, #tpu.memory_space<vmem>>, vector<1x1x96xf32>
    %33 = vector.shape_cast %32 : vector<1x1x96xf32> to vector<1x96xf32>
    %34 = vector.broadcast %33 : vector<1x96xf32> to vector<16x96xf32>
    %35 = arith.addf %31, %34 : vector<16x96xf32>
    %c0_19 = arith.constant 0 : index
    %c0_20 = arith.constant 0 : index
    %36 = vector.load %arg28[%c0_19, %c0_20] : memref<16x96xf32, #tpu.memory_space<vmem>>, vector<16x96xf32>
    tpu.vector_store %arg28[%c0_19, %c0_20], %35 {strides = array<i32>} : memref<16x96xf32, #tpu.memory_space<vmem>>, vector<16x96xf32>,
    %c0_21 = arith.constant 0 : index
    %c0_22 = arith.constant 0 : index
    %37 = vector.load %arg28[%c0_21, %c0_22] : memref<16x96xf32, #tpu.memory_space<vmem>>, vector<8x8xf32>
    %c0_23 = arith.constant 0 : index
    %c32 = arith.constant 32 : index
    %38 = vector.load %arg28[%c0_23, %c32] : memref<16x96xf32, #tpu.memory_space<vmem>>, vector<8x8xf32>
    %c0_24 = arith.constant 0 : index
    %c64 = arith.constant 64 : index
    %39 = vector.load %arg28[%c0_24, %c64] : memref<16x96xf32, #tpu.memory_space<vmem>>, vector<8x8xf32>
    %40 = tpu.transpose %38, [1, 0] : vector<8x8xf32> -> vector<8x8xf32>
    %cst_25 = arith.constant dense<0.000000e+00> : vector<8x8xf32>
    %41 = tpu.matmul %37, %40, %cst_25 {dimension_numbers = #tpu.dot_dimension_numbers<[1], [0], [0], [1], [0, 0, 1, 1], [], []>} : vector<8x8xf32>, vector<8x8xf32>, vector<8x8xf32> -> vector<8x8xf32>
    %cst_26 = arith.constant 0.353553385 : f32
    %42 = vector.broadcast %cst_26 : f32 to vector<8x8xf32>
    %43 = arith.mulf %41, %42 : vector<8x8xf32>
    %44 = vector.broadcast %27 : vector<1x8xf32> to vector<8x8xf32>
    %45 = arith.addf %43, %44 : vector<8x8xf32>
    %cst_27 = arith.constant dense<0xFF800000> : vector<8xf32>
    %46 = vector.multi_reduction <maximumf>, %45, %cst_27 [1] : vector<8x8xf32> to vector<8xf32>
    %47 = vector.shape_cast %46 : vector<8xf32> to vector<8x1xf32>
    %48 = vector.broadcast %47 : vector<8x1xf32> to vector<8x8xf32>
    %49 = arith.subf %45, %48 : vector<8x8xf32>
    %50 = math.exp %49 : vector<8x8xf32>
    %cst_28 = arith.constant dense<0.000000e+00> : vector<8xf32>
    %51 = vector.multi_reduction <add>, %50, %cst_28 [1] : vector<8x8xf32> to vector<8xf32>
    %52 = vector.shape_cast %51 : vector<8xf32> to vector<8x1xf32>
    %53 = tpu.reciprocal %52 {approx = true} : vector<8x1xf32> -> vector<8x1xf32>
    %54 = vector.broadcast %53 : vector<8x1xf32> to vector<8x8xf32>
    %55 = arith.mulf %50, %54 : vector<8x8xf32>
    %cst_29 = arith.constant dense<0.000000e+00> : vector<8x8xf32>
    %56 = tpu.matmul %55, %39, %cst_29 {dimension_numbers = #tpu.dot_dimension_numbers<[1], [0], [0], [1], [0, 0, 1, 1], [], []>} : vector<8x8xf32>, vector<8x8xf32>, vector<8x8xf32> -> vector<8x8xf32>
    %c0_30 = arith.constant 0 : index
    %c0_31 = arith.constant 0 : index
    %57 = vector.load %arg29[%c0_30, %c0_31] : memref<16x32xf32, #tpu.memory_space<vmem>>, vector<8x8xf32>
    tpu.vector_store %arg29[%c0_30, %c0_31], %56 {strides = array<i32>} : memref<16x32xf32, #tpu.memory_space<vmem>>, vector<8x8xf32>,
    %c0_32 = arith.constant 0 : index
    %c8 = arith.constant 8 : index
    %58 = vector.load %arg28[%c0_32, %c8] : memref<16x96xf32, #tpu.memory_space<vmem>>, vector<8x8xf32>
    %c0_33 = arith.constant 0 : index
    %c40 = arith.constant 40 : index
    %59 = vector.load %arg28[%c0_33, %c40] : memref<16x96xf32, #tpu.memory_space<vmem>>, vector<8x8xf32>
    %c0_34 = arith.constant 0 : index
    %c72 = arith.constant 72 : index
    %60 = vector.load %arg28[%c0_34, %c72] : memref<16x96xf32, #tpu.memory_space<vmem>>, vector<8x8xf32>
    %61 = tpu.transpose %59, [1, 0] : vector<8x8xf32> -> vector<8x8xf32>
    %cst_35 = arith.constant dense<0.000000e+00> : vector<8x8xf32>
    %62 = tpu.matmul %58, %61, %cst_35 {dimension_numbers = #tpu.dot_dimension_numbers<[1], [0], [0], [1], [0, 0, 1, 1], [], []>} : vector<8x8xf32>, vector<8x8xf32>, vector<8x8xf32> -> vector<8x8xf32>
    %cst_36 = arith.constant 0.353553385 : f32
    %63 = vector.broadcast %cst_36 : f32 to vector<8x8xf32>
    %64 = arith.mulf %62, %63 : vector<8x8xf32>
    %65 = vector.broadcast %27 : vector<1x8xf32> to vector<8x8xf32>
    %66 = arith.addf %64, %65 : vector<8x8xf32>
    %cst_37 = arith.constant dense<0xFF800000> : vector<8xf32>
    %67 = vector.multi_reduction <maximumf>, %66, %cst_37 [1] : vector<8x8xf32> to vector<8xf32>
    %68 = vector.shape_cast %67 : vector<8xf32> to vector<8x1xf32>
    %69 = vector.broadcast %68 : vector<8x1xf32> to vector<8x8xf32>
    %70 = arith.subf %66, %69 : vector<8x8xf32>
    %71 = math.exp %70 : vector<8x8xf32>
    %cst_38 = arith.constant dense<0.000000e+00> : vector<8xf32>
    %72 = vector.multi_reduction <add>, %71, %cst_38 [1] : vector<8x8xf32> to vector<8xf32>
    %73 = vector.shape_cast %72 : vector<8xf32> to vector<8x1xf32>
    %74 = tpu.reciprocal %73 {approx = true} : vector<8x1xf32> -> vector<8x1xf32>
    %75 = vector.broadcast %74 : vector<8x1xf32> to vector<8x8xf32>
    %76 = arith.mulf %71, %75 : vector<8x8xf32>
    %cst_39 = arith.constant dense<0.000000e+00> : vector<8x8xf32>
    %77 = tpu.matmul %76, %60, %cst_39 {dimension_numbers = #tpu.dot_dimension_numbers<[1], [0], [0], [1], [0, 0, 1, 1], [], []>} : vector<8x8xf32>, vector<8x8xf32>, vector<8x8xf32> -> vector<8x8xf32>
    %c0_40 = arith.constant 0 : index
    %c8_41 = arith.constant 8 : index
    %78 = vector.load %arg29[%c0_40, %c8_41] : memref<16x32xf32, #tpu.memory_space<vmem>>, vector<8x8xf32>
    tpu.vector_store %arg29[%c0_40, %c8_41], %77 {strides = array<i32>} : memref<16x32xf32, #tpu.memory_space<vmem>>, vector<8x8xf32>,
    %c0_42 = arith.constant 0 : index
    %c16 = arith.constant 16 : index
    %79 = vector.load %arg28[%c0_42, %c16] : memref<16x96xf32, #tpu.memory_space<vmem>>, vector<8x8xf32>
    %c0_43 = arith.constant 0 : index
    %c48 = arith.constant 48 : index
    %80 = vector.load %arg28[%c0_43, %c48] : memref<16x96xf32, #tpu.memory_space<vmem>>, vector<8x8xf32>
    %c0_44 = arith.constant 0 : index
    %c80 = arith.constant 80 : index
    %81 = vector.load %arg28[%c0_44, %c80] : memref<16x96xf32, #tpu.memory_space<vmem>>, vector<8x8xf32>
    %82 = tpu.transpose %80, [1, 0] : vector<8x8xf32> -> vector<8x8xf32>
    %cst_45 = arith.constant dense<0.000000e+00> : vector<8x8xf32>
    %83 = tpu.matmul %79, %82, %cst_45 {dimension_numbers = #tpu.dot_dimension_numbers<[1], [0], [0], [1], [0, 0, 1, 1], [], []>} : vector<8x8xf32>, vector<8x8xf32>, vector<8x8xf32> -> vector<8x8xf32>
    %cst_46 = arith.constant 0.353553385 : f32
    %84 = vector.broadcast %cst_46 : f32 to vector<8x8xf32>
    %85 = arith.mulf %83, %84 : vector<8x8xf32>
    %86 = vector.broadcast %27 : vector<1x8xf32> to vector<8x8xf32>
    %87 = arith.addf %85, %86 : vector<8x8xf32>
    %cst_47 = arith.constant dense<0xFF800000> : vector<8xf32>
    %88 = vector.multi_reduction <maximumf>, %87, %cst_47 [1] : vector<8x8xf32> to vector<8xf32>
    %89 = vector.shape_cast %88 : vector<8xf32> to vector<8x1xf32>
    %90 = vector.broadcast %89 : vector<8x1xf32> to vector<8x8xf32>
    %91 = arith.subf %87, %90 : vector<8x8xf32>
    %92 = math.exp %91 : vector<8x8xf32>
    %cst_48 = arith.constant dense<0.000000e+00> : vector<8xf32>
    %93 = vector.multi_reduction <add>, %92, %cst_48 [1] : vector<8x8xf32> to vector<8xf32>
    %94 = vector.shape_cast %93 : vector<8xf32> to vector<8x1xf32>
    %95 = tpu.reciprocal %94 {approx = true} : vector<8x1xf32> -> vector<8x1xf32>
    %96 = vector.broadcast %95 : vector<8x1xf32> to vector<8x8xf32>
    %97 = arith.mulf %92, %96 : vector<8x8xf32>
    %cst_49 = arith.constant dense<0.000000e+00> : vector<8x8xf32>
    %98 = tpu.matmul %97, %81, %cst_49 {dimension_numbers = #tpu.dot_dimension_numbers<[1], [0], [0], [1], [0, 0, 1, 1], [], []>} : vector<8x8xf32>, vector<8x8xf32>, vector<8x8xf32> -> vector<8x8xf32>
    %c0_50 = arith.constant 0 : index
    %c16_51 = arith.constant 16 : index
    %99 = vector.load %arg29[%c0_50, %c16_51] : memref<16x32xf32, #tpu.memory_space<vmem>>, vector<8x8xf32>
    tpu.vector_store %arg29[%c0_50, %c16_51], %98 {strides = array<i32>} : memref<16x32xf32, #tpu.memory_space<vmem>>, vector<8x8xf32>,
    %c0_52 = arith.constant 0 : index
    %c24 = arith.constant 24 : index
    %100 = vector.load %arg28[%c0_52, %c24] : memref<16x96xf32, #tpu.memory_space<vmem>>, vector<8x8xf32>
    %c0_53 = arith.constant 0 : index
    %c56 = arith.constant 56 : index
    %101 = vector.load %arg28[%c0_53, %c56] : memref<16x96xf32, #tpu.memory_space<vmem>>, vector<8x8xf32>
    %c0_54 = arith.constant 0 : index
    %c88 = arith.constant 88 : index
    %102 = vector.load %arg28[%c0_54, %c88] : memref<16x96xf32, #tpu.memory_space<vmem>>, vector<8x8xf32>
    %103 = tpu.transpose %101, [1, 0] : vector<8x8xf32> -> vector<8x8xf32>
    %cst_55 = arith.constant dense<0.000000e+00> : vector<8x8xf32>
    %104 = tpu.matmul %100, %103, %cst_55 {dimension_numbers = #tpu.dot_dimension_numbers<[1], [0], [0], [1], [0, 0, 1, 1], [], []>} : vector<8x8xf32>, vector<8x8xf32>, vector<8x8xf32> -> vector<8x8xf32>
    %cst_56 = arith.constant 0.353553385 : f32
    %105 = vector.broadcast %cst_56 : f32 to vector<8x8xf32>
    %106 = arith.mulf %104, %105 : vector<8x8xf32>
    %107 = vector.broadcast %27 : vector<1x8xf32> to vector<8x8xf32>
    %108 = arith.addf %106, %107 : vector<8x8xf32>
    %cst_57 = arith.constant dense<0xFF800000> : vector<8xf32>
    %109 = vector.multi_reduction <maximumf>, %108, %cst_57 [1] : vector<8x8xf32> to vector<8xf32>
    %110 = vector.shape_cast %109 : vector<8xf32> to vector<8x1xf32>
    %111 = vector.broadcast %110 : vector<8x1xf32> to vector<8x8xf32>
    %112 = arith.subf %108, %111 : vector<8x8xf32>
    %113 = math.exp %112 : vector<8x8xf32>
    %cst_58 = arith.constant dense<0.000000e+00> : vector<8xf32>
    %114 = vector.multi_reduction <add>, %113, %cst_58 [1] : vector<8x8xf32> to vector<8xf32>
    %115 = vector.shape_cast %114 : vector<8xf32> to vector<8x1xf32>
    %116 = tpu.reciprocal %115 {approx = true} : vector<8x1xf32> -> vector<8x1xf32>
    %117 = vector.broadcast %116 : vector<8x1xf32> to vector<8x8xf32>
    %118 = arith.mulf %113, %117 : vector<8x8xf32>
    %cst_59 = arith.constant dense<0.000000e+00> : vector<8x8xf32>
    %119 = tpu.matmul %118, %102, %cst_59 {dimension_numbers = #tpu.dot_dimension_numbers<[1], [0], [0], [1], [0, 0, 1, 1], [], []>} : vector<8x8xf32>, vector<8x8xf32>, vector<8x8xf32> -> vector<8x8xf32>
    %c0_60 = arith.constant 0 : index
    %c24_61 = arith.constant 24 : index
    %120 = vector.load %arg29[%c0_60, %c24_61] : memref<16x32xf32, #tpu.memory_space<vmem>>, vector<8x8xf32>
    tpu.vector_store %arg29[%c0_60, %c24_61], %119 {strides = array<i32>} : memref<16x32xf32, #tpu.memory_space<vmem>>, vector<8x8xf32>,
    %c8_62 = arith.constant 8 : index
    %c0_63 = arith.constant 0 : index
    %121 = vector.load %arg28[%c8_62, %c0_63] : memref<16x96xf32, #tpu.memory_space<vmem>>, vector<8x8xf32>
    %c8_64 = arith.constant 8 : index
    %c32_65 = arith.constant 32 : index
    %122 = vector.load %arg28[%c8_64, %c32_65] : memref<16x96xf32, #tpu.memory_space<vmem>>, vector<8x8xf32>
    %c8_66 = arith.constant 8 : index
    %c64_67 = arith.constant 64 : index
    %123 = vector.load %arg28[%c8_66, %c64_67] : memref<16x96xf32, #tpu.memory_space<vmem>>, vector<8x8xf32>
    %124 = tpu.transpose %122, [1, 0] : vector<8x8xf32> -> vector<8x8xf32>
    %cst_68 = arith.constant dense<0.000000e+00> : vector<8x8xf32>
    %125 = tpu.matmul %121, %124, %cst_68 {dimension_numbers = #tpu.dot_dimension_numbers<[1], [0], [0], [1], [0, 0, 1, 1], [], []>} : vector<8x8xf32>, vector<8x8xf32>, vector<8x8xf32> -> vector<8x8xf32>
    %cst_69 = arith.constant 0.353553385 : f32
    %126 = vector.broadcast %cst_69 : f32 to vector<8x8xf32>
    %127 = arith.mulf %125, %126 : vector<8x8xf32>
    %128 = vector.broadcast %28 : vector<1x8xf32> to vector<8x8xf32>
    %129 = arith.addf %127, %128 : vector<8x8xf32>
    %cst_70 = arith.constant dense<0xFF800000> : vector<8xf32>
    %130 = vector.multi_reduction <maximumf>, %129, %cst_70 [1] : vector<8x8xf32> to vector<8xf32>
    %131 = vector.shape_cast %130 : vector<8xf32> to vector<8x1xf32>
    %132 = vector.broadcast %131 : vector<8x1xf32> to vector<8x8xf32>
    %133 = arith.subf %129, %132 : vector<8x8xf32>
    %134 = math.exp %133 : vector<8x8xf32>
    %cst_71 = arith.constant dense<0.000000e+00> : vector<8xf32>
    %135 = vector.multi_reduction <add>, %134, %cst_71 [1] : vector<8x8xf32> to vector<8xf32>
    %136 = vector.shape_cast %135 : vector<8xf32> to vector<8x1xf32>
    %137 = tpu.reciprocal %136 {approx = true} : vector<8x1xf32> -> vector<8x1xf32>
    %138 = vector.broadcast %137 : vector<8x1xf32> to vector<8x8xf32>
    %139 = arith.mulf %134, %138 : vector<8x8xf32>
    %cst_72 = arith.constant dense<0.000000e+00> : vector<8x8xf32>
    %140 = tpu.matmul %139, %123, %cst_72 {dimension_numbers = #tpu.dot_dimension_numbers<[1], [0], [0], [1], [0, 0, 1, 1], [], []>} : vector<8x8xf32>, vector<8x8xf32>, vector<8x8xf32> -> vector<8x8xf32>
    %c8_73 = arith.constant 8 : index
    %c0_74 = arith.constant 0 : index
    %141 = vector.load %arg29[%c8_73, %c0_74] : memref<16x32xf32, #tpu.memory_space<vmem>>, vector<8x8xf32>
    tpu.vector_store %arg29[%c8_73, %c0_74], %140 {strides = array<i32>} : memref<16x32xf32, #tpu.memory_space<vmem>>, vector<8x8xf32>,
    %c8_75 = arith.constant 8 : index
    %c8_76 = arith.constant 8 : index
    %142 = vector.load %arg28[%c8_75, %c8_76] : memref<16x96xf32, #tpu.memory_space<vmem>>, vector<8x8xf32>
    %c8_77 = arith.constant 8 : index
    %c40_78 = arith.constant 40 : index
    %143 = vector.load %arg28[%c8_77, %c40_78] : memref<16x96xf32, #tpu.memory_space<vmem>>, vector<8x8xf32>
    %c8_79 = arith.constant 8 : index
    %c72_80 = arith.constant 72 : index
    %144 = vector.load %arg28[%c8_79, %c72_80] : memref<16x96xf32, #tpu.memory_space<vmem>>, vector<8x8xf32>
    %145 = tpu.transpose %143, [1, 0] : vector<8x8xf32> -> vector<8x8xf32>
    %cst_81 = arith.constant dense<0.000000e+00> : vector<8x8xf32>
    %146 = tpu.matmul %142, %145, %cst_81 {dimension_numbers = #tpu.dot_dimension_numbers<[1], [0], [0], [1], [0, 0, 1, 1], [], []>} : vector<8x8xf32>, vector<8x8xf32>, vector<8x8xf32> -> vector<8x8xf32>
    %cst_82 = arith.constant 0.353553385 : f32
    %147 = vector.broadcast %cst_82 : f32 to vector<8x8xf32>
    %148 = arith.mulf %146, %147 : vector<8x8xf32>
    %149 = vector.broadcast %28 : vector<1x8xf32> to vector<8x8xf32>
    %150 = arith.addf %148, %149 : vector<8x8xf32>
    %cst_83 = arith.constant dense<0xFF800000> : vector<8xf32>
    %151 = vector.multi_reduction <maximumf>, %150, %cst_83 [1] : vector<8x8xf32> to vector<8xf32>
    %152 = vector.shape_cast %151 : vector<8xf32> to vector<8x1xf32>
    %153 = vector.broadcast %152 : vector<8x1xf32> to vector<8x8xf32>
    %154 = arith.subf %150, %153 : vector<8x8xf32>
    %155 = math.exp %154 : vector<8x8xf32>
    %cst_84 = arith.constant dense<0.000000e+00> : vector<8xf32>
    %156 = vector.multi_reduction <add>, %155, %cst_84 [1] : vector<8x8xf32> to vector<8xf32>
    %157 = vector.shape_cast %156 : vector<8xf32> to vector<8x1xf32>
    %158 = tpu.reciprocal %157 {approx = true} : vector<8x1xf32> -> vector<8x1xf32>
    %159 = vector.broadcast %158 : vector<8x1xf32> to vector<8x8xf32>
    %160 = arith.mulf %155, %159 : vector<8x8xf32>
    %cst_85 = arith.constant dense<0.000000e+00> : vector<8x8xf32>
    %161 = tpu.matmul %160, %144, %cst_85 {dimension_numbers = #tpu.dot_dimension_numbers<[1], [0], [0], [1], [0, 0, 1, 1], [], []>} : vector<8x8xf32>, vector<8x8xf32>, vector<8x8xf32> -> vector<8x8xf32>
    %c8_86 = arith.constant 8 : index
    %c8_87 = arith.constant 8 : index
    %162 = vector.load %arg29[%c8_86, %c8_87] : memref<16x32xf32, #tpu.memory_space<vmem>>, vector<8x8xf32>
    tpu.vector_store %arg29[%c8_86, %c8_87], %161 {strides = array<i32>} : memref<16x32xf32, #tpu.memory_space<vmem>>, vector<8x8xf32>,
    %c8_88 = arith.constant 8 : index
    %c16_89 = arith.constant 16 : index
    %163 = vector.load %arg28[%c8_88, %c16_89] : memref<16x96xf32, #tpu.memory_space<vmem>>, vector<8x8xf32>
    %c8_90 = arith.constant 8 : index
    %c48_91 = arith.constant 48 : index
    %164 = vector.load %arg28[%c8_90, %c48_91] : memref<16x96xf32, #tpu.memory_space<vmem>>, vector<8x8xf32>
    %c8_92 = arith.constant 8 : index
    %c80_93 = arith.constant 80 : index
    %165 = vector.load %arg28[%c8_92, %c80_93] : memref<16x96xf32, #tpu.memory_space<vmem>>, vector<8x8xf32>
    %166 = tpu.transpose %164, [1, 0] : vector<8x8xf32> -> vector<8x8xf32>
    %cst_94 = arith.constant dense<0.000000e+00> : vector<8x8xf32>
    %167 = tpu.matmul %163, %166, %cst_94 {dimension_numbers = #tpu.dot_dimension_numbers<[1], [0], [0], [1], [0, 0, 1, 1], [], []>} : vector<8x8xf32>, vector<8x8xf32>, vector<8x8xf32> -> vector<8x8xf32>
    %cst_95 = arith.constant 0.353553385 : f32
    %168 = vector.broadcast %cst_95 : f32 to vector<8x8xf32>
    %169 = arith.mulf %167, %168 : vector<8x8xf32>
    %170 = vector.broadcast %28 : vector<1x8xf32> to vector<8x8xf32>
    %171 = arith.addf %169, %170 : vector<8x8xf32>
    %cst_96 = arith.constant dense<0xFF800000> : vector<8xf32>
    %172 = vector.multi_reduction <maximumf>, %171, %cst_96 [1] : vector<8x8xf32> to vector<8xf32>
    %173 = vector.shape_cast %172 : vector<8xf32> to vector<8x1xf32>
    %174 = vector.broadcast %173 : vector<8x1xf32> to vector<8x8xf32>
    %175 = arith.subf %171, %174 : vector<8x8xf32>
    %176 = math.exp %175 : vector<8x8xf32>
    %cst_97 = arith.constant dense<0.000000e+00> : vector<8xf32>
    %177 = vector.multi_reduction <add>, %176, %cst_97 [1] : vector<8x8xf32> to vector<8xf32>
    %178 = vector.shape_cast %177 : vector<8xf32> to vector<8x1xf32>
    %179 = tpu.reciprocal %178 {approx = true} : vector<8x1xf32> -> vector<8x1xf32>
    %180 = vector.broadcast %179 : vector<8x1xf32> to vector<8x8xf32>
    %181 = arith.mulf %176, %180 : vector<8x8xf32>
    %cst_98 = arith.constant dense<0.000000e+00> : vector<8x8xf32>
    %182 = tpu.matmul %181, %165, %cst_98 {dimension_numbers = #tpu.dot_dimension_numbers<[1], [0], [0], [1], [0, 0, 1, 1], [], []>} : vector<8x8xf32>, vector<8x8xf32>, vector<8x8xf32> -> vector<8x8xf32>
    %c8_99 = arith.constant 8 : index
    %c16_100 = arith.constant 16 : index
    %183 = vector.load %arg29[%c8_99, %c16_100] : memref<16x32xf32, #tpu.memory_space<vmem>>, vector<8x8xf32>
    tpu.vector_store %arg29[%c8_99, %c16_100], %182 {strides = array<i32>} : memref<16x32xf32, #tpu.memory_space<vmem>>, vector<8x8xf32>,
    %c8_101 = arith.constant 8 : index
    %c24_102 = arith.constant 24 : index
    %184 = vector.load %arg28[%c8_101, %c24_102] : memref<16x96xf32, #tpu.memory_space<vmem>>, vector<8x8xf32>
    %c8_103 = arith.constant 8 : index
    %c56_104 = arith.constant 56 : index
    %185 = vector.load %arg28[%c8_103, %c56_104] : memref<16x96xf32, #tpu.memory_space<vmem>>, vector<8x8xf32>
    %c8_105 = arith.constant 8 : index
    %c88_106 = arith.constant 88 : index
    %186 = vector.load %arg28[%c8_105, %c88_106] : memref<16x96xf32, #tpu.memory_space<vmem>>, vector<8x8xf32>
    %187 = tpu.transpose %185, [1, 0] : vector<8x8xf32> -> vector<8x8xf32>
    %cst_107 = arith.constant dense<0.000000e+00> : vector<8x8xf32>
    %188 = tpu.matmul %184, %187, %cst_107 {dimension_numbers = #tpu.dot_dimension_numbers<[1], [0], [0], [1], [0, 0, 1, 1], [], []>} : vector<8x8xf32>, vector<8x8xf32>, vector<8x8xf32> -> vector<8x8xf32>
    %cst_108 = arith.constant 0.353553385 : f32
    %189 = vector.broadcast %cst_108 : f32 to vector<8x8xf32>
    %190 = arith.mulf %188, %189 : vector<8x8xf32>
    %191 = vector.broadcast %28 : vector<1x8xf32> to vector<8x8xf32>
    %192 = arith.addf %190, %191 : vector<8x8xf32>
    %cst_109 = arith.constant dense<0xFF800000> : vector<8xf32>
    %193 = vector.multi_reduction <maximumf>, %192, %cst_109 [1] : vector<8x8xf32> to vector<8xf32>
    %194 = vector.shape_cast %193 : vector<8xf32> to vector<8x1xf32>
    %195 = vector.broadcast %194 : vector<8x1xf32> to vector<8x8xf32>
    %196 = arith.subf %192, %195 : vector<8x8xf32>
    %197 = math.exp %196 : vector<8x8xf32>
    %cst_110 = arith.constant dense<0.000000e+00> : vector<8xf32>
    %198 = vector.multi_reduction <add>, %197, %cst_110 [1] : vector<8x8xf32> to vector<8xf32>
    %199 = vector.shape_cast %198 : vector<8xf32> to vector<8x1xf32>
    %200 = tpu.reciprocal %199 {approx = true} : vector<8x1xf32> -> vector<8x1xf32>
    %201 = vector.broadcast %200 : vector<8x1xf32> to vector<8x8xf32>
    %202 = arith.mulf %197, %201 : vector<8x8xf32>
    %cst_111 = arith.constant dense<0.000000e+00> : vector<8x8xf32>
    %203 = tpu.matmul %202, %186, %cst_111 {dimension_numbers = #tpu.dot_dimension_numbers<[1], [0], [0], [1], [0, 0, 1, 1], [], []>} : vector<8x8xf32>, vector<8x8xf32>, vector<8x8xf32> -> vector<8x8xf32>
    %c8_112 = arith.constant 8 : index
    %c24_113 = arith.constant 24 : index
    %204 = vector.load %arg29[%c8_112, %c24_113] : memref<16x32xf32, #tpu.memory_space<vmem>>, vector<8x8xf32>
    tpu.vector_store %arg29[%c8_112, %c24_113], %203 {strides = array<i32>} : memref<16x32xf32, #tpu.memory_space<vmem>>, vector<8x8xf32>,
    %c0_114 = arith.constant 0 : index
    %c0_115 = arith.constant 0 : index
    %205 = vector.load %arg29[%c0_114, %c0_115] : memref<16x32xf32, #tpu.memory_space<vmem>>, vector<16x32xf32>
    %c0_116 = arith.constant 0 : index
    %c0_117 = arith.constant 0 : index
    %c0_118 = arith.constant 0 : index
    %206 = vector.load %arg7[%c0_116, %c0_117, %c0_118] : memref<2x32x32xf32, #tpu.memory_space<vmem>>, vector<1x32x32xf32>
    %207 = vector.shape_cast %206 : vector<1x32x32xf32> to vector<32x32xf32>
    %cst_119 = arith.constant dense<0.000000e+00> : vector<16x32xf32>
    %208 = tpu.matmul %205, %207, %cst_119 {dimension_numbers = #tpu.dot_dimension_numbers<[1], [0], [0], [1], [0, 0, 1, 1], [], []>} : vector<16x32xf32>, vector<32x32xf32>, vector<16x32xf32> -> vector<16x32xf32>
    %c0_120 = arith.constant 0 : index
    %c0_121 = arith.constant 0 : index
    %c0_122 = arith.constant 0 : index
    %209 = vector.load %arg8[%c0_120, %c0_121, %c0_122] : memref<2x1x32xf32, #tpu.memory_space<vmem>>, vector<1x1x32xf32>
    %210 = vector.shape_cast %209 : vector<1x1x32xf32> to vector<1x32xf32>
    %211 = vector.broadcast %210 : vector<1x32xf32> to vector<16x32xf32>
    %212 = arith.addf %208, %211 : vector<16x32xf32>
    %213 = arith.addf %26, %212 : vector<16x32xf32>
    %c0_123 = arith.constant 0 : index
    %c0_124 = arith.constant 0 : index
    %c0_125 = arith.constant 0 : index
    %214 = vector.load %arg9[%c0_123, %c0_124, %c0_125] : memref<2x1x32xf32, #tpu.memory_space<vmem>>, vector<1x1x32xf32>
    %215 = vector.shape_cast %214 : vector<1x1x32xf32> to vector<1x32xf32>
    %c0_126 = arith.constant 0 : index
    %c0_127 = arith.constant 0 : index
    %c0_128 = arith.constant 0 : index
    %216 = vector.load %arg10[%c0_126, %c0_127, %c0_128] : memref<2x1x32xf32, #tpu.memory_space<vmem>>, vector<1x1x32xf32>
    %217 = vector.shape_cast %216 : vector<1x1x32xf32> to vector<1x32xf32>
    %cst_129 = arith.constant dense<0.000000e+00> : vector<16xf32>
    %218 = vector.multi_reduction <add>, %213, %cst_129 [1] : vector<16x32xf32> to vector<16xf32>
    %219 = vector.shape_cast %218 : vector<16xf32> to vector<16x1xf32>
    %cst_130 = arith.constant 3.200000e+01 : f32
    %220 = vector.broadcast %cst_130 : f32 to vector<16x1xf32>
    %221 = arith.divf %219, %220 : vector<16x1xf32>
    %222 = vector.broadcast %221 : vector<16x1xf32> to vector<16x32xf32>
    %223 = arith.subf %213, %222 : vector<16x32xf32>
    %224 = vector.broadcast %221 : vector<16x1xf32> to vector<16x32xf32>
    %225 = arith.subf %213, %224 : vector<16x32xf32>
    %226 = arith.mulf %223, %225 : vector<16x32xf32>
    %cst_131 = arith.constant dense<0.000000e+00> : vector<16xf32>
    %227 = vector.multi_reduction <add>, %226, %cst_131 [1] : vector<16x32xf32> to vector<16xf32>
    %228 = vector.shape_cast %227 : vector<16xf32> to vector<16x1xf32>
    %cst_132 = arith.constant 3.200000e+01 : f32
    %229 = vector.broadcast %cst_132 : f32 to vector<16x1xf32>
    %230 = arith.divf %228, %229 : vector<16x1xf32>
    %231 = vector.broadcast %221 : vector<16x1xf32> to vector<16x32xf32>
    %232 = arith.subf %213, %231 : vector<16x32xf32>
    %cst_133 = arith.constant 9.99999996E-13 : f32
    %233 = vector.broadcast %cst_133 : f32 to vector<16x1xf32>
    %234 = arith.addf %230, %233 : vector<16x1xf32>
    %235 = math.rsqrt %234 : vector<16x1xf32>
    %236 = vector.broadcast %235 : vector<16x1xf32> to vector<16x32xf32>
    %237 = arith.mulf %232, %236 : vector<16x32xf32>
    %238 = vector.broadcast %215 : vector<1x32xf32> to vector<16x32xf32>
    %239 = arith.mulf %237, %238 : vector<16x32xf32>
    %240 = vector.broadcast %217 : vector<1x32xf32> to vector<16x32xf32>
    %241 = arith.addf %239, %240 : vector<16x32xf32>
    %c0_134 = arith.constant 0 : index
    %c0_135 = arith.constant 0 : index
    %c0_136 = arith.constant 0 : index
    %242 = vector.load %arg11[%c0_134, %c0_135, %c0_136] : memref<2x32x64xf32, #tpu.memory_space<vmem>>, vector<1x32x64xf32>
    %243 = vector.shape_cast %242 : vector<1x32x64xf32> to vector<32x64xf32>
    %cst_137 = arith.constant dense<0.000000e+00> : vector<16x64xf32>
    %244 = tpu.matmul %241, %243, %cst_137 {dimension_numbers = #tpu.dot_dimension_numbers<[1], [0], [0], [1], [0, 0, 1, 1], [], []>} : vector<16x32xf32>, vector<32x64xf32>, vector<16x64xf32> -> vector<16x64xf32>
    %c0_138 = arith.constant 0 : index
    %c0_139 = arith.constant 0 : index
    %c0_140 = arith.constant 0 : index
    %245 = vector.load %arg12[%c0_138, %c0_139, %c0_140] : memref<2x1x64xf32, #tpu.memory_space<vmem>>, vector<1x1x64xf32>
    %246 = vector.shape_cast %245 : vector<1x1x64xf32> to vector<1x64xf32>
    %247 = vector.broadcast %246 : vector<1x64xf32> to vector<16x64xf32>
    %248 = arith.addf %244, %247 : vector<16x64xf32>
    %249 = arith.mulf %248, %248 : vector<16x64xf32>
    %250 = arith.mulf %248, %249 : vector<16x64xf32>
    %cst_141 = arith.constant 4.471500e-02 : f32
    %251 = vector.broadcast %cst_141 : f32 to vector<16x64xf32>
    %252 = arith.mulf %251, %250 : vector<16x64xf32>
    %253 = arith.addf %248, %252 : vector<16x64xf32>
    %cst_142 = arith.constant 0.797884583 : f32
    %254 = vector.broadcast %cst_142 : f32 to vector<16x64xf32>
    %255 = arith.mulf %254, %253 : vector<16x64xf32>
    %256 = math.tanh %255 : vector<16x64xf32>
    %cst_143 = arith.constant 1.000000e+00 : f32
    %257 = vector.broadcast %cst_143 : f32 to vector<16x64xf32>
    %258 = arith.addf %257, %256 : vector<16x64xf32>
    %cst_144 = arith.constant 5.000000e-01 : f32
    %259 = vector.broadcast %cst_144 : f32 to vector<16x64xf32>
    %260 = arith.mulf %259, %258 : vector<16x64xf32>
    %261 = arith.mulf %248, %260 : vector<16x64xf32>
    %c0_145 = arith.constant 0 : index
    %c0_146 = arith.constant 0 : index
    %c0_147 = arith.constant 0 : index
    %262 = vector.load %arg13[%c0_145, %c0_146, %c0_147] : memref<2x64x32xf32, #tpu.memory_space<vmem>>, vector<1x64x32xf32>
    %263 = vector.shape_cast %262 : vector<1x64x32xf32> to vector<64x32xf32>
    %cst_148 = arith.constant dense<0.000000e+00> : vector<16x32xf32>
    %264 = tpu.matmul %261, %263, %cst_148 {dimension_numbers = #tpu.dot_dimension_numbers<[1], [0], [0], [1], [0, 0, 1, 1], [], []>} : vector<16x64xf32>, vector<64x32xf32>, vector<16x32xf32> -> vector<16x32xf32>
    %c0_149 = arith.constant 0 : index
    %c0_150 = arith.constant 0 : index
    %c0_151 = arith.constant 0 : index
    %265 = vector.load %arg14[%c0_149, %c0_150, %c0_151] : memref<2x1x32xf32, #tpu.memory_space<vmem>>, vector<1x1x32xf32>
    %266 = vector.shape_cast %265 : vector<1x1x32xf32> to vector<1x32xf32>
    %267 = vector.broadcast %266 : vector<1x32xf32> to vector<16x32xf32>
    %268 = arith.addf %264, %267 : vector<16x32xf32>
    %269 = arith.addf %241, %268 : vector<16x32xf32>
    %c0_152 = arith.constant 0 : index
    %c0_153 = arith.constant 0 : index
    %c0_154 = arith.constant 0 : index
    %270 = vector.load %arg15[%c0_152, %c0_153, %c0_154] : memref<2x1x32xf32, #tpu.memory_space<vmem>>, vector<1x1x32xf32>
    %271 = vector.shape_cast %270 : vector<1x1x32xf32> to vector<1x32xf32>
    %c0_155 = arith.constant 0 : index
    %c0_156 = arith.constant 0 : index
    %c0_157 = arith.constant 0 : index
    %272 = vector.load %arg16[%c0_155, %c0_156, %c0_157] : memref<2x1x32xf32, #tpu.memory_space<vmem>>, vector<1x1x32xf32>
    %273 = vector.shape_cast %272 : vector<1x1x32xf32> to vector<1x32xf32>
    %cst_158 = arith.constant dense<0.000000e+00> : vector<16xf32>
    %274 = vector.multi_reduction <add>, %269, %cst_158 [1] : vector<16x32xf32> to vector<16xf32>
    %275 = vector.shape_cast %274 : vector<16xf32> to vector<16x1xf32>
    %cst_159 = arith.constant 3.200000e+01 : f32
    %276 = vector.broadcast %cst_159 : f32 to vector<16x1xf32>
    %277 = arith.divf %275, %276 : vector<16x1xf32>
    %278 = vector.broadcast %277 : vector<16x1xf32> to vector<16x32xf32>
    %279 = arith.subf %269, %278 : vector<16x32xf32>
    %280 = vector.broadcast %277 : vector<16x1xf32> to vector<16x32xf32>
    %281 = arith.subf %269, %280 : vector<16x32xf32>
    %282 = arith.mulf %279, %281 : vector<16x32xf32>
    %cst_160 = arith.constant dense<0.000000e+00> : vector<16xf32>
    %283 = vector.multi_reduction <add>, %282, %cst_160 [1] : vector<16x32xf32> to vector<16xf32>
    %284 = vector.shape_cast %283 : vector<16xf32> to vector<16x1xf32>
    %cst_161 = arith.constant 3.200000e+01 : f32
    %285 = vector.broadcast %cst_161 : f32 to vector<16x1xf32>
    %286 = arith.divf %284, %285 : vector<16x1xf32>
    %287 = vector.broadcast %277 : vector<16x1xf32> to vector<16x32xf32>
    %288 = arith.subf %269, %287 : vector<16x32xf32>
    %cst_162 = arith.constant 9.99999996E-13 : f32
    %289 = vector.broadcast %cst_162 : f32 to vector<16x1xf32>
    %290 = arith.addf %286, %289 : vector<16x1xf32>
    %291 = math.rsqrt %290 : vector<16x1xf32>
    %292 = vector.broadcast %291 : vector<16x1xf32> to vector<16x32xf32>
    %293 = arith.mulf %288, %292 : vector<16x32xf32>
    %294 = vector.broadcast %271 : vector<1x32xf32> to vector<16x32xf32>
    %295 = arith.mulf %293, %294 : vector<16x32xf32>
    %296 = vector.broadcast %273 : vector<1x32xf32> to vector<16x32xf32>
    %297 = arith.addf %295, %296 : vector<16x32xf32>
    %c1_163 = arith.constant 1 : index
    %c0_164 = arith.constant 0 : index
    %c0_165 = arith.constant 0 : index
    %298 = vector.load %arg5[%c1_163, %c0_164, %c0_165] : memref<2x32x96xf32, #tpu.memory_space<vmem>>, vector<1x32x96xf32>
    %299 = vector.shape_cast %298 : vector<1x32x96xf32> to vector<32x96xf32>
    %cst_166 = arith.constant dense<0.000000e+00> : vector<16x96xf32>
    %300 = tpu.matmul %297, %299, %cst_166 {dimension_numbers = #tpu.dot_dimension_numbers<[1], [0], [0], [1], [0, 0, 1, 1], [], []>} : vector<16x32xf32>, vector<32x96xf32>, vector<16x96xf32> -> vector<16x96xf32>
    %c1_167 = arith.constant 1 : index
    %c0_168 = arith.constant 0 : index
    %c0_169 = arith.constant 0 : index
    %301 = vector.load %arg6[%c1_167, %c0_168, %c0_169] : memref<2x1x96xf32, #tpu.memory_space<vmem>>, vector<1x1x96xf32>
    %302 = vector.shape_cast %301 : vector<1x1x96xf32> to vector<1x96xf32>
    %303 = vector.broadcast %302 : vector<1x96xf32> to vector<16x96xf32>
    %304 = arith.addf %300, %303 : vector<16x96xf32>
    %c0_170 = arith.constant 0 : index
    %c0_171 = arith.constant 0 : index
    %305 = vector.load %arg28[%c0_170, %c0_171] : memref<16x96xf32, #tpu.memory_space<vmem>>, vector<16x96xf32>
    tpu.vector_store %arg28[%c0_170, %c0_171], %304 {strides = array<i32>} : memref<16x96xf32, #tpu.memory_space<vmem>>, vector<16x96xf32>,
    %c0_172 = arith.constant 0 : index
    %c0_173 = arith.constant 0 : index
    %306 = vector.load %arg28[%c0_172, %c0_173] : memref<16x96xf32, #tpu.memory_space<vmem>>, vector<8x8xf32>
    %c0_174 = arith.constant 0 : index
    %c32_175 = arith.constant 32 : index
    %307 = vector.load %arg28[%c0_174, %c32_175] : memref<16x96xf32, #tpu.memory_space<vmem>>, vector<8x8xf32>
    %c0_176 = arith.constant 0 : index
    %c64_177 = arith.constant 64 : index
    %308 = vector.load %arg28[%c0_176, %c64_177] : memref<16x96xf32, #tpu.memory_space<vmem>>, vector<8x8xf32>
    %309 = tpu.transpose %307, [1, 0] : vector<8x8xf32> -> vector<8x8xf32>
    %cst_178 = arith.constant dense<0.000000e+00> : vector<8x8xf32>
    %310 = tpu.matmul %306, %309, %cst_178 {dimension_numbers = #tpu.dot_dimension_numbers<[1], [0], [0], [1], [0, 0, 1, 1], [], []>} : vector<8x8xf32>, vector<8x8xf32>, vector<8x8xf32> -> vector<8x8xf32>
    %cst_179 = arith.constant 0.353553385 : f32
    %311 = vector.broadcast %cst_179 : f32 to vector<8x8xf32>
    %312 = arith.mulf %310, %311 : vector<8x8xf32>
    %313 = vector.broadcast %27 : vector<1x8xf32> to vector<8x8xf32>
    %314 = arith.addf %312, %313 : vector<8x8xf32>
    %cst_180 = arith.constant dense<0xFF800000> : vector<8xf32>
    %315 = vector.multi_reduction <maximumf>, %314, %cst_180 [1] : vector<8x8xf32> to vector<8xf32>
    %316 = vector.shape_cast %315 : vector<8xf32> to vector<8x1xf32>
    %317 = vector.broadcast %316 : vector<8x1xf32> to vector<8x8xf32>
    %318 = arith.subf %314, %317 : vector<8x8xf32>
    %319 = math.exp %318 : vector<8x8xf32>
    %cst_181 = arith.constant dense<0.000000e+00> : vector<8xf32>
    %320 = vector.multi_reduction <add>, %319, %cst_181 [1] : vector<8x8xf32> to vector<8xf32>
    %321 = vector.shape_cast %320 : vector<8xf32> to vector<8x1xf32>
    %322 = tpu.reciprocal %321 {approx = true} : vector<8x1xf32> -> vector<8x1xf32>
    %323 = vector.broadcast %322 : vector<8x1xf32> to vector<8x8xf32>
    %324 = arith.mulf %319, %323 : vector<8x8xf32>
    %cst_182 = arith.constant dense<0.000000e+00> : vector<8x8xf32>
    %325 = tpu.matmul %324, %308, %cst_182 {dimension_numbers = #tpu.dot_dimension_numbers<[1], [0], [0], [1], [0, 0, 1, 1], [], []>} : vector<8x8xf32>, vector<8x8xf32>, vector<8x8xf32> -> vector<8x8xf32>
    %c0_183 = arith.constant 0 : index
    %c0_184 = arith.constant 0 : index
    %326 = vector.load %arg29[%c0_183, %c0_184] : memref<16x32xf32, #tpu.memory_space<vmem>>, vector<8x8xf32>
    tpu.vector_store %arg29[%c0_183, %c0_184], %325 {strides = array<i32>} : memref<16x32xf32, #tpu.memory_space<vmem>>, vector<8x8xf32>,
    %c0_185 = arith.constant 0 : index
    %c8_186 = arith.constant 8 : index
    %327 = vector.load %arg28[%c0_185, %c8_186] : memref<16x96xf32, #tpu.memory_space<vmem>>, vector<8x8xf32>
    %c0_187 = arith.constant 0 : index
    %c40_188 = arith.constant 40 : index
    %328 = vector.load %arg28[%c0_187, %c40_188] : memref<16x96xf32, #tpu.memory_space<vmem>>, vector<8x8xf32>
    %c0_189 = arith.constant 0 : index
    %c72_190 = arith.constant 72 : index
    %329 = vector.load %arg28[%c0_189, %c72_190] : memref<16x96xf32, #tpu.memory_space<vmem>>, vector<8x8xf32>
    %330 = tpu.transpose %328, [1, 0] : vector<8x8xf32> -> vector<8x8xf32>
    %cst_191 = arith.constant dense<0.000000e+00> : vector<8x8xf32>
    %331 = tpu.matmul %327, %330, %cst_191 {dimension_numbers = #tpu.dot_dimension_numbers<[1], [0], [0], [1], [0, 0, 1, 1], [], []>} : vector<8x8xf32>, vector<8x8xf32>, vector<8x8xf32> -> vector<8x8xf32>
    %cst_192 = arith.constant 0.353553385 : f32
    %332 = vector.broadcast %cst_192 : f32 to vector<8x8xf32>
    %333 = arith.mulf %331, %332 : vector<8x8xf32>
    %334 = vector.broadcast %27 : vector<1x8xf32> to vector<8x8xf32>
    %335 = arith.addf %333, %334 : vector<8x8xf32>
    %cst_193 = arith.constant dense<0xFF800000> : vector<8xf32>
    %336 = vector.multi_reduction <maximumf>, %335, %cst_193 [1] : vector<8x8xf32> to vector<8xf32>
    %337 = vector.shape_cast %336 : vector<8xf32> to vector<8x1xf32>
    %338 = vector.broadcast %337 : vector<8x1xf32> to vector<8x8xf32>
    %339 = arith.subf %335, %338 : vector<8x8xf32>
    %340 = math.exp %339 : vector<8x8xf32>
    %cst_194 = arith.constant dense<0.000000e+00> : vector<8xf32>
    %341 = vector.multi_reduction <add>, %340, %cst_194 [1] : vector<8x8xf32> to vector<8xf32>
    %342 = vector.shape_cast %341 : vector<8xf32> to vector<8x1xf32>
    %343 = tpu.reciprocal %342 {approx = true} : vector<8x1xf32> -> vector<8x1xf32>
    %344 = vector.broadcast %343 : vector<8x1xf32> to vector<8x8xf32>
    %345 = arith.mulf %340, %344 : vector<8x8xf32>
    %cst_195 = arith.constant dense<0.000000e+00> : vector<8x8xf32>
    %346 = tpu.matmul %345, %329, %cst_195 {dimension_numbers = #tpu.dot_dimension_numbers<[1], [0], [0], [1], [0, 0, 1, 1], [], []>} : vector<8x8xf32>, vector<8x8xf32>, vector<8x8xf32> -> vector<8x8xf32>
    %c0_196 = arith.constant 0 : index
    %c8_197 = arith.constant 8 : index
    %347 = vector.load %arg29[%c0_196, %c8_197] : memref<16x32xf32, #tpu.memory_space<vmem>>, vector<8x8xf32>
    tpu.vector_store %arg29[%c0_196, %c8_197], %346 {strides = array<i32>} : memref<16x32xf32, #tpu.memory_space<vmem>>, vector<8x8xf32>,
    %c0_198 = arith.constant 0 : index
    %c16_199 = arith.constant 16 : index
    %348 = vector.load %arg28[%c0_198, %c16_199] : memref<16x96xf32, #tpu.memory_space<vmem>>, vector<8x8xf32>
    %c0_200 = arith.constant 0 : index
    %c48_201 = arith.constant 48 : index
    %349 = vector.load %arg28[%c0_200, %c48_201] : memref<16x96xf32, #tpu.memory_space<vmem>>, vector<8x8xf32>
    %c0_202 = arith.constant 0 : index
    %c80_203 = arith.constant 80 : index
    %350 = vector.load %arg28[%c0_202, %c80_203] : memref<16x96xf32, #tpu.memory_space<vmem>>, vector<8x8xf32>
    %351 = tpu.transpose %349, [1, 0] : vector<8x8xf32> -> vector<8x8xf32>
    %cst_204 = arith.constant dense<0.000000e+00> : vector<8x8xf32>
    %352 = tpu.matmul %348, %351, %cst_204 {dimension_numbers = #tpu.dot_dimension_numbers<[1], [0], [0], [1], [0, 0, 1, 1], [], []>} : vector<8x8xf32>, vector<8x8xf32>, vector<8x8xf32> -> vector<8x8xf32>
    %cst_205 = arith.constant 0.353553385 : f32
    %353 = vector.broadcast %cst_205 : f32 to vector<8x8xf32>
    %354 = arith.mulf %352, %353 : vector<8x8xf32>
    %355 = vector.broadcast %27 : vector<1x8xf32> to vector<8x8xf32>
    %356 = arith.addf %354, %355 : vector<8x8xf32>
    %cst_206 = arith.constant dense<0xFF800000> : vector<8xf32>
    %357 = vector.multi_reduction <maximumf>, %356, %cst_206 [1] : vector<8x8xf32> to vector<8xf32>
    %358 = vector.shape_cast %357 : vector<8xf32> to vector<8x1xf32>
    %359 = vector.broadcast %358 : vector<8x1xf32> to vector<8x8xf32>
    %360 = arith.subf %356, %359 : vector<8x8xf32>
    %361 = math.exp %360 : vector<8x8xf32>
    %cst_207 = arith.constant dense<0.000000e+00> : vector<8xf32>
    %362 = vector.multi_reduction <add>, %361, %cst_207 [1] : vector<8x8xf32> to vector<8xf32>
    %363 = vector.shape_cast %362 : vector<8xf32> to vector<8x1xf32>
    %364 = tpu.reciprocal %363 {approx = true} : vector<8x1xf32> -> vector<8x1xf32>
    %365 = vector.broadcast %364 : vector<8x1xf32> to vector<8x8xf32>
    %366 = arith.mulf %361, %365 : vector<8x8xf32>
    %cst_208 = arith.constant dense<0.000000e+00> : vector<8x8xf32>
    %367 = tpu.matmul %366, %350, %cst_208 {dimension_numbers = #tpu.dot_dimension_numbers<[1], [0], [0], [1], [0, 0, 1, 1], [], []>} : vector<8x8xf32>, vector<8x8xf32>, vector<8x8xf32> -> vector<8x8xf32>
    %c0_209 = arith.constant 0 : index
    %c16_210 = arith.constant 16 : index
    %368 = vector.load %arg29[%c0_209, %c16_210] : memref<16x32xf32, #tpu.memory_space<vmem>>, vector<8x8xf32>
    tpu.vector_store %arg29[%c0_209, %c16_210], %367 {strides = array<i32>} : memref<16x32xf32, #tpu.memory_space<vmem>>, vector<8x8xf32>,
    %c0_211 = arith.constant 0 : index
    %c24_212 = arith.constant 24 : index
    %369 = vector.load %arg28[%c0_211, %c24_212] : memref<16x96xf32, #tpu.memory_space<vmem>>, vector<8x8xf32>
    %c0_213 = arith.constant 0 : index
    %c56_214 = arith.constant 56 : index
    %370 = vector.load %arg28[%c0_213, %c56_214] : memref<16x96xf32, #tpu.memory_space<vmem>>, vector<8x8xf32>
    %c0_215 = arith.constant 0 : index
    %c88_216 = arith.constant 88 : index
    %371 = vector.load %arg28[%c0_215, %c88_216] : memref<16x96xf32, #tpu.memory_space<vmem>>, vector<8x8xf32>
    %372 = tpu.transpose %370, [1, 0] : vector<8x8xf32> -> vector<8x8xf32>
    %cst_217 = arith.constant dense<0.000000e+00> : vector<8x8xf32>
    %373 = tpu.matmul %369, %372, %cst_217 {dimension_numbers = #tpu.dot_dimension_numbers<[1], [0], [0], [1], [0, 0, 1, 1], [], []>} : vector<8x8xf32>, vector<8x8xf32>, vector<8x8xf32> -> vector<8x8xf32>
    %cst_218 = arith.constant 0.353553385 : f32
    %374 = vector.broadcast %cst_218 : f32 to vector<8x8xf32>
    %375 = arith.mulf %373, %374 : vector<8x8xf32>
    %376 = vector.broadcast %27 : vector<1x8xf32> to vector<8x8xf32>
    %377 = arith.addf %375, %376 : vector<8x8xf32>
    %cst_219 = arith.constant dense<0xFF800000> : vector<8xf32>
    %378 = vector.multi_reduction <maximumf>, %377, %cst_219 [1] : vector<8x8xf32> to vector<8xf32>
    %379 = vector.shape_cast %378 : vector<8xf32> to vector<8x1xf32>
    %380 = vector.broadcast %379 : vector<8x1xf32> to vector<8x8xf32>
    %381 = arith.subf %377, %380 : vector<8x8xf32>
    %382 = math.exp %381 : vector<8x8xf32>
    %cst_220 = arith.constant dense<0.000000e+00> : vector<8xf32>
    %383 = vector.multi_reduction <add>, %382, %cst_220 [1] : vector<8x8xf32> to vector<8xf32>
    %384 = vector.shape_cast %383 : vector<8xf32> to vector<8x1xf32>
    %385 = tpu.reciprocal %384 {approx = true} : vector<8x1xf32> -> vector<8x1xf32>
    %386 = vector.broadcast %385 : vector<8x1xf32> to vector<8x8xf32>
    %387 = arith.mulf %382, %386 : vector<8x8xf32>
    %cst_221 = arith.constant dense<0.000000e+00> : vector<8x8xf32>
    %388 = tpu.matmul %387, %371, %cst_221 {dimension_numbers = #tpu.dot_dimension_numbers<[1], [0], [0], [1], [0, 0, 1, 1], [], []>} : vector<8x8xf32>, vector<8x8xf32>, vector<8x8xf32> -> vector<8x8xf32>
    %c0_222 = arith.constant 0 : index
    %c24_223 = arith.constant 24 : index
    %389 = vector.load %arg29[%c0_222, %c24_223] : memref<16x32xf32, #tpu.memory_space<vmem>>, vector<8x8xf32>
    tpu.vector_store %arg29[%c0_222, %c24_223], %388 {strides = array<i32>} : memref<16x32xf32, #tpu.memory_space<vmem>>, vector<8x8xf32>,
    %c8_224 = arith.constant 8 : index
    %c0_225 = arith.constant 0 : index
    %390 = vector.load %arg28[%c8_224, %c0_225] : memref<16x96xf32, #tpu.memory_space<vmem>>, vector<8x8xf32>
    %c8_226 = arith.constant 8 : index
    %c32_227 = arith.constant 32 : index
    %391 = vector.load %arg28[%c8_226, %c32_227] : memref<16x96xf32, #tpu.memory_space<vmem>>, vector<8x8xf32>
    %c8_228 = arith.constant 8 : index
    %c64_229 = arith.constant 64 : index
    %392 = vector.load %arg28[%c8_228, %c64_229] : memref<16x96xf32, #tpu.memory_space<vmem>>, vector<8x8xf32>
    %393 = tpu.transpose %391, [1, 0] : vector<8x8xf32> -> vector<8x8xf32>
    %cst_230 = arith.constant dense<0.000000e+00> : vector<8x8xf32>
    %394 = tpu.matmul %390, %393, %cst_230 {dimension_numbers = #tpu.dot_dimension_numbers<[1], [0], [0], [1], [0, 0, 1, 1], [], []>} : vector<8x8xf32>, vector<8x8xf32>, vector<8x8xf32> -> vector<8x8xf32>
    %cst_231 = arith.constant 0.353553385 : f32
    %395 = vector.broadcast %cst_231 : f32 to vector<8x8xf32>
    %396 = arith.mulf %394, %395 : vector<8x8xf32>
    %397 = vector.broadcast %28 : vector<1x8xf32> to vector<8x8xf32>
    %398 = arith.addf %396, %397 : vector<8x8xf32>
    %cst_232 = arith.constant dense<0xFF800000> : vector<8xf32>
    %399 = vector.multi_reduction <maximumf>, %398, %cst_232 [1] : vector<8x8xf32> to vector<8xf32>
    %400 = vector.shape_cast %399 : vector<8xf32> to vector<8x1xf32>
    %401 = vector.broadcast %400 : vector<8x1xf32> to vector<8x8xf32>
    %402 = arith.subf %398, %401 : vector<8x8xf32>
    %403 = math.exp %402 : vector<8x8xf32>
    %cst_233 = arith.constant dense<0.000000e+00> : vector<8xf32>
    %404 = vector.multi_reduction <add>, %403, %cst_233 [1] : vector<8x8xf32> to vector<8xf32>
    %405 = vector.shape_cast %404 : vector<8xf32> to vector<8x1xf32>
    %406 = tpu.reciprocal %405 {approx = true} : vector<8x1xf32> -> vector<8x1xf32>
    %407 = vector.broadcast %406 : vector<8x1xf32> to vector<8x8xf32>
    %408 = arith.mulf %403, %407 : vector<8x8xf32>
    %cst_234 = arith.constant dense<0.000000e+00> : vector<8x8xf32>
    %409 = tpu.matmul %408, %392, %cst_234 {dimension_numbers = #tpu.dot_dimension_numbers<[1], [0], [0], [1], [0, 0, 1, 1], [], []>} : vector<8x8xf32>, vector<8x8xf32>, vector<8x8xf32> -> vector<8x8xf32>
    %c8_235 = arith.constant 8 : index
    %c0_236 = arith.constant 0 : index
    %410 = vector.load %arg29[%c8_235, %c0_236] : memref<16x32xf32, #tpu.memory_space<vmem>>, vector<8x8xf32>
    tpu.vector_store %arg29[%c8_235, %c0_236], %409 {strides = array<i32>} : memref<16x32xf32, #tpu.memory_space<vmem>>, vector<8x8xf32>,
    %c8_237 = arith.constant 8 : index
    %c8_238 = arith.constant 8 : index
    %411 = vector.load %arg28[%c8_237, %c8_238] : memref<16x96xf32, #tpu.memory_space<vmem>>, vector<8x8xf32>
    %c8_239 = arith.constant 8 : index
    %c40_240 = arith.constant 40 : index
    %412 = vector.load %arg28[%c8_239, %c40_240] : memref<16x96xf32, #tpu.memory_space<vmem>>, vector<8x8xf32>
    %c8_241 = arith.constant 8 : index
    %c72_242 = arith.constant 72 : index
    %413 = vector.load %arg28[%c8_241, %c72_242] : memref<16x96xf32, #tpu.memory_space<vmem>>, vector<8x8xf32>
    %414 = tpu.transpose %412, [1, 0] : vector<8x8xf32> -> vector<8x8xf32>
    %cst_243 = arith.constant dense<0.000000e+00> : vector<8x8xf32>
    %415 = tpu.matmul %411, %414, %cst_243 {dimension_numbers = #tpu.dot_dimension_numbers<[1], [0], [0], [1], [0, 0, 1, 1], [], []>} : vector<8x8xf32>, vector<8x8xf32>, vector<8x8xf32> -> vector<8x8xf32>
    %cst_244 = arith.constant 0.353553385 : f32
    %416 = vector.broadcast %cst_244 : f32 to vector<8x8xf32>
    %417 = arith.mulf %415, %416 : vector<8x8xf32>
    %418 = vector.broadcast %28 : vector<1x8xf32> to vector<8x8xf32>
    %419 = arith.addf %417, %418 : vector<8x8xf32>
    %cst_245 = arith.constant dense<0xFF800000> : vector<8xf32>
    %420 = vector.multi_reduction <maximumf>, %419, %cst_245 [1] : vector<8x8xf32> to vector<8xf32>
    %421 = vector.shape_cast %420 : vector<8xf32> to vector<8x1xf32>
    %422 = vector.broadcast %421 : vector<8x1xf32> to vector<8x8xf32>
    %423 = arith.subf %419, %422 : vector<8x8xf32>
    %424 = math.exp %423 : vector<8x8xf32>
    %cst_246 = arith.constant dense<0.000000e+00> : vector<8xf32>
    %425 = vector.multi_reduction <add>, %424, %cst_246 [1] : vector<8x8xf32> to vector<8xf32>
    %426 = vector.shape_cast %425 : vector<8xf32> to vector<8x1xf32>
    %427 = tpu.reciprocal %426 {approx = true} : vector<8x1xf32> -> vector<8x1xf32>
    %428 = vector.broadcast %427 : vector<8x1xf32> to vector<8x8xf32>
    %429 = arith.mulf %424, %428 : vector<8x8xf32>
    %cst_247 = arith.constant dense<0.000000e+00> : vector<8x8xf32>
    %430 = tpu.matmul %429, %413, %cst_247 {dimension_numbers = #tpu.dot_dimension_numbers<[1], [0], [0], [1], [0, 0, 1, 1], [], []>} : vector<8x8xf32>, vector<8x8xf32>, vector<8x8xf32> -> vector<8x8xf32>
    %c8_248 = arith.constant 8 : index
    %c8_249 = arith.constant 8 : index
    %431 = vector.load %arg29[%c8_248, %c8_249] : memref<16x32xf32, #tpu.memory_space<vmem>>, vector<8x8xf32>
    tpu.vector_store %arg29[%c8_248, %c8_249], %430 {strides = array<i32>} : memref<16x32xf32, #tpu.memory_space<vmem>>, vector<8x8xf32>,
    %c8_250 = arith.constant 8 : index
    %c16_251 = arith.constant 16 : index
    %432 = vector.load %arg28[%c8_250, %c16_251] : memref<16x96xf32, #tpu.memory_space<vmem>>, vector<8x8xf32>
    %c8_252 = arith.constant 8 : index
    %c48_253 = arith.constant 48 : index
    %433 = vector.load %arg28[%c8_252, %c48_253] : memref<16x96xf32, #tpu.memory_space<vmem>>, vector<8x8xf32>
    %c8_254 = arith.constant 8 : index
    %c80_255 = arith.constant 80 : index
    %434 = vector.load %arg28[%c8_254, %c80_255] : memref<16x96xf32, #tpu.memory_space<vmem>>, vector<8x8xf32>
    %435 = tpu.transpose %433, [1, 0] : vector<8x8xf32> -> vector<8x8xf32>
    %cst_256 = arith.constant dense<0.000000e+00> : vector<8x8xf32>
    %436 = tpu.matmul %432, %435, %cst_256 {dimension_numbers = #tpu.dot_dimension_numbers<[1], [0], [0], [1], [0, 0, 1, 1], [], []>} : vector<8x8xf32>, vector<8x8xf32>, vector<8x8xf32> -> vector<8x8xf32>
    %cst_257 = arith.constant 0.353553385 : f32
    %437 = vector.broadcast %cst_257 : f32 to vector<8x8xf32>
    %438 = arith.mulf %436, %437 : vector<8x8xf32>
    %439 = vector.broadcast %28 : vector<1x8xf32> to vector<8x8xf32>
    %440 = arith.addf %438, %439 : vector<8x8xf32>
    %cst_258 = arith.constant dense<0xFF800000> : vector<8xf32>
    %441 = vector.multi_reduction <maximumf>, %440, %cst_258 [1] : vector<8x8xf32> to vector<8xf32>
    %442 = vector.shape_cast %441 : vector<8xf32> to vector<8x1xf32>
    %443 = vector.broadcast %442 : vector<8x1xf32> to vector<8x8xf32>
    %444 = arith.subf %440, %443 : vector<8x8xf32>
    %445 = math.exp %444 : vector<8x8xf32>
    %cst_259 = arith.constant dense<0.000000e+00> : vector<8xf32>
    %446 = vector.multi_reduction <add>, %445, %cst_259 [1] : vector<8x8xf32> to vector<8xf32>
    %447 = vector.shape_cast %446 : vector<8xf32> to vector<8x1xf32>
    %448 = tpu.reciprocal %447 {approx = true} : vector<8x1xf32> -> vector<8x1xf32>
    %449 = vector.broadcast %448 : vector<8x1xf32> to vector<8x8xf32>
    %450 = arith.mulf %445, %449 : vector<8x8xf32>
    %cst_260 = arith.constant dense<0.000000e+00> : vector<8x8xf32>
    %451 = tpu.matmul %450, %434, %cst_260 {dimension_numbers = #tpu.dot_dimension_numbers<[1], [0], [0], [1], [0, 0, 1, 1], [], []>} : vector<8x8xf32>, vector<8x8xf32>, vector<8x8xf32> -> vector<8x8xf32>
    %c8_261 = arith.constant 8 : index
    %c16_262 = arith.constant 16 : index
    %452 = vector.load %arg29[%c8_261, %c16_262] : memref<16x32xf32, #tpu.memory_space<vmem>>, vector<8x8xf32>
    tpu.vector_store %arg29[%c8_261, %c16_262], %451 {strides = array<i32>} : memref<16x32xf32, #tpu.memory_space<vmem>>, vector<8x8xf32>,
    %c8_263 = arith.constant 8 : index
    %c24_264 = arith.constant 24 : index
    %453 = vector.load %arg28[%c8_263, %c24_264] : memref<16x96xf32, #tpu.memory_space<vmem>>, vector<8x8xf32>
    %c8_265 = arith.constant 8 : index
    %c56_266 = arith.constant 56 : index
    %454 = vector.load %arg28[%c8_265, %c56_266] : memref<16x96xf32, #tpu.memory_space<vmem>>, vector<8x8xf32>
    %c8_267 = arith.constant 8 : index
    %c88_268 = arith.constant 88 : index
    %455 = vector.load %arg28[%c8_267, %c88_268] : memref<16x96xf32, #tpu.memory_space<vmem>>, vector<8x8xf32>
    %456 = tpu.transpose %454, [1, 0] : vector<8x8xf32> -> vector<8x8xf32>
    %cst_269 = arith.constant dense<0.000000e+00> : vector<8x8xf32>
    %457 = tpu.matmul %453, %456, %cst_269 {dimension_numbers = #tpu.dot_dimension_numbers<[1], [0], [0], [1], [0, 0, 1, 1], [], []>} : vector<8x8xf32>, vector<8x8xf32>, vector<8x8xf32> -> vector<8x8xf32>
    %cst_270 = arith.constant 0.353553385 : f32
    %458 = vector.broadcast %cst_270 : f32 to vector<8x8xf32>
    %459 = arith.mulf %457, %458 : vector<8x8xf32>
    %460 = vector.broadcast %28 : vector<1x8xf32> to vector<8x8xf32>
    %461 = arith.addf %459, %460 : vector<8x8xf32>
    %cst_271 = arith.constant dense<0xFF800000> : vector<8xf32>
    %462 = vector.multi_reduction <maximumf>, %461, %cst_271 [1] : vector<8x8xf32> to vector<8xf32>
    %463 = vector.shape_cast %462 : vector<8xf32> to vector<8x1xf32>
    %464 = vector.broadcast %463 : vector<8x1xf32> to vector<8x8xf32>
    %465 = arith.subf %461, %464 : vector<8x8xf32>
    %466 = math.exp %465 : vector<8x8xf32>
    %cst_272 = arith.constant dense<0.000000e+00> : vector<8xf32>
    %467 = vector.multi_reduction <add>, %466, %cst_272 [1] : vector<8x8xf32> to vector<8xf32>
    %468 = vector.shape_cast %467 : vector<8xf32> to vector<8x1xf32>
    %469 = tpu.reciprocal %468 {approx = true} : vector<8x1xf32> -> vector<8x1xf32>
    %470 = vector.broadcast %469 : vector<8x1xf32> to vector<8x8xf32>
    %471 = arith.mulf %466, %470 : vector<8x8xf32>
    %cst_273 = arith.constant dense<0.000000e+00> : vector<8x8xf32>
    %472 = tpu.matmul %471, %455, %cst_273 {dimension_numbers = #tpu.dot_dimension_numbers<[1], [0], [0], [1], [0, 0, 1, 1], [], []>} : vector<8x8xf32>, vector<8x8xf32>, vector<8x8xf32> -> vector<8x8xf32>
    %c8_274 = arith.constant 8 : index
    %c24_275 = arith.constant 24 : index
    %473 = vector.load %arg29[%c8_274, %c24_275] : memref<16x32xf32, #tpu.memory_space<vmem>>, vector<8x8xf32>
    tpu.vector_store %arg29[%c8_274, %c24_275], %472 {strides = array<i32>} : memref<16x32xf32, #tpu.memory_space<vmem>>, vector<8x8xf32>,
    %c0_276 = arith.constant 0 : index
    %c0_277 = arith.constant 0 : index
    %474 = vector.load %arg29[%c0_276, %c0_277] : memref<16x32xf32, #tpu.memory_space<vmem>>, vector<16x32xf32>
    %c1_278 = arith.constant 1 : index
    %c0_279 = arith.constant 0 : index
    %c0_280 = arith.constant 0 : index
    %475 = vector.load %arg7[%c1_278, %c0_279, %c0_280] : memref<2x32x32xf32, #tpu.memory_space<vmem>>, vector<1x32x32xf32>
    %476 = vector.shape_cast %475 : vector<1x32x32xf32> to vector<32x32xf32>
    %cst_281 = arith.constant dense<0.000000e+00> : vector<16x32xf32>
    %477 = tpu.matmul %474, %476, %cst_281 {dimension_numbers = #tpu.dot_dimension_numbers<[1], [0], [0], [1], [0, 0, 1, 1], [], []>} : vector<16x32xf32>, vector<32x32xf32>, vector<16x32xf32> -> vector<16x32xf32>
    %c1_282 = arith.constant 1 : index
    %c0_283 = arith.constant 0 : index
    %c0_284 = arith.constant 0 : index
    %478 = vector.load %arg8[%c1_282, %c0_283, %c0_284] : memref<2x1x32xf32, #tpu.memory_space<vmem>>, vector<1x1x32xf32>
    %479 = vector.shape_cast %478 : vector<1x1x32xf32> to vector<1x32xf32>
    %480 = vector.broadcast %479 : vector<1x32xf32> to vector<16x32xf32>
    %481 = arith.addf %477, %480 : vector<16x32xf32>
    %482 = arith.addf %297, %481 : vector<16x32xf32>
    %c1_285 = arith.constant 1 : index
    %c0_286 = arith.constant 0 : index
    %c0_287 = arith.constant 0 : index
    %483 = vector.load %arg9[%c1_285, %c0_286, %c0_287] : memref<2x1x32xf32, #tpu.memory_space<vmem>>, vector<1x1x32xf32>
    %484 = vector.shape_cast %483 : vector<1x1x32xf32> to vector<1x32xf32>
    %c1_288 = arith.constant 1 : index
    %c0_289 = arith.constant 0 : index
    %c0_290 = arith.constant 0 : index
    %485 = vector.load %arg10[%c1_288, %c0_289, %c0_290] : memref<2x1x32xf32, #tpu.memory_space<vmem>>, vector<1x1x32xf32>
    %486 = vector.shape_cast %485 : vector<1x1x32xf32> to vector<1x32xf32>
    %cst_291 = arith.constant dense<0.000000e+00> : vector<16xf32>
    %487 = vector.multi_reduction <add>, %482, %cst_291 [1] : vector<16x32xf32> to vector<16xf32>
    %488 = vector.shape_cast %487 : vector<16xf32> to vector<16x1xf32>
    %cst_292 = arith.constant 3.200000e+01 : f32
    %489 = vector.broadcast %cst_292 : f32 to vector<16x1xf32>
    %490 = arith.divf %488, %489 : vector<16x1xf32>
    %491 = vector.broadcast %490 : vector<16x1xf32> to vector<16x32xf32>
    %492 = arith.subf %482, %491 : vector<16x32xf32>
    %493 = vector.broadcast %490 : vector<16x1xf32> to vector<16x32xf32>
    %494 = arith.subf %482, %493 : vector<16x32xf32>
    %495 = arith.mulf %492, %494 : vector<16x32xf32>
    %cst_293 = arith.constant dense<0.000000e+00> : vector<16xf32>
    %496 = vector.multi_reduction <add>, %495, %cst_293 [1] : vector<16x32xf32> to vector<16xf32>
    %497 = vector.shape_cast %496 : vector<16xf32> to vector<16x1xf32>
    %cst_294 = arith.constant 3.200000e+01 : f32
    %498 = vector.broadcast %cst_294 : f32 to vector<16x1xf32>
    %499 = arith.divf %497, %498 : vector<16x1xf32>
    %500 = vector.broadcast %490 : vector<16x1xf32> to vector<16x32xf32>
    %501 = arith.subf %482, %500 : vector<16x32xf32>
    %cst_295 = arith.constant 9.99999996E-13 : f32
    %502 = vector.broadcast %cst_295 : f32 to vector<16x1xf32>
    %503 = arith.addf %499, %502 : vector<16x1xf32>
    %504 = math.rsqrt %503 : vector<16x1xf32>
    %505 = vector.broadcast %504 : vector<16x1xf32> to vector<16x32xf32>
    %506 = arith.mulf %501, %505 : vector<16x32xf32>
    %507 = vector.broadcast %484 : vector<1x32xf32> to vector<16x32xf32>
    %508 = arith.mulf %506, %507 : vector<16x32xf32>
    %509 = vector.broadcast %486 : vector<1x32xf32> to vector<16x32xf32>
    %510 = arith.addf %508, %509 : vector<16x32xf32>
    %c1_296 = arith.constant 1 : index
    %c0_297 = arith.constant 0 : index
    %c0_298 = arith.constant 0 : index
    %511 = vector.load %arg11[%c1_296, %c0_297, %c0_298] : memref<2x32x64xf32, #tpu.memory_space<vmem>>, vector<1x32x64xf32>
    %512 = vector.shape_cast %511 : vector<1x32x64xf32> to vector<32x64xf32>
    %cst_299 = arith.constant dense<0.000000e+00> : vector<16x64xf32>
    %513 = tpu.matmul %510, %512, %cst_299 {dimension_numbers = #tpu.dot_dimension_numbers<[1], [0], [0], [1], [0, 0, 1, 1], [], []>} : vector<16x32xf32>, vector<32x64xf32>, vector<16x64xf32> -> vector<16x64xf32>
    %c1_300 = arith.constant 1 : index
    %c0_301 = arith.constant 0 : index
    %c0_302 = arith.constant 0 : index
    %514 = vector.load %arg12[%c1_300, %c0_301, %c0_302] : memref<2x1x64xf32, #tpu.memory_space<vmem>>, vector<1x1x64xf32>
    %515 = vector.shape_cast %514 : vector<1x1x64xf32> to vector<1x64xf32>
    %516 = vector.broadcast %515 : vector<1x64xf32> to vector<16x64xf32>
    %517 = arith.addf %513, %516 : vector<16x64xf32>
    %518 = arith.mulf %517, %517 : vector<16x64xf32>
    %519 = arith.mulf %517, %518 : vector<16x64xf32>
    %cst_303 = arith.constant 4.471500e-02 : f32
    %520 = vector.broadcast %cst_303 : f32 to vector<16x64xf32>
    %521 = arith.mulf %520, %519 : vector<16x64xf32>
    %522 = arith.addf %517, %521 : vector<16x64xf32>
    %cst_304 = arith.constant 0.797884583 : f32
    %523 = vector.broadcast %cst_304 : f32 to vector<16x64xf32>
    %524 = arith.mulf %523, %522 : vector<16x64xf32>
    %525 = math.tanh %524 : vector<16x64xf32>
    %cst_305 = arith.constant 1.000000e+00 : f32
    %526 = vector.broadcast %cst_305 : f32 to vector<16x64xf32>
    %527 = arith.addf %526, %525 : vector<16x64xf32>
    %cst_306 = arith.constant 5.000000e-01 : f32
    %528 = vector.broadcast %cst_306 : f32 to vector<16x64xf32>
    %529 = arith.mulf %528, %527 : vector<16x64xf32>
    %530 = arith.mulf %517, %529 : vector<16x64xf32>
    %c1_307 = arith.constant 1 : index
    %c0_308 = arith.constant 0 : index
    %c0_309 = arith.constant 0 : index
    %531 = vector.load %arg13[%c1_307, %c0_308, %c0_309] : memref<2x64x32xf32, #tpu.memory_space<vmem>>, vector<1x64x32xf32>
    %532 = vector.shape_cast %531 : vector<1x64x32xf32> to vector<64x32xf32>
    %cst_310 = arith.constant dense<0.000000e+00> : vector<16x32xf32>
    %533 = tpu.matmul %530, %532, %cst_310 {dimension_numbers = #tpu.dot_dimension_numbers<[1], [0], [0], [1], [0, 0, 1, 1], [], []>} : vector<16x64xf32>, vector<64x32xf32>, vector<16x32xf32> -> vector<16x32xf32>
    %c1_311 = arith.constant 1 : index
    %c0_312 = arith.constant 0 : index
    %c0_313 = arith.constant 0 : index
    %534 = vector.load %arg14[%c1_311, %c0_312, %c0_313] : memref<2x1x32xf32, #tpu.memory_space<vmem>>, vector<1x1x32xf32>
    %535 = vector.shape_cast %534 : vector<1x1x32xf32> to vector<1x32xf32>
    %536 = vector.broadcast %535 : vector<1x32xf32> to vector<16x32xf32>
    %537 = arith.addf %533, %536 : vector<16x32xf32>
    %538 = arith.addf %510, %537 : vector<16x32xf32>
    %c1_314 = arith.constant 1 : index
    %c0_315 = arith.constant 0 : index
    %c0_316 = arith.constant 0 : index
    %539 = vector.load %arg15[%c1_314, %c0_315, %c0_316] : memref<2x1x32xf32, #tpu.memory_space<vmem>>, vector<1x1x32xf32>
    %540 = vector.shape_cast %539 : vector<1x1x32xf32> to vector<1x32xf32>
    %c1_317 = arith.constant 1 : index
    %c0_318 = arith.constant 0 : index
    %c0_319 = arith.constant 0 : index
    %541 = vector.load %arg16[%c1_317, %c0_318, %c0_319] : memref<2x1x32xf32, #tpu.memory_space<vmem>>, vector<1x1x32xf32>
    %542 = vector.shape_cast %541 : vector<1x1x32xf32> to vector<1x32xf32>
    %cst_320 = arith.constant dense<0.000000e+00> : vector<16xf32>
    %543 = vector.multi_reduction <add>, %538, %cst_320 [1] : vector<16x32xf32> to vector<16xf32>
    %544 = vector.shape_cast %543 : vector<16xf32> to vector<16x1xf32>
    %cst_321 = arith.constant 3.200000e+01 : f32
    %545 = vector.broadcast %cst_321 : f32 to vector<16x1xf32>
    %546 = arith.divf %544, %545 : vector<16x1xf32>
    %547 = vector.broadcast %546 : vector<16x1xf32> to vector<16x32xf32>
    %548 = arith.subf %538, %547 : vector<16x32xf32>
    %549 = vector.broadcast %546 : vector<16x1xf32> to vector<16x32xf32>
    %550 = arith.subf %538, %549 : vector<16x32xf32>
    %551 = arith.mulf %548, %550 : vector<16x32xf32>
    %cst_322 = arith.constant dense<0.000000e+00> : vector<16xf32>
    %552 = vector.multi_reduction <add>, %551, %cst_322 [1] : vector<16x32xf32> to vector<16xf32>
    %553 = vector.shape_cast %552 : vector<16xf32> to vector<16x1xf32>
    %cst_323 = arith.constant 3.200000e+01 : f32
    %554 = vector.broadcast %cst_323 : f32 to vector<16x1xf32>
    %555 = arith.divf %553, %554 : vector<16x1xf32>
    %556 = vector.broadcast %546 : vector<16x1xf32> to vector<16x32xf32>
    %557 = arith.subf %538, %556 : vector<16x32xf32>
    %cst_324 = arith.constant 9.99999996E-13 : f32
    %558 = vector.broadcast %cst_324 : f32 to vector<16x1xf32>
    %559 = arith.addf %555, %558 : vector<16x1xf32>
    %560 = math.rsqrt %559 : vector<16x1xf32>
    %561 = vector.broadcast %560 : vector<16x1xf32> to vector<16x32xf32>
    %562 = arith.mulf %557, %561 : vector<16x32xf32>
    %563 = vector.broadcast %540 : vector<1x32xf32> to vector<16x32xf32>
    %564 = arith.mulf %562, %563 : vector<16x32xf32>
    %565 = vector.broadcast %542 : vector<1x32xf32> to vector<16x32xf32>
    %566 = arith.addf %564, %565 : vector<16x32xf32>
    %567 = tpu.iota {dimensions = array<i32: 0>} : vector<2x16xi32>
    %568 = tpu.iota {dimensions = array<i32: 1>} : vector<2x16xi32>
    %c8_i32 = arith.constant 8 : i32
    %569 = vector.broadcast %c8_i32 : i32 to vector<2x16xi32>
    %570 = arith.muli %567, %569 : vector<2x16xi32>
    %571 = arith.cmpi eq, %568, %570 : vector<2x16xi32>
    %572 = arith.extui %571 : vector<2x16xi1> to vector<2x16xi32>
    %573 = arith.sitofp %572 : vector<2x16xi32> to vector<2x16xf32>
    %cst_325 = arith.constant dense<0.000000e+00> : vector<2x32xf32>
    %574 = tpu.matmul %573, %566, %cst_325 {dimension_numbers = #tpu.dot_dimension_numbers<[1], [0], [0], [1], [0, 0, 1, 1], [], []>} : vector<2x16xf32>, vector<16x32xf32>, vector<2x32xf32> -> vector<2x32xf32>
    %c0_326 = arith.constant 0 : index
    %c0_327 = arith.constant 0 : index
    %575 = vector.load %arg17[%c0_326, %c0_327] : memref<32x16xf32, #tpu.memory_space<vmem>>, vector<32x16xf32>
    %cst_328 = arith.constant dense<0.000000e+00> : vector<2x16xf32>
    %576 = tpu.matmul %574, %575, %cst_328 {dimension_numbers = #tpu.dot_dimension_numbers<[1], [0], [0], [1], [0, 0, 1, 1], [], []>} : vector<2x32xf32>, vector<32x16xf32>, vector<2x16xf32> -> vector<2x16xf32>
    %c0_329 = arith.constant 0 : index
    %c0_330 = arith.constant 0 : index
    %577 = vector.load %arg18[%c0_329, %c0_330] : memref<1x16xf32, #tpu.memory_space<vmem>>, vector<1x16xf32>
    %578 = vector.broadcast %577 : vector<1x16xf32> to vector<2x16xf32>
    %579 = arith.addf %576, %578 : vector<2x16xf32>
    %580 = arith.mulf %579, %579 : vector<2x16xf32>
    %581 = arith.mulf %579, %580 : vector<2x16xf32>
    %cst_331 = arith.constant 4.471500e-02 : f32
    %582 = vector.broadcast %cst_331 : f32 to vector<2x16xf32>
    %583 = arith.mulf %582, %581 : vector<2x16xf32>
    %584 = arith.addf %579, %583 : vector<2x16xf32>
    %cst_332 = arith.constant 0.797884583 : f32
    %585 = vector.broadcast %cst_332 : f32 to vector<2x16xf32>
    %586 = arith.mulf %585, %584 : vector<2x16xf32>
    %587 = math.tanh %586 : vector<2x16xf32>
    %cst_333 = arith.constant 1.000000e+00 : f32
    %588 = vector.broadcast %cst_333 : f32 to vector<2x16xf32>
    %589 = arith.addf %588, %587 : vector<2x16xf32>
    %cst_334 = arith.constant 5.000000e-01 : f32
    %590 = vector.broadcast %cst_334 : f32 to vector<2x16xf32>
    %591 = arith.mulf %590, %589 : vector<2x16xf32>
    %592 = arith.mulf %579, %591 : vector<2x16xf32>
    %c0_335 = arith.constant 0 : index
    %c0_336 = arith.constant 0 : index
    %593 = vector.load %arg19[%c0_335, %c0_336] : memref<1x16xf32, #tpu.memory_space<vmem>>, vector<1x16xf32>
    %c0_337 = arith.constant 0 : index
    %c0_338 = arith.constant 0 : index
    %594 = vector.load %arg20[%c0_337, %c0_338] : memref<1x16xf32, #tpu.memory_space<vmem>>, vector<1x16xf32>
    %cst_339 = arith.constant dense<0.000000e+00> : vector<2xf32>
    %595 = vector.multi_reduction <add>, %592, %cst_339 [1] : vector<2x16xf32> to vector<2xf32>
    %596 = vector.shape_cast %595 : vector<2xf32> to vector<2x1xf32>
    %cst_340 = arith.constant 1.600000e+01 : f32
    %597 = vector.broadcast %cst_340 : f32 to vector<2x1xf32>
    %598 = arith.divf %596, %597 : vector<2x1xf32>
    %599 = vector.broadcast %598 : vector<2x1xf32> to vector<2x16xf32>
    %600 = arith.subf %592, %599 : vector<2x16xf32>
    %601 = vector.broadcast %598 : vector<2x1xf32> to vector<2x16xf32>
    %602 = arith.subf %592, %601 : vector<2x16xf32>
    %603 = arith.mulf %600, %602 : vector<2x16xf32>
    %cst_341 = arith.constant dense<0.000000e+00> : vector<2xf32>
    %604 = vector.multi_reduction <add>, %603, %cst_341 [1] : vector<2x16xf32> to vector<2xf32>
    %605 = vector.shape_cast %604 : vector<2xf32> to vector<2x1xf32>
    %cst_342 = arith.constant 1.600000e+01 : f32
    %606 = vector.broadcast %cst_342 : f32 to vector<2x1xf32>
    %607 = arith.divf %605, %606 : vector<2x1xf32>
    %608 = vector.broadcast %598 : vector<2x1xf32> to vector<2x16xf32>
    %609 = arith.subf %592, %608 : vector<2x16xf32>
    %cst_343 = arith.constant 9.99999996E-13 : f32
    %610 = vector.broadcast %cst_343 : f32 to vector<2x1xf32>
    %611 = arith.addf %607, %610 : vector<2x1xf32>
    %612 = math.rsqrt %611 : vector<2x1xf32>
    %613 = vector.broadcast %612 : vector<2x1xf32> to vector<2x16xf32>
    %614 = arith.mulf %609, %613 : vector<2x16xf32>
    %615 = vector.broadcast %593 : vector<1x16xf32> to vector<2x16xf32>
    %616 = arith.mulf %614, %615 : vector<2x16xf32>
    %617 = vector.broadcast %594 : vector<1x16xf32> to vector<2x16xf32>
    %618 = arith.addf %616, %617 : vector<2x16xf32>
    %c0_344 = arith.constant 0 : index
    %c0_345 = arith.constant 0 : index
    %619 = vector.load %arg21[%c0_344, %c0_345] : memref<16x16xf32, #tpu.memory_space<vmem>>, vector<16x16xf32>
    %cst_346 = arith.constant dense<0.000000e+00> : vector<2x16xf32>
    %620 = tpu.matmul %618, %619, %cst_346 {dimension_numbers = #tpu.dot_dimension_numbers<[1], [0], [0], [1], [0, 0, 1, 1], [], []>} : vector<2x16xf32>, vector<16x16xf32>, vector<2x16xf32> -> vector<2x16xf32>
    %c0_347 = arith.constant 0 : index
    %c0_348 = arith.constant 0 : index
    %621 = vector.load %arg22[%c0_347, %c0_348] : memref<1x16xf32, #tpu.memory_space<vmem>>, vector<1x16xf32>
    %622 = vector.broadcast %621 : vector<1x16xf32> to vector<2x16xf32>
    %623 = arith.addf %620, %622 : vector<2x16xf32>
    %c0_349 = arith.constant 0 : index
    %c0_350 = arith.constant 0 : index
    %624 = vector.load %arg23[%c0_349, %c0_350] : memref<16x3xf32, #tpu.memory_space<vmem>>, vector<16x3xf32>
    %cst_351 = arith.constant dense<0.000000e+00> : vector<2x3xf32>
    %625 = tpu.matmul %623, %624, %cst_351 {dimension_numbers = #tpu.dot_dimension_numbers<[1], [0], [0], [1], [0, 0, 1, 1], [], []>} : vector<2x16xf32>, vector<16x3xf32>, vector<2x3xf32> -> vector<2x3xf32>
    %c0_352 = arith.constant 0 : index
    %c0_353 = arith.constant 0 : index
    %626 = vector.load %arg24[%c0_352, %c0_353] : memref<1x3xf32, #tpu.memory_space<vmem>>, vector<1x3xf32>
    %627 = vector.broadcast %626 : vector<1x3xf32> to vector<2x3xf32>
    %628 = arith.addf %625, %627 : vector<2x3xf32>
    %c0_354 = arith.constant 0 : index
    %c0_355 = arith.constant 0 : index
    %629 = vector.load %arg27[%c0_354, %c0_355] : memref<2x3xf32, #tpu.memory_space<vmem>>, vector<2x3xf32>
    tpu.vector_store %arg27[%c0_354, %c0_355], %628 {strides = array<i32>} : memref<2x3xf32, #tpu.memory_space<vmem>>, vector<2x3xf32>,
    %c0_356 = arith.constant 0 : index
    %c0_357 = arith.constant 0 : index
    %630 = vector.load %arg25[%c0_356, %c0_357] : memref<2x3xf32, #tpu.memory_space<vmem>>, vector<2x3xf32>
    %cst_358 = arith.constant dense<0xFF800000> : vector<2xf32>
    %631 = vector.multi_reduction <maximumf>, %628, %cst_358 [1] : vector<2x3xf32> to vector<2xf32>
    %632 = vector.shape_cast %631 : vector<2xf32> to vector<2x1xf32>
    %633 = vector.broadcast %632 : vector<2x1xf32> to vector<2x3xf32>
    %634 = arith.subf %628, %633 : vector<2x3xf32>
    %635 = math.exp %634 : vector<2x3xf32>
    %cst_359 = arith.constant dense<0.000000e+00> : vector<2xf32>
    %636 = vector.multi_reduction <add>, %635, %cst_359 [1] : vector<2x3xf32> to vector<2xf32>
    %637 = vector.shape_cast %636 : vector<2xf32> to vector<2x1xf32>
    %638 = math.log %637 : vector<2x1xf32>
    %639 = arith.addf %632, %638 : vector<2x1xf32>
    %640 = arith.mulf %630, %628 : vector<2x3xf32>
    %cst_360 = arith.constant dense<0.000000e+00> : vector<2xf32>
    %641 = vector.multi_reduction <add>, %640, %cst_360 [1] : vector<2x3xf32> to vector<2xf32>
    %642 = vector.shape_cast %641 : vector<2xf32> to vector<2x1xf32>
    %643 = arith.subf %639, %642 : vector<2x1xf32>
    %644 = vector.shape_cast %643 : vector<2x1xf32> to vector<1x2x1xf32>
    %cst_361 = arith.constant dense<0.000000e+00> : vector<1xf32>
    %645 = vector.multi_reduction <add>, %644, %cst_361 [1, 2] : vector<1x2x1xf32> to vector<1xf32>
    %646 = vector.shape_cast %645 : vector<1xf32> to vector<1x1x1xf32>
    %647 = vector.extract %646[0, 0, 0] : f32 from vector<1x1x1xf32>
    %648 = vector.broadcast %647 : f32 to vector<1x1xf32>
    %cst_362 = arith.constant 2.000000e+00 : f32
    %649 = vector.broadcast %cst_362 : f32 to vector<1x1xf32>
    %650 = arith.divf %648, %649 : vector<1x1xf32>
    %c0_363 = arith.constant 0 : index
    %c0_364 = arith.constant 0 : index
    %651 = vector.load %arg26[%c0_363, %c0_364] : memref<1x1xf32, #tpu.memory_space<vmem>>, vector<1x1xf32>
    tpu.vector_store %arg26[%c0_363, %c0_364], %650 {strides = array<i32>} : memref<1x1xf32, #tpu.memory_space<vmem>>, vector<1x1xf32>,
    return
  }
  func.func @transform_0(%arg0: i32) -> (i32, i32) {
    %c0_i32 = arith.constant 0 : i32
    %c0_i32_0 = arith.constant 0 : i32
    %c0_i32_1 = arith.constant 0 : i32
    return %c0_i32, %c0_i32_0 : i32, i32
  }
  func.func @transform_1(%arg0: i32) -> (i32, i32) {
    %c0_i32 = arith.constant 0 : i32
    %c0_i32_0 = arith.constant 0 : i32
    %c0_i32_1 = arith.constant 0 : i32
    return %c0_i32, %c0_i32_0 : i32, i32
  }
  func.func @transform_2(%arg0: i32) -> (i32, i32) {
    %c0_i32 = arith.constant 0 : i32
    %c0_i32_0 = arith.constant 0 : i32
    %c0_i32_1 = arith.constant 0 : i32
    return %c0_i32, %c0_i32_0 : i32, i32
  }
  func.func @transform_3(%arg0: i32) -> (i32, i32) {
    %c0_i32 = arith.constant 0 : i32
    %c0_i32_0 = arith.constant 0 : i32
    %c0_i32_1 = arith.constant 0 : i32
    return %c0_i32, %c0_i32_0 : i32, i32
  }
  func.func @transform_4(%arg0: i32) -> (i32, i32, i32) {
    %c0_i32 = arith.constant 0 : i32
    %c0_i32_0 = arith.constant 0 : i32
    %c0_i32_1 = arith.constant 0 : i32
    %c0_i32_2 = arith.constant 0 : i32
    return %c0_i32, %c0_i32_0, %c0_i32_1 : i32, i32, i32
  }
  func.func @transform_5(%arg0: i32) -> (i32, i32, i32) {
    %c0_i32 = arith.constant 0 : i32
    %c0_i32_0 = arith.constant 0 : i32
    %c0_i32_1 = arith.constant 0 : i32
    %c0_i32_2 = arith.constant 0 : i32
    return %c0_i32, %c0_i32_0, %c0_i32_1 : i32, i32, i32
  }
  func.func @transform_6(%arg0: i32) -> (i32, i32, i32) {
    %c0_i32 = arith.constant 0 : i32
    %c0_i32_0 = arith.constant 0 : i32
    %c0_i32_1 = arith.constant 0 : i32
    %c0_i32_2 = arith.constant 0 : i32
    return %c0_i32, %c0_i32_0, %c0_i32_1 : i32, i32, i32
  }
  func.func @transform_7(%arg0: i32) -> (i32, i32, i32) {
    %c0_i32 = arith.constant 0 : i32
    %c0_i32_0 = arith.constant 0 : i32
    %c0_i32_1 = arith.constant 0 : i32
    %c0_i32_2 = arith.constant 0 : i32
    return %c0_i32, %c0_i32_0, %c0_i32_1 : i32, i32, i32
  }
  func.func @transform_8(%arg0: i32) -> (i32, i32, i32) {
    %c0_i32 = arith.constant 0 : i32
    %c0_i32_0 = arith.constant 0 : i32
    %c0_i32_1 = arith.constant 0 : i32
    %c0_i32_2 = arith.constant 0 : i32
    return %c0_i32, %c0_i32_0, %c0_i32_1 : i32, i32, i32
  }
  func.func @transform_9(%arg0: i32) -> (i32, i32, i32) {
    %c0_i32 = arith.constant 0 : i32
    %c0_i32_0 = arith.constant 0 : i32
    %c0_i32_1 = arith.constant 0 : i32
    %c0_i32_2 = arith.constant 0 : i32
    return %c0_i32, %c0_i32_0, %c0_i32_1 : i32, i32, i32
  }
  func.func @transform_10(%arg0: i32) -> (i32, i32, i32) {
    %c0_i32 = arith.constant 0 : i32
    %c0_i32_0 = arith.constant 0 : i32
    %c0_i32_1 = arith.constant 0 : i32
    %c0_i32_2 = arith.constant 0 : i32
    return %c0_i32, %c0_i32_0, %c0_i32_1 : i32, i32, i32
  }
  func.func @transform_11(%arg0: i32) -> (i32, i32, i32) {
    %c0_i32 = arith.constant 0 : i32
    %c0_i32_0 = arith.constant 0 : i32
    %c0_i32_1 = arith.constant 0 : i32
    %c0_i32_2 = arith.constant 0 : i32
    return %c0_i32, %c0_i32_0, %c0_i32_1 : i32, i32, i32
  }
  func.func @transform_12(%arg0: i32) -> (i32, i32, i32) {
    %c0_i32 = arith.constant 0 : i32
    %c0_i32_0 = arith.constant 0 : i32
    %c0_i32_1 = arith.constant 0 : i32
    %c0_i32_2 = arith.constant 0 : i32
    return %c0_i32, %c0_i32_0, %c0_i32_1 : i32, i32, i32
  }
  func.func @transform_13(%arg0: i32) -> (i32, i32, i32) {
    %c0_i32 = arith.constant 0 : i32
    %c0_i32_0 = arith.constant 0 : i32
    %c0_i32_1 = arith.constant 0 : i32
    %c0_i32_2 = arith.constant 0 : i32
    return %c0_i32, %c0_i32_0, %c0_i32_1 : i32, i32, i32
  }
  func.func @transform_14(%arg0: i32) -> (i32, i32, i32) {
    %c0_i32 = arith.constant 0 : i32
    %c0_i32_0 = arith.constant 0 : i32
    %c0_i32_1 = arith.constant 0 : i32
    %c0_i32_2 = arith.constant 0 : i32
    return %c0_i32, %c0_i32_0, %c0_i32_1 : i32, i32, i32
  }
  func.func @transform_15(%arg0: i32) -> (i32, i32, i32) {
    %c0_i32 = arith.constant 0 : i32
    %c0_i32_0 = arith.constant 0 : i32
    %c0_i32_1 = arith.constant 0 : i32
    %c0_i32_2 = arith.constant 0 : i32
    return %c0_i32, %c0_i32_0, %c0_i32_1 : i32, i32, i32
  }
  func.func @transform_16(%arg0: i32) -> (i32, i32) {
    %c0_i32 = arith.constant 0 : i32
    %c0_i32_0 = arith.constant 0 : i32
    %c0_i32_1 = arith.constant 0 : i32
    return %c0_i32, %c0_i32_0 : i32, i32
  }
  func.func @transform_17(%arg0: i32) -> (i32, i32) {
    %c0_i32 = arith.constant 0 : i32
    %c0_i32_0 = arith.constant 0 : i32
    %c0_i32_1 = arith.constant 0 : i32
    return %c0_i32, %c0_i32_0 : i32, i32
  }
  func.func @transform_18(%arg0: i32) -> (i32, i32) {
    %c0_i32 = arith.constant 0 : i32
    %c0_i32_0 = arith.constant 0 : i32
    %c0_i32_1 = arith.constant 0 : i32
    return %c0_i32, %c0_i32_0 : i32, i32
  }
  func.func @transform_19(%arg0: i32) -> (i32, i32) {
    %c0_i32 = arith.constant 0 : i32
    %c0_i32_0 = arith.constant 0 : i32
    %c0_i32_1 = arith.constant 0 : i32
    return %c0_i32, %c0_i32_0 : i32, i32
  }
  func.func @transform_20(%arg0: i32) -> (i32, i32) {
    %c0_i32 = arith.constant 0 : i32
    %c0_i32_0 = arith.constant 0 : i32
    %c0_i32_1 = arith.constant 0 : i32
    return %c0_i32, %c0_i32_0 : i32, i32
  }
  func.func @transform_21(%arg0: i32) -> (i32, i32) {
    %c0_i32 = arith.constant 0 : i32
    %c0_i32_0 = arith.constant 0 : i32
    %c0_i32_1 = arith.constant 0 : i32
    return %c0_i32, %c0_i32_0 : i32, i32
  }
  func.func @transform_22(%arg0: i32) -> (i32, i32) {
    %c0_i32 = arith.constant 0 : i32
    %c0_i32_0 = arith.constant 0 : i32
    %c0_i32_1 = arith.constant 0 : i32
    return %c0_i32, %c0_i32_0 : i32, i32
  }
  func.func @transform_23(%arg0: i32) -> (i32, i32) {
    %c0_i32 = arith.constant 0 : i32
    %c0_i32_0 = arith.constant 0 : i32
    %c0_i32_1 = arith.constant 0 : i32
    return %c0_i32, %c0_i32_0 : i32, i32
  }
  func.func @transform_24(%arg0: i32) -> (i32, i32) {
    %c0_i32 = arith.constant 0 : i32
    %c0_i32_0 = arith.constant 0 : i32
    %c0_i32_1 = arith.constant 0 : i32
    return %c0_i32, %c0_i32_0 : i32, i32
  }
  func.func @transform_25(%arg0: i32) -> (i32, i32) {
    %c0_i32 = arith.constant 0 : i32
    %c0_i32_0 = arith.constant 0 : i32
    %c0_i32_1 = arith.constant 0 : i32
    return %c0_i32, %c0_i32_0 : i32, i32
  }
  func.func @transform_26(%arg0: i32) -> (i32, i32) {
    %c0_i32 = arith.constant 0 : i32
    %c0_i32_0 = arith.constant 0 : i32
    %c0_i32_1 = arith.constant 0 : i32
    return %c0_i32, %c0_i32_0 : i32, i32
  }
}

</mosaic_0001>

<llo_original>
// kernel: cxrbert_nli_forward.1
$region0: #{cxrbert_nli_forward.1}
  #allocation0 [shape = 'u32[]', space=smem, size = 0x4, offset = 0x4, fixed_abs, tag = 'smem constant byte address 0x4 - core index']
  #allocation1 [shape = 'u32[144,128]{1,0:T(1,128)}', space=vmem, size = 0x12000, scoped, tag = 'internal scratch']
  #allocation2 [shape = 'f32[16,96]{1,0:T(8,128)}', space=vmem, size = 0x2000, scoped, tag = 'scratch operand']
  #allocation3 [shape = 'f32[16,32]{1,0:T(8,128)}', space=vmem, size = 0x2000, scoped, tag = 'scratch operand']
  %s0 = inlined_call_operand.vmem [shape: f32[16,32], index: 0, kind: input, shape index: {}]
  %s1 = inlined_call_operand.vmem [shape: f32[2,8], index: 1, kind: input, shape index: {}]
  %s2 = inlined_call_operand.vmem [shape: f32[1,32], index: 2, kind: input, shape index: {}]
  %s3 = inlined_call_operand.vmem [shape: f32[1,32], index: 3, kind: input, shape index: {}]
  %s4 = inlined_call_operand.vmem [shape: f32[2,32,96], index: 4, kind: input, shape index: {}]
  %s5 = inlined_call_operand.vmem [shape: f32[2,1,96], index: 5, kind: input, shape index: {}]
  %s6 = inlined_call_operand.vmem [shape: f32[2,32,32], index: 6, kind: input, shape index: {}]
  %s7 = inlined_call_operand.vmem [shape: f32[2,1,32], index: 7, kind: input, shape index: {}]
  %s8 = inlined_call_operand.vmem [shape: f32[2,1,32], index: 8, kind: input, shape index: {}]
  %s9 = inlined_call_operand.vmem [shape: f32[2,1,32], index: 9, kind: input, shape index: {}]
  %s10 = inlined_call_operand.vmem [shape: f32[2,32,64], index: 10, kind: input, shape index: {}]
  %s11 = inlined_call_operand.vmem [shape: f32[2,1,64], index: 11, kind: input, shape index: {}]
  %s12 = inlined_call_operand.vmem [shape: f32[2,64,32], index: 12, kind: input, shape index: {}]
  %s13 = inlined_call_operand.vmem [shape: f32[2,1,32], index: 13, kind: input, shape index: {}]
  %s14 = inlined_call_operand.vmem [shape: f32[2,1,32], index: 14, kind: input, shape index: {}]
  %s15 = inlined_call_operand.vmem [shape: f32[2,1,32], index: 15, kind: input, shape index: {}]
  %s16 = inlined_call_operand.vmem [shape: f32[32,16], index: 16, kind: input, shape index: {}]
  %s17 = inlined_call_operand.vmem [shape: f32[1,16], index: 17, kind: input, shape index: {}]
  %s18 = inlined_call_operand.vmem [shape: f32[1,16], index: 18, kind: input, shape index: {}]
  %s19 = inlined_call_operand.vmem [shape: f32[1,16], index: 19, kind: input, shape index: {}]
  %s20 = inlined_call_operand.vmem [shape: f32[16,16], index: 20, kind: input, shape index: {}]
  %s21 = inlined_call_operand.vmem [shape: f32[1,16], index: 21, kind: input, shape index: {}]
  %s22 = inlined_call_operand.vmem [shape: f32[16,3], index: 22, kind: input, shape index: {}]
  %s23 = inlined_call_operand.vmem [shape: f32[1,3], index: 23, kind: input, shape index: {}]
  %s24 = inlined_call_operand.vmem [shape: f32[2,3], index: 24, kind: input, shape index: {}]
  %s25 = inlined_call_operand.hbm [shape: f32[1,1], index: 25, kind: output, shape index: {0}]
  %s26 = inlined_call_operand.hbm [shape: f32[2,3], index: 26, kind: output, shape index: {1}]
  %27 = xla_tuple %s25, %s26
  %s28 = sld [smem:[#allocation0]]
  $region118: #{cxrbert_nli_forward.1} parent=0
    _
  %s30 = ssub.s32 1, %s28
  %s31 = scalar_select 0, %s30, %s28
  $region1: #{cxrbert_nli_forward.1} parent=0
    #allocation4 [shape = 'u8[512]{0}', space=vmem, size = 0x400, scoped, tag = 'output window, operand 0, single buffered']
    #allocation5 [shape = 's32[1]{0}', space=sflag, size = 0x4, scoped, tag = 'scoped memory for cxrbert_nli_forward.1']
    #allocation6 [shape = 'u8[1024]{0}', space=vmem, size = 0x400, scoped, tag = 'output window, operand 1, single buffered']
    #allocation7 [shape = 's32[1]{0}', space=sflag, size = 0x4, scoped, tag = 'scoped memory for cxrbert_nli_forward.1']
    %32 = vsyncpa [#allocation5], 0
    %33 = vsyncpa [#allocation7], 0
    // Predicated region
    $region2: #{cxrbert_nli_forward.1} parent=1 // pred_check
      _
    $region3: #{cxrbert_nli_forward.1} parent=1 // pred_check_branch
      %35 = sbr.rel (0) target = $region5
    $region4: #{cxrbert_nli_forward.1} parent=1 // pred_region
      _
    $region5: #{cxrbert_nli_forward.1} parent=1 // pred_fallthru
      _
    // Predicated region
    $region6: #{cxrbert_nli_forward.1} parent=1 // pred_check
      _
    $region7: #{cxrbert_nli_forward.1} parent=1 // pred_check_branch
      %37 = sbr.rel (0) target = $region9
    $region8: #{cxrbert_nli_forward.1} parent=1 // pred_region
      _
    $region9: #{cxrbert_nli_forward.1} parent=1 // pred_fallthru
      _
    // Predicated region
    $region10: #{cxrbert_nli_forward.1} parent=1 // pred_check
      _
    $region11: #{cxrbert_nli_forward.1} parent=1 // pred_check_branch
      %39 = sbr.rel (0) target = $region13
    $region12: #{cxrbert_nli_forward.1} parent=1 // pred_region
      _
    $region13: #{cxrbert_nli_forward.1} parent=1 // pred_fallthru
      _
    // Predicated region
    $region14: #{cxrbert_nli_forward.1} parent=1 // pred_check
      _
    $region15: #{cxrbert_nli_forward.1} parent=1 // pred_check_branch
      %41 = sbr.rel (0) target = $region17
    $region16: #{cxrbert_nli_forward.1} parent=1 // pred_region
      _
    $region17: #{cxrbert_nli_forward.1} parent=1 // pred_fallthru
      _
    // Predicated region
    $region18: #{cxrbert_nli_forward.1} parent=1 // pred_check
      _
    $region19: #{cxrbert_nli_forward.1} parent=1 // pred_check_branch
      %43 = sbr.rel (0) target = $region21
    $region20: #{cxrbert_nli_forward.1} parent=1 // pred_region
      _
    $region21: #{cxrbert_nli_forward.1} parent=1 // pred_fallthru
      _
    // Predicated region
    $region22: #{cxrbert_nli_forward.1} parent=1 // pred_check
      _
    $region23: #{cxrbert_nli_forward.1} parent=1 // pred_check_branch
      %45 = sbr.rel (0) target = $region25
    $region24: #{cxrbert_nli_forward.1} parent=1 // pred_region
      _
    $region25: #{cxrbert_nli_forward.1} parent=1 // pred_fallthru
      _
    // Predicated region
    $region26: #{cxrbert_nli_forward.1} parent=1 // pred_check
      _
    $region27: #{cxrbert_nli_forward.1} parent=1 // pred_check_branch
      %47 = sbr.rel (0) target = $region29
    $region28: #{cxrbert_nli_forward.1} parent=1 // pred_region
      _
    $region29: #{cxrbert_nli_forward.1} parent=1 // pred_fallthru
      _
    // Predicated region
    $region30: #{cxrbert_nli_forward.1} parent=1 // pred_check
      _
    $region31: #{cxrbert_nli_forward.1} parent=1 // pred_check_branch
      %49 = sbr.rel (0) target = $region33
    $region32: #{cxrbert_nli_forward.1} parent=1 // pred_region
      _
    $region33: #{cxrbert_nli_forward.1} parent=1 // pred_fallthru
      _
    // Predicated region
    $region34: #{cxrbert_nli_forward.1} parent=1 // pred_check
      _
    $region35: #{cxrbert_nli_forward.1} parent=1 // pred_check_branch
      %51 = sbr.rel (0) target = $region37
    $region36: #{cxrbert_nli_forward.1} parent=1 // pred_region
      _
    $region37: #{cxrbert_nli_forward.1} parent=1 // pred_fallthru
      _
    // Predicated region
    $region38: #{cxrbert_nli_forward.1} parent=1 // pred_check
      _
    $region39: #{cxrbert_nli_forward.1} parent=1 // pred_check_branch
      %53 = sbr.rel (0) target = $region41
    $region40: #{cxrbert_nli_forward.1} parent=1 // pred_region
      _
    $region41: #{cxrbert_nli_forward.1} parent=1 // pred_fallthru
      _
    // Predicated region
    $region42: #{cxrbert_nli_forward.1} parent=1 // pred_check
      _
    $region43: #{cxrbert_nli_forward.1} parent=1 // pred_check_branch
      %55 = sbr.rel (0) target = $region45
    $region44: #{cxrbert_nli_forward.1} parent=1 // pred_region
      _
    $region45: #{cxrbert_nli_forward.1} parent=1 // pred_fallthru
      _
    // Predicated region
    $region46: #{cxrbert_nli_forward.1} parent=1 // pred_check
      _
    $region47: #{cxrbert_nli_forward.1} parent=1 // pred_check_branch
      %57 = sbr.rel (0) target = $region49
    $region48: #{cxrbert_nli_forward.1} parent=1 // pred_region
      _
    $region49: #{cxrbert_nli_forward.1} parent=1 // pred_fallthru
      _
    // Predicated region
    $region50: #{cxrbert_nli_forward.1} parent=1 // pred_check
      _
    $region51: #{cxrbert_nli_forward.1} parent=1 // pred_check_branch
      %59 = sbr.rel (0) target = $region53
    $region52: #{cxrbert_nli_forward.1} parent=1 // pred_region
      _
    $region53: #{cxrbert_nli_forward.1} parent=1 // pred_fallthru
      _
    // Predicated region
    $region54: #{cxrbert_nli_forward.1} parent=1 // pred_check
      _
    $region55: #{cxrbert_nli_forward.1} parent=1 // pred_check_branch
      %61 = sbr.rel (0) target = $region57
    $region56: #{cxrbert_nli_forward.1} parent=1 // pred_region
      _
    $region57: #{cxrbert_nli_forward.1} parent=1 // pred_fallthru
      _
    // Predicated region
    $region58: #{cxrbert_nli_forward.1} parent=1 // pred_check
      _
    $region59: #{cxrbert_nli_forward.1} parent=1 // pred_check_branch
      %63 = sbr.rel (0) target = $region61
    $region60: #{cxrbert_nli_forward.1} parent=1 // pred_region
      _
    $region61: #{cxrbert_nli_forward.1} parent=1 // pred_fallthru
      _
    // Predicated region
    $region62: #{cxrbert_nli_forward.1} parent=1 // pred_check
      _
    $region63: #{cxrbert_nli_forward.1} parent=1 // pred_check_branch
      %65 = sbr.rel (0) target = $region65
    $region64: #{cxrbert_nli_forward.1} parent=1 // pred_region
      _
    $region65: #{cxrbert_nli_forward.1} parent=1 // pred_fallthru
      _
    // Predicated region
    $region66: #{cxrbert_nli_forward.1} parent=1 // pred_check
      _
    $region67: #{cxrbert_nli_forward.1} parent=1 // pred_check_branch
      %67 = sbr.rel (0) target = $region69
    $region68: #{cxrbert_nli_forward.1} parent=1 // pred_region
      _
    $region69: #{cxrbert_nli_forward.1} parent=1 // pred_fallthru
      _
    // Predicated region
    $region70: #{cxrbert_nli_forward.1} parent=1 // pred_check
      _
    $region71: #{cxrbert_nli_forward.1} parent=1 // pred_check_branch
      %69 = sbr.rel (0) target = $region73
    $region72: #{cxrbert_nli_forward.1} parent=1 // pred_region
      _
    $region73: #{cxrbert_nli_forward.1} parent=1 // pred_fallthru
      _
    // Predicated region
    $region74: #{cxrbert_nli_forward.1} parent=1 // pred_check
      _
    $region75: #{cxrbert_nli_forward.1} parent=1 // pred_check_branch
      %71 = sbr.rel (0) target = $region77
    $region76: #{cxrbert_nli_forward.1} parent=1 // pred_region
      _
    $region77: #{cxrbert_nli_forward.1} parent=1 // pred_fallthru
      _
    // Predicated region
    $region78: #{cxrbert_nli_forward.1} parent=1 // pred_check
      _
    $region79: #{cxrbert_nli_forward.1} parent=1 // pred_check_branch
      %73 = sbr.rel (0) target = $region81
    $region80: #{cxrbert_nli_forward.1} parent=1 // pred_region
      _
    $region81: #{cxrbert_nli_forward.1} parent=1 // pred_fallthru
      _
    // Predicated region
    $region82: #{cxrbert_nli_forward.1} parent=1 // pred_check
      _
    $region83: #{cxrbert_nli_forward.1} parent=1 // pred_check_branch
      %75 = sbr.rel (0) target = $region85
    $region84: #{cxrbert_nli_forward.1} parent=1 // pred_region
      _
    $region85: #{cxrbert_nli_forward.1} parent=1 // pred_fallthru
      _
    // Predicated region
    $region86: #{cxrbert_nli_forward.1} parent=1 // pred_check
      _
    $region87: #{cxrbert_nli_forward.1} parent=1 // pred_check_branch
      %77 = sbr.rel (0) target = $region89
    $region88: #{cxrbert_nli_forward.1} parent=1 // pred_region
      _
    $region89: #{cxrbert_nli_forward.1} parent=1 // pred_fallthru
      _
    // Predicated region
    $region90: #{cxrbert_nli_forward.1} parent=1 // pred_check
      _
    $region91: #{cxrbert_nli_forward.1} parent=1 // pred_check_branch
      %79 = sbr.rel (0) target = $region93
    $region92: #{cxrbert_nli_forward.1} parent=1 // pred_region
      _
    $region93: #{cxrbert_nli_forward.1} parent=1 // pred_fallthru
      _
    // Predicated region
    $region94: #{cxrbert_nli_forward.1} parent=1 // pred_check
      _
    $region95: #{cxrbert_nli_forward.1} parent=1 // pred_check_branch
      %81 = sbr.rel (0) target = $region97
    $region96: #{cxrbert_nli_forward.1} parent=1 // pred_region
      _
    $region97: #{cxrbert_nli_forward.1} parent=1 // pred_fallthru
      _
    // Predicated region
    $region98: #{cxrbert_nli_forward.1} parent=1 // pred_check
      _
    $region99: #{cxrbert_nli_forward.1} parent=1 // pred_check_branch
      %83 = sbr.rel (0) target = $region101
    $region100: #{cxrbert_nli_forward.1} parent=1 // pred_region
      _
    $region101: #{cxrbert_nli_forward.1} parent=1 // pred_fallthru
      _
    %v84 = vld [vmem:[%s0] sm:$0xff]
    %v85 = vld [vmem:[%s0 + $0x8] sm:$0xff]
    %v86 = vld [vmem:[%s2] sm:$0x1]
    %v87 = vld [vmem:[%s3] sm:$0x1]
    %vm88 = vcmask 261120
    %v89 = vsel %vm88, %v84, 0.0
    %90 = vadd.xlane.f32.xlu0 %v89
    %v91 = vpop.xlane.xlu0 %90
    %v92 = vsel %vm88, %v85, 0.0
    %93 = vadd.xlane.f32.xlu0 %v92
    %v94 = vpop.xlane.xlu0 %93
    %v95 = vrcp.pop 32.0
    %v96 = vmul.f32 %v91, %v95
    %v97 = vmul.f32 %v94, %v95
    %v98 = vsub.f32 %v84, %v96
    %v99 = vsub.f32 %v85, %v97
    %v100 = vmul.f32 %v98, %v98
    %v101 = vmul.f32 %v99, %v99
    %v102 = vsel %vm88, %v100, 0.0
    %103 = vadd.xlane.f32.xlu0 %v102
    %v104 = vpop.xlane.xlu0 %103
    %v105 = vsel %vm88, %v101, 0.0
    %106 = vadd.xlane.f32.xlu0 %v105
    %v107 = vpop.xlane.xlu0 %106
    %v108 = vmul.f32 %v104, %v95
    %v109 = vmul.f32 %v107, %v95
    %v110 = vadd.f32 %v108, 1e-12
    %v111 = vadd.f32 %v109, 1e-12
    %v112 = vrsqrt.pop %v110
    %v113 = vrsqrt.pop %v111
    %v114 = vmul.f32 %v98, %v112
    %v115 = vmul.f32 %v99, %v113
    %v117 = vlaneseq
    %v118 = vshrl.u32 %v117, 7
    %v119 = vsub.s32 0, %v118
    %v120 = vrot.slane %v86, %v119
    %v122 = vmul.f32 %v114, %v120
    %v123 = vmul.f32 %v115, %v120
    %v125 = vlaneseq
    %v126 = vshrl.u32 %v125, 7
    %v127 = vsub.s32 0, %v126
    %v128 = vrot.slane %v87, %v127
    %v130 = vadd.f32 %v122, %v128
    %v131 = vadd.f32 %v123, %v128
    %v132 = vld [vmem:[%s1] sm:$0x1]
    %v133 = vld [vmem:[%s1 + $0x1] sm:$0x1]
    %v134 = vld [vmem:[%s4] sm:$0xff]
    %v135 = vld [vmem:[%s4 + $0x8] sm:$0xff]
    %v136 = vld [vmem:[%s4 + $0x10] sm:$0xff]
    %v137 = vld [vmem:[%s4 + $0x18] sm:$0xff]
    %v138 = vld [vmem:[%s5] sm:$0x1]
    %v140 = vlaneseq
    %v141 = vshrl.u32 %v140, 7
    %v142 = vsub.s32 0, %v141
    %v143 = vrot.slane %v138, %v142
    %v146 = vsel %vm88, %v130, 0
    %v149 = vsel %vm88, %v131, 0
    %151 = vmatprep.subr.mxu0 0.0
    %152 = vmatpush1.msra.mxu0 %v134
    %153 = vmatprep.subr.mxu0 0.0
    %154 = vmatpush1.msra.mxu0 %v135
    %155 = vmatprep.subr.mxu0 0.0
    %156 = vmatpush1.msra.mxu0 %v136
    %157 = vmatprep.subr.mxu0 0.0
    %158 = vmatpush1.msra.mxu0 %v137
    %159 = vmatprep.subr.mxu0 0.0
    %160 = vmatpush1.msra.mxu0 0.0
    %161 = vmatprep.subr.mxu0 0.0
    %162 = vmatpush1.msra.mxu0 0.0
    %163 = vmatprep.subr.mxu0 0.0
    %164 = vmatpush1.msra.mxu0 0.0
    %165 = vmatprep.subr.mxu0 0.0
    %166 = vmatpush1.msra.mxu0 0.0
    %167 = vmatprep.subr.mxu0 0.0
    %168 = vmatpush1.msra.mxu0 0.0
    %169 = vmatprep.subr.mxu0 0.0
    %170 = vmatpush1.msra.mxu0 0.0
    %171 = vmatprep.subr.mxu0 0.0
    %172 = vmatpush1.msra.mxu0 0.0
    %173 = vmatprep.subr.mxu0 0.0
    %174 = vmatpush1.msra.mxu0 0.0
    %175 = vmatprep.subr.mxu0 0.0
    %176 = vmatpush1.msra.mxu0 0.0
    %177 = vmatprep.subr.mxu0 0.0
    %178 = vmatpush1.msra.mxu0 0.0
    %179 = vmatprep.subr.mxu0 0.0
    %180 = vmatpush1.msra.mxu0 0.0
    %181 = vmatprep.subr.mxu0 0.0
    %182 = vmatpush1.msra.mxu0 0.0
    %183 = vmatprep.subr.mxu0 0.0
    %184 = vmatpush1.msra.mxu0 0.0
    %185 = vmatprep.subr.mxu0 0.0
    %186 = vmatpush1.msra.mxu0 0.0
    %187 = vmatprep.subr.mxu0 0.0
    %188 = vmatpush1.msra.mxu0 0.0
    %189 = vmatprep.subr.mxu0 0.0
    %190 = vmatpush1.msra.mxu0 0.0
    %191 = vmatprep.subr.mxu0 0.0
    %192 = vmatpush1.msra.mxu0 0.0
    %193 = vmatprep.subr.mxu0 0.0
    %194 = vmatpush1.msra.mxu0 0.0
    %195 = vmatprep.subr.mxu0 0.0
    %196 = vmatpush1.msra.mxu0 0.0
    %197 = vmatprep.subr.mxu0 0.0
    %198 = vmatpush1.msra.mxu0 0.0
    %199 = vmatprep.subr.mxu0 0.0
    %200 = vmatpush1.msra.mxu0 0.0
    %201 = vmatprep.subr.mxu0 0.0
    %202 = vmatpush1.msra.mxu0 0.0
    %203 = vmatprep.subr.mxu0 0.0
    %204 = vmatpush1.msra.mxu0 0.0
    %205 = vmatprep.subr.mxu0 0.0
    %206 = vmatpush1.msra.mxu0 0.0
    %207 = vmatprep.subr.mxu0 0.0
    %208 = vmatpush1.msra.mxu0 0.0
    %209 = vmatprep.subr.mxu0 0.0
    %210 = vmatpush1.msra.mxu0 0.0
    %211 = vmatprep.subr.mxu0 0.0
    %212 = vmatpush1.msra.mxu0 0.0
    %213 = vmatprep.subr.mxu0 0.0
    %214 = vmatpush1.msra.mxu0 0.0
    %215 = vmatprep.mubr.f32.mxu0 0.0
    %216 = vmatmul.mubr.f32.gmra.mrb[0].mxu0 %v146
    %v217 = vpop.f32.mrb[0].mxu0
    %v218 = vadd.f32 %v143, %v217
    %v219 = vpop.f32.mrb[0].mxu0
    %220 = vmatprep.mubr.f32.mxu0 0.0
    %221 = vmatmul.mubr.f32.gmra.mrb[0].mxu0 %v149
    %v222 = vpop.f32.mrb[0].mxu0
    %v223 = vadd.f32 %v143, %v222
    %v224 = vpop.f32.mrb[0].mxu0
    %225 = vdwg.mxu0
    %vm226 = vcmask 785408
    %227 = vst.msk [vmem:[#allocation2] sm:$0xff] %vm226, %v218
    %228 = vst.msk [vmem:[#allocation2 + $0x8] sm:$0xff] %vm226, %v223
    %v229 = vld [vmem:[#allocation2] sm:$0xff]
    %231 = vrot.lane.b32.xlu0 %v229, 96
    %v232 = vpop.permute.xlu0 %231
    %vm233 = vcmask 64512
    %v234 = vsel %vm233, %v229, 0
    %v236 = vsel %vm233, %v232, 0
    %238 = vmatprep.subr.mxu0 0.0
    %239 = vmatpush1.xpose.msra.mxu0 %v236
    %240 = vmatprep.subr.mxu0 0.0
    %241 = vmatpush1.xpose.msra.mxu0 0.0
    %242 = vmatprep.subr.mxu0 0.0
    %243 = vmatpush1.xpose.msra.mxu0 0.0
    %244 = vmatprep.subr.mxu0 0.0
    %245 = vmatpush1.xpose.msra.mxu0 0.0
    %246 = vmatprep.subr.mxu0 0.0
    %247 = vmatpush1.xpose.msra.mxu0 0.0
    %248 = vmatprep.subr.mxu0 0.0
    %249 = vmatpush1.xpose.msra.mxu0 0.0
    %250 = vmatprep.subr.mxu0 0.0
    %251 = vmatpush1.xpose.msra.mxu0 0.0
    %252 = vmatprep.subr.mxu0 0.0
    %253 = vmatpush1.xpose.msra.mxu0 0.0
    %254 = vmatprep.subr.mxu0 0.0
    %255 = vmatpush1.xpose.msra.mxu0 0.0
    %256 = vmatprep.subr.mxu0 0.0
    %257 = vmatpush1.xpose.msra.mxu0 0.0
    %258 = vmatprep.subr.mxu0 0.0
    %259 = vmatpush1.xpose.msra.mxu0 0.0
    %260 = vmatprep.subr.mxu0 0.0
    %261 = vmatpush1.xpose.msra.mxu0 0.0
    %262 = vmatprep.subr.mxu0 0.0
    %263 = vmatpush1.xpose.msra.mxu0 0.0
    %264 = vmatprep.subr.mxu0 0.0
    %265 = vmatpush1.xpose.msra.mxu0 0.0
    %266 = vmatprep.subr.mxu0 0.0
    %267 = vmatpush1.xpose.msra.mxu0 0.0
    %268 = vmatprep.subr.mxu0 0.0
    %269 = vmatpush1.xpose.msra.mxu0 0.0
    %270 = vmatprep.subr.mxu0 0.0
    %271 = vmatpush1.xpose.msra.mxu0 0.0
    %272 = vmatprep.subr.mxu0 0.0
    %273 = vmatpush1.xpose.msra.mxu0 0.0
    %274 = vmatprep.subr.mxu0 0.0
    %275 = vmatpush1.xpose.msra.mxu0 0.0
    %276 = vmatprep.subr.mxu0 0.0
    %277 = vmatpush1.xpose.msra.mxu0 0.0
    %278 = vmatprep.subr.mxu0 0.0
    %279 = vmatpush1.xpose.msra.mxu0 0.0
    %280 = vmatprep.subr.mxu0 0.0
    %281 = vmatpush1.xpose.msra.mxu0 0.0
    %282 = vmatprep.subr.mxu0 0.0
    %283 = vmatpush1.xpose.msra.mxu0 0.0
    %284 = vmatprep.subr.mxu0 0.0
    %285 = vmatpush1.xpose.msra.mxu0 0.0
    %286 = vmatprep.subr.mxu0 0.0
    %287 = vmatpush1.xpose.msra.mxu0 0.0
    %288 = vmatprep.subr.mxu0 0.0
    %289 = vmatpush1.xpose.msra.mxu0 0.0
    %290 = vmatprep.subr.mxu0 0.0
    %291 = vmatpush1.xpose.msra.mxu0 0.0
    %292 = vmatprep.subr.mxu0 0.0
    %293 = vmatpush1.xpose.msra.mxu0 0.0
    %294 = vmatprep.subr.mxu0 0.0
    %295 = vmatpush1.xpose.msra.mxu0 0.0
    %296 = vmatprep.subr.mxu0 0.0
    %297 = vmatpush1.xpose.msra.mxu0 0.0
    %298 = vmatprep.subr.mxu0 0.0
    %299 = vmatpush1.xpose.msra.mxu0 0.0
    %300 = vmatprep.subr.mxu0 0.0
    %301 = vmatpush1.xpose.msra.mxu0 0.0
    %302 = vmatprep.mubr.f32.mxu0 0.0
    %303 = vmatmul.mubr.f32.gmra.mrb[0].mxu0 %v234
    %v304 = vpop.f32.mrb[0].mxu0
    %v305 = vadd.f32 0.0, %v304
    %v306 = vpop.f32.mrb[0].mxu0
    %307 = vdwg.mxu0
    %v308 = vmul.f32 %v305, 0.35355338
    %v309 = vlaneseq
    %v310 = vshrl.u32 %v309, 7
    %v311 = vsub.s32 0, %v310
    %v312 = vrot.slane %v132, %v311
    %v313 = vadd.f32 %v308, %v312
    %v314 = vsel %vm233, %v313, -inf
    %315 = vmax.xlane.f32.xlu0 %v314
    %v316 = vpop.xlane.xlu0 %315
    %v317 = vsub.f32 %v313, %v316
    %v318 = vmul.f32 %v317, 1.442695
    %v319 = vpow.pop %v318
    %v320 = vsel %vm233, %v319, 0.0
    %321 = vadd.xlane.f32.xlu0 %v320
    %v322 = vpop.xlane.xlu0 %321
    %v323 = vrcp.pop %v322
    %v324 = vmul.f32 %v319, %v323
    %325 = vrot.lane.b32.xlu0 %v229, 64
    %v326 = vpop.permute.xlu0 %325
    %v329 = vsel %vm233, %v324, 0
    %331 = vmatprep.subr.mxu0 0.0
    %332 = vmatpush1.msra.mxu0 %v326
    %333 = vmatprep.subr.mxu0 0.0
    %334 = vmatpush1.msra.mxu0 0.0
    %335 = vmatprep.subr.mxu0 0.0
    %336 = vmatpush1.msra.mxu0 0.0
    %337 = vmatprep.subr.mxu0 0.0
    %338 = vmatpush1.msra.mxu0 0.0
    %339 = vmatprep.subr.mxu0 0.0
    %340 = vmatpush1.msra.mxu0 0.0
    %341 = vmatprep.subr.mxu0 0.0
    %342 = vmatpush1.msra.mxu0 0.0
    %343 = vmatprep.subr.mxu0 0.0
    %344 = vmatpush1.msra.mxu0 0.0
    %345 = vmatprep.subr.mxu0 0.0
    %346 = vmatpush1.msra.mxu0 0.0
    %347 = vmatprep.subr.mxu0 0.0
    %348 = vmatpush1.msra.mxu0 0.0
    %349 = vmatprep.subr.mxu0 0.0
    %350 = vmatpush1.msra.mxu0 0.0
    %351 = vmatprep.subr.mxu0 0.0
    %352 = vmatpush1.msra.mxu0 0.0
    %353 = vmatprep.subr.mxu0 0.0
    %354 = vmatpush1.msra.mxu0 0.0
    %355 = vmatprep.subr.mxu0 0.0
    %356 = vmatpush1.msra.mxu0 0.0
    %357 = vmatprep.subr.mxu0 0.0
    %358 = vmatpush1.msra.mxu0 0.0
    %359 = vmatprep.subr.mxu0 0.0
    %360 = vmatpush1.msra.mxu0 0.0
    %361 = vmatprep.subr.mxu0 0.0
    %362 = vmatpush1.msra.mxu0 0.0
    %363 = vmatprep.subr.mxu0 0.0
    %364 = vmatpush1.msra.mxu0 0.0
    %365 = vmatprep.subr.mxu0 0.0
    %366 = vmatpush1.msra.mxu0 0.0
    %367 = vmatprep.subr.mxu0 0.0
    %368 = vmatpush1.msra.mxu0 0.0
    %369 = vmatprep.subr.mxu0 0.0
    %370 = vmatpush1.msra.mxu0 0.0
    %371 = vmatprep.subr.mxu0 0.0
    %372 = vmatpush1.msra.mxu0 0.0
    %373 = vmatprep.subr.mxu0 0.0
    %374 = vmatpush1.msra.mxu0 0.0
    %375 = vmatprep.subr.mxu0 0.0
    %376 = vmatpush1.msra.mxu0 0.0
    %377 = vmatprep.subr.mxu0 0.0
    %378 = vmatpush1.msra.mxu0 0.0
    %379 = vmatprep.subr.mxu0 0.0
    %380 = vmatpush1.msra.mxu0 0.0
    %381 = vmatprep.subr.mxu0 0.0
    %382 = vmatpush1.msra.mxu0 0.0
    %383 = vmatprep.subr.mxu0 0.0
    %384 = vmatpush1.msra.mxu0 0.0
    %385 = vmatprep.subr.mxu0 0.0
    %386 = vmatpush1.msra.mxu0 0.0
    %387 = vmatprep.subr.mxu0 0.0
    %388 = vmatpush1.msra.mxu0 0.0
    %389 = vmatprep.subr.mxu0 0.0
    %390 = vmatpush1.msra.mxu0 0.0
    %391 = vmatprep.subr.mxu0 0.0
    %392 = vmatpush1.msra.mxu0 0.0
    %393 = vmatprep.subr.mxu0 0.0
    %394 = vmatpush1.msra.mxu0 0.0
    %395 = vmatprep.mubr.f32.mxu0 0.0
    %396 = vmatmul.mubr.f32.gmra.mrb[0].mxu0 %v329
    %v397 = vpop.f32.mrb[0].mxu0
    %v398 = vadd.f32 0.0, %v397
    %v399 = vpop.f32.mrb[0].mxu0
    %400 = vdwg.mxu0
    %401 = vst.msk [vmem:[#allocation3] sm:$0xff] %vm233, %v398
    %v402 = vld [vmem:[#allocation2] sm:$0xff]
    %404 = vrot.lane.b32.xlu0 %v402, 120
    %v405 = vpop.permute.xlu0 %404
    %406 = vrot.lane.b32.xlu0 %v402, 88
    %v407 = vpop.permute.xlu0 %406
    %v408 = vsel %vm233, %v405, 0
    %v410 = vsel %vm233, %v407, 0
    %412 = vmatprep.subr.mxu0 0.0
    %413 = vmatpush1.xpose.msra.mxu0 %v410
    %414 = vmatprep.subr.mxu0 0.0
    %415 = vmatpush1.xpose.msra.mxu0 0.0
    %416 = vmatprep.subr.mxu0 0.0
    %417 = vmatpush1.xpose.msra.mxu0 0.0
    %418 = vmatprep.subr.mxu0 0.0
    %419 = vmatpush1.xpose.msra.mxu0 0.0
    %420 = vmatprep.subr.mxu0 0.0
    %421 = vmatpush1.xpose.msra.mxu0 0.0
    %422 = vmatprep.subr.mxu0 0.0
    %423 = vmatpush1.xpose.msra.mxu0 0.0
    %424 = vmatprep.subr.mxu0 0.0
    %425 = vmatpush1.xpose.msra.mxu0 0.0
    %426 = vmatprep.subr.mxu0 0.0
    %427 = vmatpush1.xpose.msra.mxu0 0.0
    %428 = vmatprep.subr.mxu0 0.0
    %429 = vmatpush1.xpose.msra.mxu0 0.0
    %430 = vmatprep.subr.mxu0 0.0
    %431 = vmatpush1.xpose.msra.mxu0 0.0
    %432 = vmatprep.subr.mxu0 0.0
    %433 = vmatpush1.xpose.msra.mxu0 0.0
    %434 = vmatprep.subr.mxu0 0.0
    %435 = vmatpush1.xpose.msra.mxu0 0.0
    %436 = vmatprep.subr.mxu0 0.0
    %437 = vmatpush1.xpose.msra.mxu0 0.0
    %438 = vmatprep.subr.mxu0 0.0
    %439 = vmatpush1.xpose.msra.mxu0 0.0
    %440 = vmatprep.subr.mxu0 0.0
    %441 = vmatpush1.xpose.msra.mxu0 0.0
    %442 = vmatprep.subr.mxu0 0.0
    %443 = vmatpush1.xpose.msra.mxu0 0.0
    %444 = vmatprep.subr.mxu0 0.0
    %445 = vmatpush1.xpose.msra.mxu0 0.0
    %446 = vmatprep.subr.mxu0 0.0
    %447 = vmatpush1.xpose.msra.mxu0 0.0
    %448 = vmatprep.subr.mxu0 0.0
    %449 = vmatpush1.xpose.msra.mxu0 0.0
    %450 = vmatprep.subr.mxu0 0.0
    %451 = vmatpush1.xpose.msra.mxu0 0.0
    %452 = vmatprep.subr.mxu0 0.0
    %453 = vmatpush1.xpose.msra.mxu0 0.0
    %454 = vmatprep.subr.mxu0 0.0
    %455 = vmatpush1.xpose.msra.mxu0 0.0
    %456 = vmatprep.subr.mxu0 0.0
    %457 = vmatpush1.xpose.msra.mxu0 0.0
    %458 = vmatprep.subr.mxu0 0.0
    %459 = vmatpush1.xpose.msra.mxu0 0.0
    %460 = vmatprep.subr.mxu0 0.0
    %461 = vmatpush1.xpose.msra.mxu0 0.0
    %462 = vmatprep.subr.mxu0 0.0
    %463 = vmatpush1.xpose.msra.mxu0 0.0
    %464 = vmatprep.subr.mxu0 0.0
    %465 = vmatpush1.xpose.msra.mxu0 0.0
    %466 = vmatprep.subr.mxu0 0.0
    %467 = vmatpush1.xpose.msra.mxu0 0.0
    %468 = vmatprep.subr.mxu0 0.0
    %469 = vmatpush1.xpose.msra.mxu0 0.0
    %470 = vmatprep.subr.mxu0 0.0
    %471 = vmatpush1.xpose.msra.mxu0 0.0
    %472 = vmatprep.subr.mxu0 0.0
    %473 = vmatpush1.xpose.msra.mxu0 0.0
    %474 = vmatprep.subr.mxu0 0.0
    %475 = vmatpush1.xpose.msra.mxu0 0.0
    %476 = vmatprep.mubr.f32.mxu0 0.0
    %477 = vmatmul.mubr.f32.gmra.mrb[0].mxu0 %v408
    %v478 = vpop.f32.mrb[0].mxu0
    %v479 = vadd.f32 0.0, %v478
    %v480 = vpop.f32.mrb[0].mxu0
    %481 = vdwg.mxu0
    %v482 = vmul.f32 %v479, 0.35355338
    %v483 = vadd.f32 %v482, %v312
    %v484 = vsel %vm233, %v483, -inf
    %485 = vmax.xlane.f32.xlu0 %v484
    %v486 = vpop.xlane.xlu0 %485
    %v487 = vsub.f32 %v483, %v486
    %v488 = vmul.f32 %v487, 1.442695
    %v489 = vpow.pop %v488
    %v490 = vsel %vm233, %v489, 0.0
    %491 = vadd.xlane.f32.xlu0 %v490
    %v492 = vpop.xlane.xlu0 %491
    %v493 = vrcp.pop %v492
    %v494 = vmul.f32 %v489, %v493
    %495 = vrot.lane.b32.xlu0 %v402, 56
    %v496 = vpop.permute.xlu0 %495
    %v499 = vsel %vm233, %v494, 0
    %501 = vmatprep.subr.mxu0 0.0
    %502 = vmatpush1.msra.mxu0 %v496
    %503 = vmatprep.subr.mxu0 0.0
    %504 = vmatpush1.msra.mxu0 0.0
    %505 = vmatprep.subr.mxu0 0.0
    %506 = vmatpush1.msra.mxu0 0.0
    %507 = vmatprep.subr.mxu0 0.0
    %508 = vmatpush1.msra.mxu0 0.0
    %509 = vmatprep.subr.mxu0 0.0
    %510 = vmatpush1.msra.mxu0 0.0
    %511 = vmatprep.subr.mxu0 0.0
    %512 = vmatpush1.msra.mxu0 0.0
    %513 = vmatprep.subr.mxu0 0.0
    %514 = vmatpush1.msra.mxu0 0.0
    %515 = vmatprep.subr.mxu0 0.0
    %516 = vmatpush1.msra.mxu0 0.0
    %517 = vmatprep.subr.mxu0 0.0
    %518 = vmatpush1.msra.mxu0 0.0
    %519 = vmatprep.subr.mxu0 0.0
    %520 = vmatpush1.msra.mxu0 0.0
    %521 = vmatprep.subr.mxu0 0.0
    %522 = vmatpush1.msra.mxu0 0.0
    %523 = vmatprep.subr.mxu0 0.0
    %524 = vmatpush1.msra.mxu0 0.0
    %525 = vmatprep.subr.mxu0 0.0
    %526 = vmatpush1.msra.mxu0 0.0
    %527 = vmatprep.subr.mxu0 0.0
    %528 = vmatpush1.msra.mxu0 0.0
    %529 = vmatprep.subr.mxu0 0.0
    %530 = vmatpush1.msra.mxu0 0.0
    %531 = vmatprep.subr.mxu0 0.0
    %532 = vmatpush1.msra.mxu0 0.0
    %533 = vmatprep.subr.mxu0 0.0
    %534 = vmatpush1.msra.mxu0 0.0
    %535 = vmatprep.subr.mxu0 0.0
    %536 = vmatpush1.msra.mxu0 0.0
    %537 = vmatprep.subr.mxu0 0.0
    %538 = vmatpush1.msra.mxu0 0.0
    %539 = vmatprep.subr.mxu0 0.0
    %540 = vmatpush1.msra.mxu0 0.0
    %541 = vmatprep.subr.mxu0 0.0
    %542 = vmatpush1.msra.mxu0 0.0
    %543 = vmatprep.subr.mxu0 0.0
    %544 = vmatpush1.msra.mxu0 0.0
    %545 = vmatprep.subr.mxu0 0.0
    %546 = vmatpush1.msra.mxu0 0.0
    %547 = vmatprep.subr.mxu0 0.0
    %548 = vmatpush1.msra.mxu0 0.0
    %549 = vmatprep.subr.mxu0 0.0
    %550 = vmatpush1.msra.mxu0 0.0
    %551 = vmatprep.subr.mxu0 0.0
    %552 = vmatpush1.msra.mxu0 0.0
    %553 = vmatprep.subr.mxu0 0.0
    %554 = vmatpush1.msra.mxu0 0.0
    %555 = vmatprep.subr.mxu0 0.0
    %556 = vmatpush1.msra.mxu0 0.0
    %557 = vmatprep.subr.mxu0 0.0
    %558 = vmatpush1.msra.mxu0 0.0
    %559 = vmatprep.subr.mxu0 0.0
    %560 = vmatpush1.msra.mxu0 0.0
    %561 = vmatprep.subr.mxu0 0.0
    %562 = vmatpush1.msra.mxu0 0.0
    %563 = vmatprep.subr.mxu0 0.0
    %564 = vmatpush1.msra.mxu0 0.0
    %565 = vmatprep.mubr.f32.mxu0 0.0
    %566 = vmatmul.mubr.f32.gmra.mrb[0].mxu0 %v499
    %v567 = vpop.f32.mrb[0].mxu0
    %v568 = vadd.f32 0.0, %v567
    %v569 = vpop.f32.mrb[0].mxu0
    %570 = vdwg.mxu0
    %572 = vrot.lane.b32.xlu0 %v568, 8
    %v573 = vpop.permute.xlu0 %572
    %vm575 = vcmask 130112
    %576 = vst.msk [vmem:[#allocation3] sm:$0xff] %vm575, %v573
    %v577 = vld [vmem:[#allocation2] sm:$0xff]
    %579 = vrot.lane.b32.xlu0 %v577, 112
    %v580 = vpop.permute.xlu0 %579
    %581 = vrot.lane.b32.xlu0 %v577, 80
    %v582 = vpop.permute.xlu0 %581
    %v583 = vsel %vm233, %v580, 0
    %v585 = vsel %vm233, %v582, 0
    %587 = vmatprep.subr.mxu0 0.0
    %588 = vmatpush1.xpose.msra.mxu0 %v585
    %589 = vmatprep.subr.mxu0 0.0
    %590 = vmatpush1.xpose.msra.mxu0 0.0
    %591 = vmatprep.subr.mxu0 0.0
    %592 = vmatpush1.xpose.msra.mxu0 0.0
    %593 = vmatprep.subr.mxu0 0.0
    %594 = vmatpush1.xpose.msra.mxu0 0.0
    %595 = vmatprep.subr.mxu0 0.0
    %596 = vmatpush1.xpose.msra.mxu0 0.0
    %597 = vmatprep.subr.mxu0 0.0
    %598 = vmatpush1.xpose.msra.mxu0 0.0
    %599 = vmatprep.subr.mxu0 0.0
    %600 = vmatpush1.xpose.msra.mxu0 0.0
    %601 = vmatprep.subr.mxu0 0.0
    %602 = vmatpush1.xpose.msra.mxu0 0.0
    %603 = vmatprep.subr.mxu0 0.0
    %604 = vmatpush1.xpose.msra.mxu0 0.0
    %605 = vmatprep.subr.mxu0 0.0
    %606 = vmatpush1.xpose.msra.mxu0 0.0
    %607 = vmatprep.subr.mxu0 0.0
    %608 = vmatpush1.xpose.msra.mxu0 0.0
    %609 = vmatprep.subr.mxu0 0.0
    %610 = vmatpush1.xpose.msra.mxu0 0.0
    %611 = vmatprep.subr.mxu0 0.0
    %612 = vmatpush1.xpose.msra.mxu0 0.0
    %613 = vmatprep.subr.mxu0 0.0
    %614 = vmatpush1.xpose.msra.mxu0 0.0
    %615 = vmatprep.subr.mxu0 0.0
    %616 = vmatpush1.xpose.msra.mxu0 0.0
    %617 = vmatprep.subr.mxu0 0.0
    %618 = vmatpush1.xpose.msra.mxu0 0.0
    %619 = vmatprep.subr.mxu0 0.0
    %620 = vmatpush1.xpose.msra.mxu0 0.0
    %621 = vmatprep.subr.mxu0 0.0
    %622 = vmatpush1.xpose.msra.mxu0 0.0
    %623 = vmatprep.subr.mxu0 0.0
    %624 = vmatpush1.xpose.msra.mxu0 0.0
    %625 = vmatprep.subr.mxu0 0.0
    %626 = vmatpush1.xpose.msra.mxu0 0.0
    %627 = vmatprep.subr.mxu0 0.0
    %628 = vmatpush1.xpose.msra.mxu0 0.0
    %629 = vmatprep.subr.mxu0 0.0
    %630 = vmatpush1.xpose.msra.mxu0 0.0
    %631 = vmatprep.subr.mxu0 0.0
    %632 = vmatpush1.xpose.msra.mxu0 0.0
    %633 = vmatprep.subr.mxu0 0.0
    %634 = vmatpush1.xpose.msra.mxu0 0.0
    %635 = vmatprep.subr.mxu0 0.0
    %636 = vmatpush1.xpose.msra.mxu0 0.0
    %637 = vmatprep.subr.mxu0 0.0
    %638 = vmatpush1.xpose.msra.mxu0 0.0
    %639 = vmatprep.subr.mxu0 0.0
    %640 = vmatpush1.xpose.msra.mxu0 0.0
    %641 = vmatprep.subr.mxu0 0.0
    %642 = vmatpush1.xpose.msra.mxu0 0.0
    %643 = vmatprep.subr.mxu0 0.0
    %644 = vmatpush1.xpose.msra.mxu0 0.0
    %645 = vmatprep.subr.mxu0 0.0
    %646 = vmatpush1.xpose.msra.mxu0 0.0
    %647 = vmatprep.subr.mxu0 0.0
    %648 = vmatpush1.xpose.msra.mxu0 0.0
    %649 = vmatprep.subr.mxu0 0.0
    %650 = vmatpush1.xpose.msra.mxu0 0.0
    %651 = vmatprep.mubr.f32.mxu0 0.0
    %652 = vmatmul.mubr.f32.gmra.mrb[0].mxu0 %v583
    %v653 = vpop.f32.mrb[0].mxu0
    %v654 = vadd.f32 0.0, %v653
    %v655 = vpop.f32.mrb[0].mxu0
    %656 = vdwg.mxu0
    %v657 = vmul.f32 %v654, 0.35355338
    %v658 = vadd.f32 %v657, %v312
    %v659 = vsel %vm233, %v658, -inf
    %660 = vmax.xlane.f32.xlu0 %v659
    %v661 = vpop.xlane.xlu0 %660
    %v662 = vsub.f32 %v658, %v661
    %v663 = vmul.f32 %v662, 1.442695
    %v664 = vpow.pop %v663
    %v665 = vsel %vm233, %v664, 0.0
    %666 = vadd.xlane.f32.xlu0 %v665
    %v667 = vpop.xlane.xlu0 %666
    %v668 = vrcp.pop %v667
    %v669 = vmul.f32 %v664, %v668
    %670 = vrot.lane.b32.xlu0 %v577, 48
    %v671 = vpop.permute.xlu0 %670
    %v674 = vsel %vm233, %v669, 0
    %676 = vmatprep.subr.mxu0 0.0
    %677 = vmatpush1.msra.mxu0 %v671
    %678 = vmatprep.subr.mxu0 0.0
    %679 = vmatpush1.msra.mxu0 0.0
    %680 = vmatprep.subr.mxu0 0.0
    %681 = vmatpush1.msra.mxu0 0.0
    %682 = vmatprep.subr.mxu0 0.0
    %683 = vmatpush1.msra.mxu0 0.0
    %684 = vmatprep.subr.mxu0 0.0
    %685 = vmatpush1.msra.mxu0 0.0
    %686 = vmatprep.subr.mxu0 0.0
    %687 = vmatpush1.msra.mxu0 0.0
    %688 = vmatprep.subr.mxu0 0.0
    %689 = vmatpush1.msra.mxu0 0.0
    %690 = vmatprep.subr.mxu0 0.0
    %691 = vmatpush1.msra.mxu0 0.0
    %692 = vmatprep.subr.mxu0 0.0
    %693 = vmatpush1.msra.mxu0 0.0
    %694 = vmatprep.subr.mxu0 0.0
    %695 = vmatpush1.msra.mxu0 0.0
    %696 = vmatprep.subr.mxu0 0.0
    %697 = vmatpush1.msra.mxu0 0.0
    %698 = vmatprep.subr.mxu0 0.0
    %699 = vmatpush1.msra.mxu0 0.0
    %700 = vmatprep.subr.mxu0 0.0
    %701 = vmatpush1.msra.mxu0 0.0
    %702 = vmatprep.subr.mxu0 0.0
    %703 = vmatpush1.msra.mxu0 0.0
    %704 = vmatprep.subr.mxu0 0.0
    %705 = vmatpush1.msra.mxu0 0.0
    %706 = vmatprep.subr.mxu0 0.0
    %707 = vmatpush1.msra.mxu0 0.0
    %708 = vmatprep.subr.mxu0 0.0
    %709 = vmatpush1.msra.mxu0 0.0
    %710 = vmatprep.subr.mxu0 0.0
    %711 = vmatpush1.msra.mxu0 0.0
    %712 = vmatprep.subr.mxu0 0.0
    %713 = vmatpush1.msra.mxu0 0.0
    %714 = vmatprep.subr.mxu0 0.0
    %715 = vmatpush1.msra.mxu0 0.0
    %716 = vmatprep.subr.mxu0 0.0
    %717 = vmatpush1.msra.mxu0 0.0
    %718 = vmatprep.subr.mxu0 0.0
    %719 = vmatpush1.msra.mxu0 0.0
    %720 = vmatprep.subr.mxu0 0.0
    %721 = vmatpush1.msra.mxu0 0.0
    %722 = vmatprep.subr.mxu0 0.0
    %723 = vmatpush1.msra.mxu0 0.0
    %724 = vmatprep.subr.mxu0 0.0
    %725 = vmatpush1.msra.mxu0 0.0
    %726 = vmatprep.subr.mxu0 0.0
    %727 = vmatpush1.msra.mxu0 0.0
    %728 = vmatprep.subr.mxu0 0.0
    %729 = vmatpush1.msra.mxu0 0.0
    %730 = vmatprep.subr.mxu0 0.0
    %731 = vmatpush1.msra.mxu0 0.0
    %732 = vmatprep.subr.mxu0 0.0
    %733 = vmatpush1.msra.mxu0 0.0
    %734 = vmatprep.subr.mxu0 0.0
    %735 = vmatpush1.msra.mxu0 0.0
    %736 = vmatprep.subr.mxu0 0.0
    %737 = vmatpush1.msra.mxu0 0.0
    %738 = vmatprep.subr.mxu0 0.0
    %739 = vmatpush1.msra.mxu0 0.0
    %740 = vmatprep.mubr.f32.mxu0 0.0
    %741 = vmatmul.mubr.f32.gmra.mrb[0].mxu0 %v674
    %v742 = vpop.f32.mrb[0].mxu0
    %v743 = vadd.f32 0.0, %v742
    %v744 = vpop.f32.mrb[0].mxu0
    %745 = vdwg.mxu0
    %747 = vrot.lane.b32.xlu0 %v743, 16
    %v748 = vpop.permute.xlu0 %747
    %vm750 = vcmask 195712
    %751 = vst.msk [vmem:[#allocation3] sm:$0xff] %vm750, %v748
    %v752 = vld [vmem:[#allocation2] sm:$0xff]
    %754 = vrot.lane.b32.xlu0 %v752, 104
    %v755 = vpop.permute.xlu0 %754
    %756 = vrot.lane.b32.xlu0 %v752, 72
    %v757 = vpop.permute.xlu0 %756
    %v758 = vsel %vm233, %v755, 0
    %v760 = vsel %vm233, %v757, 0
    %762 = vmatprep.subr.mxu0 0.0
    %763 = vmatpush1.xpose.msra.mxu0 %v760
    %764 = vmatprep.subr.mxu0 0.0
    %765 = vmatpush1.xpose.msra.mxu0 0.0
    %766 = vmatprep.subr.mxu0 0.0
    %767 = vmatpush1.xpose.msra.mxu0 0.0
    %768 = vmatprep.subr.mxu0 0.0
    %769 = vmatpush1.xpose.msra.mxu0 0.0
    %770 = vmatprep.subr.mxu0 0.0
    %771 = vmatpush1.xpose.msra.mxu0 0.0
    %772 = vmatprep.subr.mxu0 0.0
    %773 = vmatpush1.xpose.msra.mxu0 0.0
    %774 = vmatprep.subr.mxu0 0.0
    %775 = vmatpush1.xpose.msra.mxu0 0.0
    %776 = vmatprep.subr.mxu0 0.0
    %777 = vmatpush1.xpose.msra.mxu0 0.0
    %778 = vmatprep.subr.mxu0 0.0
    %779 = vmatpush1.xpose.msra.mxu0 0.0
    %780 = vmatprep.subr.mxu0 0.0
    %781 = vmatpush1.xpose.msra.mxu0 0.0
    %782 = vmatprep.subr.mxu0 0.0
    %783 = vmatpush1.xpose.msra.mxu0 0.0
    %784 = vmatprep.subr.mxu0 0.0
    %785 = vmatpush1.xpose.msra.mxu0 0.0
    %786 = vmatprep.subr.mxu0 0.0
    %787 = vmatpush1.xpose.msra.mxu0 0.0
    %788 = vmatprep.subr.mxu0 0.0
    %789 = vmatpush1.xpose.msra.mxu0 0.0
    %790 = vmatprep.subr.mxu0 0.0
    %791 = vmatpush1.xpose.msra.mxu0 0.0
    %792 = vmatprep.subr.mxu0 0.0
    %793 = vmatpush1.xpose.msra.mxu0 0.0
    %794 = vmatprep.subr.mxu0 0.0
    %795 = vmatpush1.xpose.msra.mxu0 0.0
    %796 = vmatprep.subr.mxu0 0.0
    %797 = vmatpush1.xpose.msra.mxu0 0.0
    %798 = vmatprep.subr.mxu0 0.0
    %799 = vmatpush1.xpose.msra.mxu0 0.0
    %800 = vmatprep.subr.mxu0 0.0
    %801 = vmatpush1.xpose.msra.mxu0 0.0
    %802 = vmatprep.subr.mxu0 0.0
    %803 = vmatpush1.xpose.msra.mxu0 0.0
    %804 = vmatprep.subr.mxu0 0.0
    %805 = vmatpush1.xpose.msra.mxu0 0.0
    %806 = vmatprep.subr.mxu0 0.0
    %807 = vmatpush1.xpose.msra.mxu0 0.0
    %808 = vmatprep.subr.mxu0 0.0
    %809 = vmatpush1.xpose.msra.mxu0 0.0
    %810 = vmatprep.subr.mxu0 0.0
    %811 = vmatpush1.xpose.msra.mxu0 0.0
    %812 = vmatprep.subr.mxu0 0.0
    %813 = vmatpush1.xpose.msra.mxu0 0.0
    %814 = vmatprep.subr.mxu0 0.0
    %815 = vmatpush1.xpose.msra.mxu0 0.0
    %816 = vmatprep.subr.mxu0 0.0
    %817 = vmatpush1.xpose.msra.mxu0 0.0
    %818 = vmatprep.subr.mxu0 0.0
    %819 = vmatpush1.xpose.msra.mxu0 0.0
    %820 = vmatprep.subr.mxu0 0.0
    %821 = vmatpush1.xpose.msra.mxu0 0.0
    %822 = vmatprep.subr.mxu0 0.0
    %823 = vmatpush1.xpose.msra.mxu0 0.0
    %824 = vmatprep.subr.mxu0 0.0
    %825 = vmatpush1.xpose.msra.mxu0 0.0
    %826 = vmatprep.mubr.f32.mxu0 0.0
    %827 = vmatmul.mubr.f32.gmra.mrb[0].mxu0 %v758
    %v828 = vpop.f32.mrb[0].mxu0
    %v829 = vadd.f32 0.0, %v828
    %v830 = vpop.f32.mrb[0].mxu0
    %831 = vdwg.mxu0
    %v832 = vmul.f32 %v829, 0.35355338
    %v833 = vadd.f32 %v832, %v312
    %v834 = vsel %vm233, %v833, -inf
    %835 = vmax.xlane.f32.xlu0 %v834
    %v836 = vpop.xlane.xlu0 %835
    %v837 = vsub.f32 %v833, %v836
    %v838 = vmul.f32 %v837, 1.442695
    %v839 = vpow.pop %v838
    %v840 = vsel %vm233, %v839, 0.0
    %841 = vadd.xlane.f32.xlu0 %v840
    %v842 = vpop.xlane.xlu0 %841
    %v843 = vrcp.pop %v842
    %v844 = vmul.f32 %v839, %v843
    %845 = vrot.lane.b32.xlu0 %v752, 40
    %v846 = vpop.permute.xlu0 %845
    %v849 = vsel %vm233, %v844, 0
    %851 = vmatprep.subr.mxu0 0.0
    %852 = vmatpush1.msra.mxu0 %v846
    %853 = vmatprep.subr.mxu0 0.0
    %854 = vmatpush1.msra.mxu0 0.0
    %855 = vmatprep.subr.mxu0 0.0
    %856 = vmatpush1.msra.mxu0 0.0
    %857 = vmatprep.subr.mxu0 0.0
    %858 = vmatpush1.msra.mxu0 0.0
    %859 = vmatprep.subr.mxu0 0.0
    %860 = vmatpush1.msra.mxu0 0.0
    %861 = vmatprep.subr.mxu0 0.0
    %862 = vmatpush1.msra.mxu0 0.0
    %863 = vmatprep.subr.mxu0 0.0
    %864 = vmatpush1.msra.mxu0 0.0
    %865 = vmatprep.subr.mxu0 0.0
    %866 = vmatpush1.msra.mxu0 0.0
    %867 = vmatprep.subr.mxu0 0.0
    %868 = vmatpush1.msra.mxu0 0.0
    %869 = vmatprep.subr.mxu0 0.0
    %870 = vmatpush1.msra.mxu0 0.0
    %871 = vmatprep.subr.mxu0 0.0
    %872 = vmatpush1.msra.mxu0 0.0
    %873 = vmatprep.subr.mxu0 0.0
    %874 = vmatpush1.msra.mxu0 0.0
    %875 = vmatprep.subr.mxu0 0.0
    %876 = vmatpush1.msra.mxu0 0.0
    %877 = vmatprep.subr.mxu0 0.0
    %878 = vmatpush1.msra.mxu0 0.0
    %879 = vmatprep.subr.mxu0 0.0
    %880 = vmatpush1.msra.mxu0 0.0
    %881 = vmatprep.subr.mxu0 0.0
    %882 = vmatpush1.msra.mxu0 0.0
    %883 = vmatprep.subr.mxu0 0.0
    %884 = vmatpush1.msra.mxu0 0.0
    %885 = vmatprep.subr.mxu0 0.0
    %886 = vmatpush1.msra.mxu0 0.0
    %887 = vmatprep.subr.mxu0 0.0
    %888 = vmatpush1.msra.mxu0 0.0
    %889 = vmatprep.subr.mxu0 0.0
    %890 = vmatpush1.msra.mxu0 0.0
    %891 = vmatprep.subr.mxu0 0.0
    %892 = vmatpush1.msra.mxu0 0.0
    %893 = vmatprep.subr.mxu0 0.0
    %894 = vmatpush1.msra.mxu0 0.0
    %895 = vmatprep.subr.mxu0 0.0
    %896 = vmatpush1.msra.mxu0 0.0
    %897 = vmatprep.subr.mxu0 0.0
    %898 = vmatpush1.msra.mxu0 0.0
    %899 = vmatprep.subr.mxu0 0.0
    %900 = vmatpush1.msra.mxu0 0.0
    %901 = vmatprep.subr.mxu0 0.0
    %902 = vmatpush1.msra.mxu0 0.0
    %903 = vmatprep.subr.mxu0 0.0
    %904 = vmatpush1.msra.mxu0 0.0
    %905 = vmatprep.subr.mxu0 0.0
    %906 = vmatpush1.msra.mxu0 0.0
    %907 = vmatprep.subr.mxu0 0.0
    %908 = vmatpush1.msra.mxu0 0.0
    %909 = vmatprep.subr.mxu0 0.0
    %910 = vmatpush1.msra.mxu0 0.0
    %911 = vmatprep.subr.mxu0 0.0
    %912 = vmatpush1.msra.mxu0 0.0
    %913 = vmatprep.subr.mxu0 0.0
    %914 = vmatpush1.msra.mxu0 0.0
    %915 = vmatprep.mubr.f32.mxu0 0.0
    %916 = vmatmul.mubr.f32.gmra.mrb[0].mxu0 %v849
    %v917 = vpop.f32.mrb[0].mxu0
    %v918 = vadd.f32 0.0, %v917
    %v919 = vpop.f32.mrb[0].mxu0
    %920 = vdwg.mxu0
    %922 = vrot.lane.b32.xlu0 %v918, 24
    %v923 = vpop.permute.xlu0 %922
    %vm925 = vcmask 261312
    %926 = vst.msk [vmem:[#allocation3] sm:$0xff] %vm925, %v923
    %v927 = vld [vmem:[#allocation2 + $0x8] sm:$0xff]
    %929 = vrot.lane.b32.xlu0 %v927, 96
    %v930 = vpop.permute.xlu0 %929
    %v931 = vsel %vm233, %v927, 0
    %v933 = vsel %vm233, %v930, 0
    %935 = vmatprep.subr.mxu0 0.0
    %936 = vmatpush1.xpose.msra.mxu0 %v933
    %937 = vmatprep.subr.mxu0 0.0
    %938 = vmatpush1.xpose.msra.mxu0 0.0
    %939 = vmatprep.subr.mxu0 0.0
    %940 = vmatpush1.xpose.msra.mxu0 0.0
    %941 = vmatprep.subr.mxu0 0.0
    %942 = vmatpush1.xpose.msra.mxu0 0.0
    %943 = vmatprep.subr.mxu0 0.0
    %944 = vmatpush1.xpose.msra.mxu0 0.0
    %945 = vmatprep.subr.mxu0 0.0
    %946 = vmatpush1.xpose.msra.mxu0 0.0
    %947 = vmatprep.subr.mxu0 0.0
    %948 = vmatpush1.xpose.msra.mxu0 0.0
    %949 = vmatprep.subr.mxu0 0.0
    %950 = vmatpush1.xpose.msra.mxu0 0.0
    %951 = vmatprep.subr.mxu0 0.0
    %952 = vmatpush1.xpose.msra.mxu0 0.0
    %953 = vmatprep.subr.mxu0 0.0
    %954 = vmatpush1.xpose.msra.mxu0 0.0
    %955 = vmatprep.subr.mxu0 0.0
    %956 = vmatpush1.xpose.msra.mxu0 0.0
    %957 = vmatprep.subr.mxu0 0.0
    %958 = vmatpush1.xpose.msra.mxu0 0.0
    %959 = vmatprep.subr.mxu0 0.0
    %960 = vmatpush1.xpose.msra.mxu0 0.0
    %961 = vmatprep.subr.mxu0 0.0
    %962 = vmatpush1.xpose.msra.mxu0 0.0
    %963 = vmatprep.subr.mxu0 0.0
    %964 = vmatpush1.xpose.msra.mxu0 0.0
    %965 = vmatprep.subr.mxu0 0.0
    %966 = vmatpush1.xpose.msra.mxu0 0.0
    %967 = vmatprep.subr.mxu0 0.0
    %968 = vmatpush1.xpose.msra.mxu0 0.0
    %969 = vmatprep.subr.mxu0 0.0
    %970 = vmatpush1.xpose.msra.mxu0 0.0
    %971 = vmatprep.subr.mxu0 0.0
    %972 = vmatpush1.xpose.msra.mxu0 0.0
    %973 = vmatprep.subr.mxu0 0.0
    %974 = vmatpush1.xpose.msra.mxu0 0.0
    %975 = vmatprep.subr.mxu0 0.0
    %976 = vmatpush1.xpose.msra.mxu0 0.0
    %977 = vmatprep.subr.mxu0 0.0
    %978 = vmatpush1.xpose.msra.mxu0 0.0
    %979 = vmatprep.subr.mxu0 0.0
    %980 = vmatpush1.xpose.msra.mxu0 0.0
    %981 = vmatprep.subr.mxu0 0.0
    %982 = vmatpush1.xpose.msra.mxu0 0.0
    %983 = vmatprep.subr.mxu0 0.0
    %984 = vmatpush1.xpose.msra.mxu0 0.0
    %985 = vmatprep.subr.mxu0 0.0
    %986 = vmatpush1.xpose.msra.mxu0 0.0
    %987 = vmatprep.subr.mxu0 0.0
    %988 = vmatpush1.xpose.msra.mxu0 0.0
    %989 = vmatprep.subr.mxu0 0.0
    %990 = vmatpush1.xpose.msra.mxu0 0.0
    %991 = vmatprep.subr.mxu0 0.0
    %992 = vmatpush1.xpose.msra.mxu0 0.0
    %993 = vmatprep.subr.mxu0 0.0
    %994 = vmatpush1.xpose.msra.mxu0 0.0
    %995 = vmatprep.subr.mxu0 0.0
    %996 = vmatpush1.xpose.msra.mxu0 0.0
    %997 = vmatprep.subr.mxu0 0.0
    %998 = vmatpush1.xpose.msra.mxu0 0.0
    %999 = vmatprep.mubr.f32.mxu0 0.0
    %1000 = vmatmul.mubr.f32.gmra.mrb[0].mxu0 %v931
    %v1001 = vpop.f32.mrb[0].mxu0
    %v1002 = vadd.f32 0.0, %v1001
    %v1003 = vpop.f32.mrb[0].mxu0
    %1004 = vdwg.mxu0
    %v1005 = vmul.f32 %v1002, 0.35355338
    %v1006 = vlaneseq
    %v1007 = vshrl.u32 %v1006, 7
    %v1008 = vsub.s32 0, %v1007
    %v1009 = vrot.slane %v133, %v1008
    %v1010 = vadd.f32 %v1005, %v1009
    %v1011 = vsel %vm233, %v1010, -inf
    %1012 = vmax.xlane.f32.xlu0 %v1011
    %v1013 = vpop.xlane.xlu0 %1012
    %v1014 = vsub.f32 %v1010, %v1013
    %v1015 = vmul.f32 %v1014, 1.442695
    %v1016 = vpow.pop %v1015
    %v1017 = vsel %vm233, %v1016, 0.0
    %1018 = vadd.xlane.f32.xlu0 %v1017
    %v1019 = vpop.xlane.xlu0 %1018
    %v1020 = vrcp.pop %v1019
    %v1021 = vmul.f32 %v1016, %v1020
    %1022 = vrot.lane.b32.xlu0 %v927, 64
    %v1023 = vpop.permute.xlu0 %1022
    %v1026 = vsel %vm233, %v1021, 0
    %1028 = vmatprep.subr.mxu0 0.0
    %1029 = vmatpush1.msra.mxu0 %v1023
    %1030 = vmatprep.subr.mxu0 0.0
    %1031 = vmatpush1.msra.mxu0 0.0
    %1032 = vmatprep.subr.mxu0 0.0
    %1033 = vmatpush1.msra.mxu0 0.0
    %1034 = vmatprep.subr.mxu0 0.0
    %1035 = vmatpush1.msra.mxu0 0.0
    %1036 = vmatprep.subr.mxu0 0.0
    %1037 = vmatpush1.msra.mxu0 0.0
    %1038 = vmatprep.subr.mxu0 0.0
    %1039 = vmatpush1.msra.mxu0 0.0
    %1040 = vmatprep.subr.mxu0 0.0
    %1041 = vmatpush1.msra.mxu0 0.0
    %1042 = vmatprep.subr.mxu0 0.0
    %1043 = vmatpush1.msra.mxu0 0.0
    %1044 = vmatprep.subr.mxu0 0.0
    %1045 = vmatpush1.msra.mxu0 0.0
    %1046 = vmatprep.subr.mxu0 0.0
    %1047 = vmatpush1.msra.mxu0 0.0
    %1048 = vmatprep.subr.mxu0 0.0
    %1049 = vmatpush1.msra.mxu0 0.0
    %1050 = vmatprep.subr.mxu0 0.0
    %1051 = vmatpush1.msra.mxu0 0.0
    %1052 = vmatprep.subr.mxu0 0.0
    %1053 = vmatpush1.msra.mxu0 0.0
    %1054 = vmatprep.subr.mxu0 0.0
    %1055 = vmatpush1.msra.mxu0 0.0
    %1056 = vmatprep.subr.mxu0 0.0
    %1057 = vmatpush1.msra.mxu0 0.0
    %1058 = vmatprep.subr.mxu0 0.0
    %1059 = vmatpush1.msra.mxu0 0.0
    %1060 = vmatprep.subr.mxu0 0.0
    %1061 = vmatpush1.msra.mxu0 0.0
    %1062 = vmatprep.subr.mxu0 0.0
    %1063 = vmatpush1.msra.mxu0 0.0
    %1064 = vmatprep.subr.mxu0 0.0
    %1065 = vmatpush1.msra.mxu0 0.0
    %1066 = vmatprep.subr.mxu0 0.0
    %1067 = vmatpush1.msra.mxu0 0.0
    %1068 = vmatprep.subr.mxu0 0.0
    %1069 = vmatpush1.msra.mxu0 0.0
    %1070 = vmatprep.subr.mxu0 0.0
    %1071 = vmatpush1.msra.mxu0 0.0
    %1072 = vmatprep.subr.mxu0 0.0
    %1073 = vmatpush1.msra.mxu0 0.0
    %1074 = vmatprep.subr.mxu0 0.0
    %1075 = vmatpush1.msra.mxu0 0.0
    %1076 = vmatprep.subr.mxu0 0.0
    %1077 = vmatpush1.msra.mxu0 0.0
    %1078 = vmatprep.subr.mxu0 0.0
    %1079 = vmatpush1.msra.mxu0 0.0
    %1080 = vmatprep.subr.mxu0 0.0
    %1081 = vmatpush1.msra.mxu0 0.0
    %1082 = vmatprep.subr.mxu0 0.0
    %1083 = vmatpush1.msra.mxu0 0.0
    %1084 = vmatprep.subr.mxu0 0.0
    %1085 = vmatpush1.msra.mxu0 0.0
    %1086 = vmatprep.subr.mxu0 0.0
    %1087 = vmatpush1.msra.mxu0 0.0
    %1088 = vmatprep.subr.mxu0 0.0
    %1089 = vmatpush1.msra.mxu0 0.0
    %1090 = vmatprep.subr.mxu0 0.0
    %1091 = vmatpush1.msra.mxu0 0.0
    %1092 = vmatprep.mubr.f32.mxu0 0.0
    %1093 = vmatmul.mubr.f32.gmra.mrb[0].mxu0 %v1026
    %v1094 = vpop.f32.mrb[0].mxu0
    %v1095 = vadd.f32 0.0, %v1094
    %v1096 = vpop.f32.mrb[0].mxu0
    %1097 = vdwg.mxu0
    %1098 = vst.msk [vmem:[#allocation3 + $0x8] sm:$0xff] %vm233, %v1095
    %v1099 = vld [vmem:[#allocation2 + $0x8] sm:$0xff]
    %1101 = vrot.lane.b32.xlu0 %v1099, 120
    %v1102 = vpop.permute.xlu0 %1101
    %1103 = vrot.lane.b32.xlu0 %v1099, 88
    %v1104 = vpop.permute.xlu0 %1103
    %v1105 = vsel %vm233, %v1102, 0
    %v1107 = vsel %vm233, %v1104, 0
    %1109 = vmatprep.subr.mxu0 0.0
    %1110 = vmatpush1.xpose.msra.mxu0 %v1107
    %1111 = vmatprep.subr.mxu0 0.0
    %1112 = vmatpush1.xpose.msra.mxu0 0.0
    %1113 = vmatprep.subr.mxu0 0.0
    %1114 = vmatpush1.xpose.msra.mxu0 0.0
    %1115 = vmatprep.subr.mxu0 0.0
    %1116 = vmatpush1.xpose.msra.mxu0 0.0
    %1117 = vmatprep.subr.mxu0 0.0
    %1118 = vmatpush1.xpose.msra.mxu0 0.0
    %1119 = vmatprep.subr.mxu0 0.0
    %1120 = vmatpush1.xpose.msra.mxu0 0.0
    %1121 = vmatprep.subr.mxu0 0.0
    %1122 = vmatpush1.xpose.msra.mxu0 0.0
    %1123 = vmatprep.subr.mxu0 0.0
    %1124 = vmatpush1.xpose.msra.mxu0 0.0
    %1125 = vmatprep.subr.mxu0 0.0
    %1126 = vmatpush1.xpose.msra.mxu0 0.0
    %1127 = vmatprep.subr.mxu0 0.0
    %1128 = vmatpush1.xpose.msra.mxu0 0.0
    %1129 = vmatprep.subr.mxu0 0.0
    %1130 = vmatpush1.xpose.msra.mxu0 0.0
    %1131 = vmatprep.subr.mxu0 0.0
    %1132 = vmatpush1.xpose.msra.mxu0 0.0
    %1133 = vmatprep.subr.mxu0 0.0
    %1134 = vmatpush1.xpose.msra.mxu0 0.0
    %1135 = vmatprep.subr.mxu0 0.0
    %1136 = vmatpush1.xpose.msra.mxu0 0.0
    %1137 = vmatprep.subr.mxu0 0.0
    %1138 = vmatpush1.xpose.msra.mxu0 0.0
    %1139 = vmatprep.subr.mxu0 0.0
    %1140 = vmatpush1.xpose.msra.mxu0 0.0
    %1141 = vmatprep.subr.mxu0 0.0
    %1142 = vmatpush1.xpose.msra.mxu0 0.0
    %1143 = vmatprep.subr.mxu0 0.0
    %1144 = vmatpush1.xpose.msra.mxu0 0.0
    %1145 = vmatprep.subr.mxu0 0.0
    %1146 = vmatpush1.xpose.msra.mxu0 0.0
    %1147 = vmatprep.subr.mxu0 0.0
    %1148 = vmatpush1.xpose.msra.mxu0 0.0
    %1149 = vmatprep.subr.mxu0 0.0
    %1150 = vmatpush1.xpose.msra.mxu0 0.0
    %1151 = vmatprep.subr.mxu0 0.0
    %1152 = vmatpush1.xpose.msra.mxu0 0.0
    %1153 = vmatprep.subr.mxu0 0.0
    %1154 = vmatpush1.xpose.msra.mxu0 0.0
    %1155 = vmatprep.subr.mxu0 0.0
    %1156 = vmatpush1.xpose.msra.mxu0 0.0
    %1157 = vmatprep.subr.mxu0 0.0
    %1158 = vmatpush1.xpose.msra.mxu0 0.0
    %1159 = vmatprep.subr.mxu0 0.0
    %1160 = vmatpush1.xpose.msra.mxu0 0.0
    %1161 = vmatprep.subr.mxu0 0.0
    %1162 = vmatpush1.xpose.msra.mxu0 0.0
    %1163 = vmatprep.subr.mxu0 0.0
    %1164 = vmatpush1.xpose.msra.mxu0 0.0
    %1165 = vmatprep.subr.mxu0 0.0
    %1166 = vmatpush1.xpose.msra.mxu0 0.0
    %1167 = vmatprep.subr.mxu0 0.0
    %1168 = vmatpush1.xpose.msra.mxu0 0.0
    %1169 = vmatprep.subr.mxu0 0.0
    %1170 = vmatpush1.xpose.msra.mxu0 0.0
    %1171 = vmatprep.subr.mxu0 0.0
    %1172 = vmatpush1.xpose.msra.mxu0 0.0
    %1173 = vmatprep.mubr.f32.mxu0 0.0
    %1174 = vmatmul.mubr.f32.gmra.mrb[0].mxu0 %v1105
    %v1175 = vpop.f32.mrb[0].mxu0
    %v1176 = vadd.f32 0.0, %v1175
    %v1177 = vpop.f32.mrb[0].mxu0
    %1178 = vdwg.mxu0
    %v1179 = vmul.f32 %v1176, 0.35355338
    %v1180 = vadd.f32 %v1179, %v1009
    %v1181 = vsel %vm233, %v1180, -inf
    %1182 = vmax.xlane.f32.xlu0 %v1181
    %v1183 = vpop.xlane.xlu0 %1182
    %v1184 = vsub.f32 %v1180, %v1183
    %v1185 = vmul.f32 %v1184, 1.442695
    %v1186 = vpow.pop %v1185
    %v1187 = vsel %vm233, %v1186, 0.0
    %1188 = vadd.xlane.f32.xlu0 %v1187
    %v1189 = vpop.xlane.xlu0 %1188
    %v1190 = vrcp.pop %v1189
    %v1191 = vmul.f32 %v1186, %v1190
    %1192 = vrot.lane.b32.xlu0 %v1099, 56
    %v1193 = vpop.permute.xlu0 %1192
    %v1196 = vsel %vm233, %v1191, 0
    %1198 = vmatprep.subr.mxu0 0.0
    %1199 = vmatpush1.msra.mxu0 %v1193
    %1200 = vmatprep.subr.mxu0 0.0
    %1201 = vmatpush1.msra.mxu0 0.0
    %1202 = vmatprep.subr.mxu0 0.0
    %1203 = vmatpush1.msra.mxu0 0.0
    %1204 = vmatprep.subr.mxu0 0.0
    %1205 = vmatpush1.msra.mxu0 0.0
    %1206 = vmatprep.subr.mxu0 0.0
    %1207 = vmatpush1.msra.mxu0 0.0
    %1208 = vmatprep.subr.mxu0 0.0
    %1209 = vmatpush1.msra.mxu0 0.0
    %1210 = vmatprep.subr.mxu0 0.0
    %1211 = vmatpush1.msra.mxu0 0.0
    %1212 = vmatprep.subr.mxu0 0.0
    %1213 = vmatpush1.msra.mxu0 0.0
    %1214 = vmatprep.subr.mxu0 0.0
    %1215 = vmatpush1.msra.mxu0 0.0
    %1216 = vmatprep.subr.mxu0 0.0
    %1217 = vmatpush1.msra.mxu0 0.0
    %1218 = vmatprep.subr.mxu0 0.0
    %1219 = vmatpush1.msra.mxu0 0.0
    %1220 = vmatprep.subr.mxu0 0.0
    %1221 = vmatpush1.msra.mxu0 0.0
    %1222 = vmatprep.subr.mxu0 0.0
    %1223 = vmatpush1.msra.mxu0 0.0
    %1224 = vmatprep.subr.mxu0 0.0
    %1225 = vmatpush1.msra.mxu0 0.0
    %1226 = vmatprep.subr.mxu0 0.0
    %1227 = vmatpush1.msra.mxu0 0.0
    %1228 = vmatprep.subr.mxu0 0.0
    %1229 = vmatpush1.msra.mxu0 0.0
    %1230 = vmatprep.subr.mxu0 0.0
    %1231 = vmatpush1.msra.mxu0 0.0
    %1232 = vmatprep.subr.mxu0 0.0
    %1233 = vmatpush1.msra.mxu0 0.0
    %1234 = vmatprep.subr.mxu0 0.0
    %1235 = vmatpush1.msra.mxu0 0.0
    %1236 = vmatprep.subr.mxu0 0.0
    %1237 = vmatpush1.msra.mxu0 0.0
    %1238 = vmatprep.subr.mxu0 0.0
    %1239 = vmatpush1.msra.mxu0 0.0
    %1240 = vmatprep.subr.mxu0 0.0
    %1241 = vmatpush1.msra.mxu0 0.0
    %1242 = vmatprep.subr.mxu0 0.0
    %1243 = vmatpush1.msra.mxu0 0.0
    %1244 = vmatprep.subr.mxu0 0.0
    %1245 = vmatpush1.msra.mxu0 0.0
    %1246 = vmatprep.subr.mxu0 0.0
    %1247 = vmatpush1.msra.mxu0 0.0
    %1248 = vmatprep.subr.mxu0 0.0
    %1249 = vmatpush1.msra.mxu0 0.0
    %1250 = vmatprep.subr.mxu0 0.0
    %1251 = vmatpush1.msra.mxu0 0.0
    %1252 = vmatprep.subr.mxu0 0.0
    %1253 = vmatpush1.msra.mxu0 0.0
    %1254 = vmatprep.subr.mxu0 0.0
    %1255 = vmatpush1.msra.mxu0 0.0
    %1256 = vmatprep.subr.mxu0 0.0
    %1257 = vmatpush1.msra.mxu0 0.0
    %1258 = vmatprep.subr.mxu0 0.0
    %1259 = vmatpush1.msra.mxu0 0.0
    %1260 = vmatprep.subr.mxu0 0.0
    %1261 = vmatpush1.msra.mxu0 0.0
    %1262 = vmatprep.mubr.f32.mxu0 0.0
    %1263 = vmatmul.mubr.f32.gmra.mrb[0].mxu0 %v1196
    %v1264 = vpop.f32.mrb[0].mxu0
    %v1265 = vadd.f32 0.0, %v1264
    %v1266 = vpop.f32.mrb[0].mxu0
    %1267 = vdwg.mxu0
    %1269 = vrot.lane.b32.xlu0 %v1265, 8
    %v1270 = vpop.permute.xlu0 %1269
    %1272 = vst.msk [vmem:[#allocation3 + $0x8] sm:$0xff] %vm575, %v1270
    %v1273 = vld [vmem:[#allocation2 + $0x8] sm:$0xff]
    %1275 = vrot.lane.b32.xlu0 %v1273, 112
    %v1276 = vpop.permute.xlu0 %1275
    %1277 = vrot.lane.b32.xlu0 %v1273, 80
    %v1278 = vpop.permute.xlu0 %1277
    %v1279 = vsel %vm233, %v1276, 0
    %v1281 = vsel %vm233, %v1278, 0
    %1283 = vmatprep.subr.mxu0 0.0
    %1284 = vmatpush1.xpose.msra.mxu0 %v1281
    %1285 = vmatprep.subr.mxu0 0.0
    %1286 = vmatpush1.xpose.msra.mxu0 0.0
    %1287 = vmatprep.subr.mxu0 0.0
    %1288 = vmatpush1.xpose.msra.mxu0 0.0
    %1289 = vmatprep.subr.mxu0 0.0
    %1290 = vmatpush1.xpose.msra.mxu0 0.0
    %1291 = vmatprep.subr.mxu0 0.0
    %1292 = vmatpush1.xpose.msra.mxu0 0.0
    %1293 = vmatprep.subr.mxu0 0.0
    %1294 = vmatpush1.xpose.msra.mxu0 0.0
    %1295 = vmatprep.subr.mxu0 0.0
    %1296 = vmatpush1.xpose.msra.mxu0 0.0
    %1297 = vmatprep.subr.mxu0 0.0
    %1298 = vmatpush1.xpose.msra.mxu0 0.0
    %1299 = vmatprep.subr.mxu0 0.0
    %1300 = vmatpush1.xpose.msra.mxu0 0.0
    %1301 = vmatprep.subr.mxu0 0.0
    %1302 = vmatpush1.xpose.msra.mxu0 0.0
    %1303 = vmatprep.subr.mxu0 0.0
    %1304 = vmatpush1.xpose.msra.mxu0 0.0
    %1305 = vmatprep.subr.mxu0 0.0
    %1306 = vmatpush1.xpose.msra.mxu0 0.0
    %1307 = vmatprep.subr.mxu0 0.0
    %1308 = vmatpush1.xpose.msra.mxu0 0.0
    %1309 = vmatprep.subr.mxu0 0.0
    %1310 = vmatpush1.xpose.msra.mxu0 0.0
    %1311 = vmatprep.subr.mxu0 0.0
    %1312 = vmatpush1.xpose.msra.mxu0 0.0
    %1313 = vmatprep.subr.mxu0 0.0
    %1314 = vmatpush1.xpose.msra.mxu0 0.0
    %1315 = vmatprep.subr.mxu0 0.0
    %1316 = vmatpush1.xpose.msra.mxu0 0.0
    %1317 = vmatprep.subr.mxu0 0.0
    %1318 = vmatpush1.xpose.msra.mxu0 0.0
    %1319 = vmatprep.subr.mxu0 0.0
    %1320 = vmatpush1.xpose.msra.mxu0 0.0
    %1321 = vmatprep.subr.mxu0 0.0
    %1322 = vmatpush1.xpose.msra.mxu0 0.0
    %1323 = vmatprep.subr.mxu0 0.0
    %1324 = vmatpush1.xpose.msra.mxu0 0.0
    %1325 = vmatprep.subr.mxu0 0.0
    %1326 = vmatpush1.xpose.msra.mxu0 0.0
    %1327 = vmatprep.subr.mxu0 0.0
    %1328 = vmatpush1.xpose.msra.mxu0 0.0
    %1329 = vmatprep.subr.mxu0 0.0
    %1330 = vmatpush1.xpose.msra.mxu0 0.0
    %1331 = vmatprep.subr.mxu0 0.0
    %1332 = vmatpush1.xpose.msra.mxu0 0.0
    %1333 = vmatprep.subr.mxu0 0.0
    %1334 = vmatpush1.xpose.msra.mxu0 0.0
    %1335 = vmatprep.subr.mxu0 0.0
    %1336 = vmatpush1.xpose.msra.mxu0 0.0
    %1337 = vmatprep.subr.mxu0 0.0
    %1338 = vmatpush1.xpose.msra.mxu0 0.0
    %1339 = vmatprep.subr.mxu0 0.0
    %1340 = vmatpush1.xpose.msra.mxu0 0.0
    %1341 = vmatprep.subr.mxu0 0.0
    %1342 = vmatpush1.xpose.msra.mxu0 0.0
    %1343 = vmatprep.subr.mxu0 0.0
    %1344 = vmatpush1.xpose.msra.mxu0 0.0
    %1345 = vmatprep.subr.mxu0 0.0
    %1346 = vmatpush1.xpose.msra.mxu0 0.0
    %1347 = vmatprep.mubr.f32.mxu0 0.0
    %1348 = vmatmul.mubr.f32.gmra.mrb[0].mxu0 %v1279
    %v1349 = vpop.f32.mrb[0].mxu0
    %v1350 = vadd.f32 0.0, %v1349
    %v1351 = vpop.f32.mrb[0].mxu0
    %1352 = vdwg.mxu0
    %v1353 = vmul.f32 %v1350, 0.35355338
    %v1354 = vadd.f32 %v1353, %v1009
    %v1355 = vsel %vm233, %v1354, -inf
    %1356 = vmax.xlane.f32.xlu0 %v1355
    %v1357 = vpop.xlane.xlu0 %1356
    %v1358 = vsub.f32 %v1354, %v1357
    %v1359 = vmul.f32 %v1358, 1.442695
    %v1360 = vpow.pop %v1359
    %v1361 = vsel %vm233, %v1360, 0.0
    %1362 = vadd.xlane.f32.xlu0 %v1361
    %v1363 = vpop.xlane.xlu0 %1362
    %v1364 = vrcp.pop %v1363
    %v1365 = vmul.f32 %v1360, %v1364
    %1366 = vrot.lane.b32.xlu0 %v1273, 48
    %v1367 = vpop.permute.xlu0 %1366
    %v1370 = vsel %vm233, %v1365, 0
    %1372 = vmatprep.subr.mxu0 0.0
    %1373 = vmatpush1.msra.mxu0 %v1367
    %1374 = vmatprep.subr.mxu0 0.0
    %1375 = vmatpush1.msra.mxu0 0.0
    %1376 = vmatprep.subr.mxu0 0.0
    %1377 = vmatpush1.msra.mxu0 0.0
    %1378 = vmatprep.subr.mxu0 0.0
    %1379 = vmatpush1.msra.mxu0 0.0
    %1380 = vmatprep.subr.mxu0 0.0
    %1381 = vmatpush1.msra.mxu0 0.0
    %1382 = vmatprep.subr.mxu0 0.0
    %1383 = vmatpush1.msra.mxu0 0.0
    %1384 = vmatprep.subr.mxu0 0.0
    %1385 = vmatpush1.msra.mxu0 0.0
    %1386 = vmatprep.subr.mxu0 0.0
    %1387 = vmatpush1.msra.mxu0 0.0
    %1388 = vmatprep.subr.mxu0 0.0
    %1389 = vmatpush1.msra.mxu0 0.0
    %1390 = vmatprep.subr.mxu0 0.0
    %1391 = vmatpush1.msra.mxu0 0.0
    %1392 = vmatprep.subr.mxu0 0.0
    %1393 = vmatpush1.msra.mxu0 0.0
    %1394 = vmatprep.subr.mxu0 0.0
    %1395 = vmatpush1.msra.mxu0 0.0
    %1396 = vmatprep.subr.mxu0 0.0
    %1397 = vmatpush1.msra.mxu0 0.0
    %1398 = vmatprep.subr.mxu0 0.0
    %1399 = vmatpush1.msra.mxu0 0.0
    %1400 = vmatprep.subr.mxu0 0.0
    %1401 = vmatpush1.msra.mxu0 0.0
    %1402 = vmatprep.subr.mxu0 0.0
    %1403 = vmatpush1.msra.mxu0 0.0
    %1404 = vmatprep.subr.mxu0 0.0
    %1405 = vmatpush1.msra.mxu0 0.0
    %1406 = vmatprep.subr.mxu0 0.0
    %1407 = vmatpush1.msra.mxu0 0.0
    %1408 = vmatprep.subr.mxu0 0.0
    %1409 = vmatpush1.msra.mxu0 0.0
    %1410 = vmatprep.subr.mxu0 0.0
    %1411 = vmatpush1.msra.mxu0 0.0
    %1412 = vmatprep.subr.mxu0 0.0
    %1413 = vmatpush1.msra.mxu0 0.0
    %1414 = vmatprep.subr.mxu0 0.0
    %1415 = vmatpush1.msra.mxu0 0.0
    %1416 = vmatprep.subr.mxu0 0.0
    %1417 = vmatpush1.msra.mxu0 0.0
    %1418 = vmatprep.subr.mxu0 0.0
    %1419 = vmatpush1.msra.mxu0 0.0
    %1420 = vmatprep.subr.mxu0 0.0
    %1421 = vmatpush1.msra.mxu0 0.0
    %1422 = vmatprep.subr.mxu0 0.0
    %1423 = vmatpush1.msra.mxu0 0.0
    %1424 = vmatprep.subr.mxu0 0.0
    %1425 = vmatpush1.msra.mxu0 0.0
    %1426 = vmatprep.subr.mxu0 0.0
    %1427 = vmatpush1.msra.mxu0 0.0
    %1428 = vmatprep.subr.mxu0 0.0
    %1429 = vmatpush1.msra.mxu0 0.0
    %1430 = vmatprep.subr.mxu0 0.0
    %1431 = vmatpush1.msra.mxu0 0.0
    %1432 = vmatprep.subr.mxu0 0.0
    %1433 = vmatpush1.msra.mxu0 0.0
    %1434 = vmatprep.subr.mxu0 0.0
    %1435 = vmatpush1.msra.mxu0 0.0
    %1436 = vmatprep.mubr.f32.mxu0 0.0
    %1437 = vmatmul.mubr.f32.gmra.mrb[0].mxu0 %v1370
    %v1438 = vpop.f32.mrb[0].mxu0
    %v1439 = vadd.f32 0.0, %v1438
    %v1440 = vpop.f32.mrb[0].mxu0
    %1441 = vdwg.mxu0
    %1443 = vrot.lane.b32.xlu0 %v1439, 16
    %v1444 = vpop.permute.xlu0 %1443
    %1446 = vst.msk [vmem:[#allocation3 + $0x8] sm:$0xff] %vm750, %v1444
    %v1447 = vld [vmem:[#allocation2 + $0x8] sm:$0xff]
    %1449 = vrot.lane.b32.xlu0 %v1447, 104
    %v1450 = vpop.permute.xlu0 %1449
    %1451 = vrot.lane.b32.xlu0 %v1447, 72
    %v1452 = vpop.permute.xlu0 %1451
    %v1453 = vsel %vm233, %v1450, 0
    %v1455 = vsel %vm233, %v1452, 0
    %1457 = vmatprep.subr.mxu0 0.0
    %1458 = vmatpush1.xpose.msra.mxu0 %v1455
    %1459 = vmatprep.subr.mxu0 0.0
    %1460 = vmatpush1.xpose.msra.mxu0 0.0
    %1461 = vmatprep.subr.mxu0 0.0
    %1462 = vmatpush1.xpose.msra.mxu0 0.0
    %1463 = vmatprep.subr.mxu0 0.0
    %1464 = vmatpush1.xpose.msra.mxu0 0.0
    %1465 = vmatprep.subr.mxu0 0.0
    %1466 = vmatpush1.xpose.msra.mxu0 0.0
    %1467 = vmatprep.subr.mxu0 0.0
    %1468 = vmatpush1.xpose.msra.mxu0 0.0
    %1469 = vmatprep.subr.mxu0 0.0
    %1470 = vmatpush1.xpose.msra.mxu0 0.0
    %1471 = vmatprep.subr.mxu0 0.0
    %1472 = vmatpush1.xpose.msra.mxu0 0.0
    %1473 = vmatprep.subr.mxu0 0.0
    %1474 = vmatpush1.xpose.msra.mxu0 0.0
    %1475 = vmatprep.subr.mxu0 0.0
    %1476 = vmatpush1.xpose.msra.mxu0 0.0
    %1477 = vmatprep.subr.mxu0 0.0
    %1478 = vmatpush1.xpose.msra.mxu0 0.0
    %1479 = vmatprep.subr.mxu0 0.0
    %1480 = vmatpush1.xpose.msra.mxu0 0.0
    %1481 = vmatprep.subr.mxu0 0.0
    %1482 = vmatpush1.xpose.msra.mxu0 0.0
    %1483 = vmatprep.subr.mxu0 0.0
    %1484 = vmatpush1.xpose.msra.mxu0 0.0
    %1485 = vmatprep.subr.mxu0 0.0
    %1486 = vmatpush1.xpose.msra.mxu0 0.0
    %1487 = vmatprep.subr.mxu0 0.0
    %1488 = vmatpush1.xpose.msra.mxu0 0.0
    %1489 = vmatprep.subr.mxu0 0.0
    %1490 = vmatpush1.xpose.msra.mxu0 0.0
    %1491 = vmatprep.subr.mxu0 0.0
    %1492 = vmatpush1.xpose.msra.mxu0 0.0
    %1493 = vmatprep.subr.mxu0 0.0
    %1494 = vmatpush1.xpose.msra.mxu0 0.0
    %1495 = vmatprep.subr.mxu0 0.0
    %1496 = vmatpush1.xpose.msra.mxu0 0.0
    %1497 = vmatprep.subr.mxu0 0.0
    %1498 = vmatpush1.xpose.msra.mxu0 0.0
    %1499 = vmatprep.subr.mxu0 0.0
    %1500 = vmatpush1.xpose.msra.mxu0 0.0
    %1501 = vmatprep.subr.mxu0 0.0
    %1502 = vmatpush1.xpose.msra.mxu0 0.0
    %1503 = vmatprep.subr.mxu0 0.0
    %1504 = vmatpush1.xpose.msra.mxu0 0.0
    %1505 = vmatprep.subr.mxu0 0.0
    %1506 = vmatpush1.xpose.msra.mxu0 0.0
    %1507 = vmatprep.subr.mxu0 0.0
    %1508 = vmatpush1.xpose.msra.mxu0 0.0
    %1509 = vmatprep.subr.mxu0 0.0
    %1510 = vmatpush1.xpose.msra.mxu0 0.0
    %1511 = vmatprep.subr.mxu0 0.0
    %1512 = vmatpush1.xpose.msra.mxu0 0.0
    %1513 = vmatprep.subr.mxu0 0.0
    %1514 = vmatpush1.xpose.msra.mxu0 0.0
    %1515 = vmatprep.subr.mxu0 0.0
    %1516 = vmatpush1.xpose.msra.mxu0 0.0
    %1517 = vmatprep.subr.mxu0 0.0
    %1518 = vmatpush1.xpose.msra.mxu0 0.0
    %1519 = vmatprep.subr.mxu0 0.0
    %1520 = vmatpush1.xpose.msra.mxu0 0.0
    %1521 = vmatprep.mubr.f32.mxu0 0.0
    %1522 = vmatmul.mubr.f32.gmra.mrb[0].mxu0 %v1453
    %v1523 = vpop.f32.mrb[0].mxu0
    %v1524 = vadd.f32 0.0, %v1523
    %v1525 = vpop.f32.mrb[0].mxu0
    %1526 = vdwg.mxu0
    %v1527 = vmul.f32 %v1524, 0.35355338
    %v1528 = vadd.f32 %v1527, %v1009
    %v1529 = vsel %vm233, %v1528, -inf
    %1530 = vmax.xlane.f32.xlu0 %v1529
    %v1531 = vpop.xlane.xlu0 %1530
    %v1532 = vsub.f32 %v1528, %v1531
    %v1533 = vmul.f32 %v1532, 1.442695
    %v1534 = vpow.pop %v1533
    %v1535 = vsel %vm233, %v1534, 0.0
    %1536 = vadd.xlane.f32.xlu0 %v1535
    %v1537 = vpop.xlane.xlu0 %1536
    %v1538 = vrcp.pop %v1537
    %v1539 = vmul.f32 %v1534, %v1538
    %1540 = vrot.lane.b32.xlu0 %v1447, 40
    %v1541 = vpop.permute.xlu0 %1540
    %v1544 = vsel %vm233, %v1539, 0
    %1546 = vmatprep.subr.mxu0 0.0
    %1547 = vmatpush1.msra.mxu0 %v1541
    %1548 = vmatprep.subr.mxu0 0.0
    %1549 = vmatpush1.msra.mxu0 0.0
    %1550 = vmatprep.subr.mxu0 0.0
    %1551 = vmatpush1.msra.mxu0 0.0
    %1552 = vmatprep.subr.mxu0 0.0
    %1553 = vmatpush1.msra.mxu0 0.0
    %1554 = vmatprep.subr.mxu0 0.0
    %1555 = vmatpush1.msra.mxu0 0.0
    %1556 = vmatprep.subr.mxu0 0.0
    %1557 = vmatpush1.msra.mxu0 0.0
    %1558 = vmatprep.subr.mxu0 0.0
    %1559 = vmatpush1.msra.mxu0 0.0
    %1560 = vmatprep.subr.mxu0 0.0
    %1561 = vmatpush1.msra.mxu0 0.0
    %1562 = vmatprep.subr.mxu0 0.0
    %1563 = vmatpush1.msra.mxu0 0.0
    %1564 = vmatprep.subr.mxu0 0.0
    %1565 = vmatpush1.msra.mxu0 0.0
    %1566 = vmatprep.subr.mxu0 0.0
    %1567 = vmatpush1.msra.mxu0 0.0
    %1568 = vmatprep.subr.mxu0 0.0
    %1569 = vmatpush1.msra.mxu0 0.0
    %1570 = vmatprep.subr.mxu0 0.0
    %1571 = vmatpush1.msra.mxu0 0.0
    %1572 = vmatprep.subr.mxu0 0.0
    %1573 = vmatpush1.msra.mxu0 0.0
    %1574 = vmatprep.subr.mxu0 0.0
    %1575 = vmatpush1.msra.mxu0 0.0
    %1576 = vmatprep.subr.mxu0 0.0
    %1577 = vmatpush1.msra.mxu0 0.0
    %1578 = vmatprep.subr.mxu0 0.0
    %1579 = vmatpush1.msra.mxu0 0.0
    %1580 = vmatprep.subr.mxu0 0.0
    %1581 = vmatpush1.msra.mxu0 0.0
    %1582 = vmatprep.subr.mxu0 0.0
    %1583 = vmatpush1.msra.mxu0 0.0
    %1584 = vmatprep.subr.mxu0 0.0
    %1585 = vmatpush1.msra.mxu0 0.0
    %1586 = vmatprep.subr.mxu0 0.0
    %1587 = vmatpush1.msra.mxu0 0.0
    %1588 = vmatprep.subr.mxu0 0.0
    %1589 = vmatpush1.msra.mxu0 0.0
    %1590 = vmatprep.subr.mxu0 0.0
    %1591 = vmatpush1.msra.mxu0 0.0
    %1592 = vmatprep.subr.mxu0 0.0
    %1593 = vmatpush1.msra.mxu0 0.0
    %1594 = vmatprep.subr.mxu0 0.0
    %1595 = vmatpush1.msra.mxu0 0.0
    %1596 = vmatprep.subr.mxu0 0.0
    %1597 = vmatpush1.msra.mxu0 0.0
    %1598 = vmatprep.subr.mxu0 0.0
    %1599 = vmatpush1.msra.mxu0 0.0
    %1600 = vmatprep.subr.mxu0 0.0
    %1601 = vmatpush1.msra.mxu0 0.0
    %1602 = vmatprep.subr.mxu0 0.0
    %1603 = vmatpush1.msra.mxu0 0.0
    %1604 = vmatprep.subr.mxu0 0.0
    %1605 = vmatpush1.msra.mxu0 0.0
    %1606 = vmatprep.subr.mxu0 0.0
    %1607 = vmatpush1.msra.mxu0 0.0
    %1608 = vmatprep.subr.mxu0 0.0
    %1609 = vmatpush1.msra.mxu0 0.0
    %1610 = vmatprep.mubr.f32.mxu0 0.0
    %1611 = vmatmul.mubr.f32.gmra.mrb[0].mxu0 %v1544
    %v1612 = vpop.f32.mrb[0].mxu0
    %v1613 = vadd.f32 0.0, %v1612
    %v1614 = vpop.f32.mrb[0].mxu0
    %1615 = vdwg.mxu0
    %1617 = vrot.lane.b32.xlu0 %v1613, 24
    %v1618 = vpop.permute.xlu0 %1617
    %1620 = vst.msk [vmem:[#allocation3 + $0x8] sm:$0xff] %vm925, %v1618
    %v1621 = vld [vmem:[#allocation3] sm:$0xff]
    %v1622 = vld [vmem:[#allocation3 + $0x8] sm:$0xff]
    %v1623 = vld [vmem:[%s6] sm:$0xff]
    %v1624 = vld [vmem:[%s6 + $0x8] sm:$0xff]
    %v1625 = vld [vmem:[%s6 + $0x10] sm:$0xff]
    %v1626 = vld [vmem:[%s6 + $0x18] sm:$0xff]
    %v1627 = vld [vmem:[%s7] sm:$0x1]
    %v1629 = vlaneseq
    %v1630 = vshrl.u32 %v1629, 7
    %v1631 = vsub.s32 0, %v1630
    %v1632 = vrot.slane %v1627, %v1631
    %v1635 = vsel %vm88, %v1621, 0
    %v1638 = vsel %vm88, %v1622, 0
    %1640 = vmatprep.subr.mxu0 0.0
    %1641 = vmatpush1.msra.mxu0 %v1623
    %1642 = vmatprep.subr.mxu0 0.0
    %1643 = vmatpush1.msra.mxu0 %v1624
    %1644 = vmatprep.subr.mxu0 0.0
    %1645 = vmatpush1.msra.mxu0 %v1625
    %1646 = vmatprep.subr.mxu0 0.0
    %1647 = vmatpush1.msra.mxu0 %v1626
    %1648 = vmatprep.subr.mxu0 0.0
    %1649 = vmatpush1.msra.mxu0 0.0
    %1650 = vmatprep.subr.mxu0 0.0
    %1651 = vmatpush1.msra.mxu0 0.0
    %1652 = vmatprep.subr.mxu0 0.0
    %1653 = vmatpush1.msra.mxu0 0.0
    %1654 = vmatprep.subr.mxu0 0.0
    %1655 = vmatpush1.msra.mxu0 0.0
    %1656 = vmatprep.subr.mxu0 0.0
    %1657 = vmatpush1.msra.mxu0 0.0
    %1658 = vmatprep.subr.mxu0 0.0
    %1659 = vmatpush1.msra.mxu0 0.0
    %1660 = vmatprep.subr.mxu0 0.0
    %1661 = vmatpush1.msra.mxu0 0.0
    %1662 = vmatprep.subr.mxu0 0.0
    %1663 = vmatpush1.msra.mxu0 0.0
    %1664 = vmatprep.subr.mxu0 0.0
    %1665 = vmatpush1.msra.mxu0 0.0
    %1666 = vmatprep.subr.mxu0 0.0
    %1667 = vmatpush1.msra.mxu0 0.0
    %1668 = vmatprep.subr.mxu0 0.0
    %1669 = vmatpush1.msra.mxu0 0.0
    %1670 = vmatprep.subr.mxu0 0.0
    %1671 = vmatpush1.msra.mxu0 0.0
    %1672 = vmatprep.subr.mxu0 0.0
    %1673 = vmatpush1.msra.mxu0 0.0
    %1674 = vmatprep.subr.mxu0 0.0
    %1675 = vmatpush1.msra.mxu0 0.0
    %1676 = vmatprep.subr.mxu0 0.0
    %1677 = vmatpush1.msra.mxu0 0.0
    %1678 = vmatprep.subr.mxu0 0.0
    %1679 = vmatpush1.msra.mxu0 0.0
    %1680 = vmatprep.subr.mxu0 0.0
    %1681 = vmatpush1.msra.mxu0 0.0
    %1682 = vmatprep.subr.mxu0 0.0
    %1683 = vmatpush1.msra.mxu0 0.0
    %1684 = vmatprep.subr.mxu0 0.0
    %1685 = vmatpush1.msra.mxu0 0.0
    %1686 = vmatprep.subr.mxu0 0.0
    %1687 = vmatpush1.msra.mxu0 0.0
    %1688 = vmatprep.subr.mxu0 0.0
    %1689 = vmatpush1.msra.mxu0 0.0
    %1690 = vmatprep.subr.mxu0 0.0
    %1691 = vmatpush1.msra.mxu0 0.0
    %1692 = vmatprep.subr.mxu0 0.0
    %1693 = vmatpush1.msra.mxu0 0.0
    %1694 = vmatprep.subr.mxu0 0.0
    %1695 = vmatpush1.msra.mxu0 0.0
    %1696 = vmatprep.subr.mxu0 0.0
    %1697 = vmatpush1.msra.mxu0 0.0
    %1698 = vmatprep.subr.mxu0 0.0
    %1699 = vmatpush1.msra.mxu0 0.0
    %1700 = vmatprep.subr.mxu0 0.0
    %1701 = vmatpush1.msra.mxu0 0.0
    %1702 = vmatprep.subr.mxu0 0.0
    %1703 = vmatpush1.msra.mxu0 0.0
    %1704 = vmatprep.mubr.f32.mxu0 0.0
    %1705 = vmatmul.mubr.f32.gmra.mrb[0].mxu0 %v1635
    %v1706 = vpop.f32.mrb[0].mxu0
    %v1707 = vadd.f32 %v1632, %v1706
    %v1708 = vpop.f32.mrb[0].mxu0
    %1709 = vmatprep.mubr.f32.mxu0 0.0
    %1710 = vmatmul.mubr.f32.gmra.mrb[0].mxu0 %v1638
    %v1711 = vpop.f32.mrb[0].mxu0
    %v1712 = vadd.f32 %v1632, %v1711
    %v1713 = vpop.f32.mrb[0].mxu0
    %1714 = vdwg.mxu0
    %v1715 = vadd.f32 %v130, %v1707
    %v1716 = vadd.f32 %v131, %v1712
    %v1717 = vld [vmem:[%s8] sm:$0x1]
    %v1718 = vld [vmem:[%s9] sm:$0x1]
    %v1719 = vsel %vm88, %v1715, 0.0
    %1720 = vadd.xlane.f32.xlu0 %v1719
    %v1721 = vpop.xlane.xlu0 %1720
    %v1722 = vsel %vm88, %v1716, 0.0
    %1723 = vadd.xlane.f32.xlu0 %v1722
    %v1724 = vpop.xlane.xlu0 %1723
    %v1725 = vmul.f32 %v1721, %v95
    %v1726 = vmul.f32 %v1724, %v95
    %v1727 = vsub.f32 %v1715, %v1725
    %v1728 = vsub.f32 %v1716, %v1726
    %v1729 = vmul.f32 %v1727, %v1727
    %v1730 = vmul.f32 %v1728, %v1728
    %v1731 = vsel %vm88, %v1729, 0.0
    %1732 = vadd.xlane.f32.xlu0 %v1731
    %v1733 = vpop.xlane.xlu0 %1732
    %v1734 = vsel %vm88, %v1730, 0.0
    %1735 = vadd.xlane.f32.xlu0 %v1734
    %v1736 = vpop.xlane.xlu0 %1735
    %v1737 = vmul.f32 %v1733, %v95
    %v1738 = vmul.f32 %v1736, %v95
    %v1739 = vadd.f32 %v1737, 1e-12
    %v1740 = vadd.f32 %v1738, 1e-12
    %v1741 = vrsqrt.pop %v1739
    %v1742 = vrsqrt.pop %v1740
    %v1743 = vmul.f32 %v1727, %v1741
    %v1744 = vmul.f32 %v1728, %v1742
    %v1746 = vlaneseq
    %v1747 = vshrl.u32 %v1746, 7
    %v1748 = vsub.s32 0, %v1747
    %v1749 = vrot.slane %v1717, %v1748
    %v1751 = vmul.f32 %v1743, %v1749
    %v1752 = vmul.f32 %v1744, %v1749
    %v1754 = vlaneseq
    %v1755 = vshrl.u32 %v1754, 7
    %v1756 = vsub.s32 0, %v1755
    %v1757 = vrot.slane %v1718, %v1756
    %v1759 = vadd.f32 %v1751, %v1757
    %v1760 = vadd.f32 %v1752, %v1757
    %v1761 = vld [vmem:[%s10] sm:$0xff]
    %v1762 = vld [vmem:[%s10 + $0x8] sm:$0xff]
    %v1763 = vld [vmem:[%s10 + $0x10] sm:$0xff]
    %v1764 = vld [vmem:[%s10 + $0x18] sm:$0xff]
    %v1765 = vld [vmem:[%s11] sm:$0x1]
    %v1767 = vlaneseq
    %v1768 = vshrl.u32 %v1767, 7
    %v1769 = vsub.s32 0, %v1768
    %v1770 = vrot.slane %v1765, %v1769
    %v1773 = vsel %vm88, %v1759, 0
    %v1776 = vsel %vm88, %v1760, 0
    %1778 = vmatprep.subr.mxu0 0.0
    %1779 = vmatpush1.msra.mxu0 %v1761
    %1780 = vmatprep.subr.mxu0 0.0
    %1781 = vmatpush1.msra.mxu0 %v1762
    %1782 = vmatprep.subr.mxu0 0.0
    %1783 = vmatpush1.msra.mxu0 %v1763
    %1784 = vmatprep.subr.mxu0 0.0
    %1785 = vmatpush1.msra.mxu0 %v1764
    %1786 = vmatprep.subr.mxu0 0.0
    %1787 = vmatpush1.msra.mxu0 0.0
    %1788 = vmatprep.subr.mxu0 0.0
    %1789 = vmatpush1.msra.mxu0 0.0
    %1790 = vmatprep.subr.mxu0 0.0
    %1791 = vmatpush1.msra.mxu0 0.0
    %1792 = vmatprep.subr.mxu0 0.0
    %1793 = vmatpush1.msra.mxu0 0.0
    %1794 = vmatprep.subr.mxu0 0.0
    %1795 = vmatpush1.msra.mxu0 0.0
    %1796 = vmatprep.subr.mxu0 0.0
    %1797 = vmatpush1.msra.mxu0 0.0
    %1798 = vmatprep.subr.mxu0 0.0
    %1799 = vmatpush1.msra.mxu0 0.0
    %1800 = vmatprep.subr.mxu0 0.0
    %1801 = vmatpush1.msra.mxu0 0.0
    %1802 = vmatprep.subr.mxu0 0.0
    %1803 = vmatpush1.msra.mxu0 0.0
    %1804 = vmatprep.subr.mxu0 0.0
    %1805 = vmatpush1.msra.mxu0 0.0
    %1806 = vmatprep.subr.mxu0 0.0
    %1807 = vmatpush1.msra.mxu0 0.0
    %1808 = vmatprep.subr.mxu0 0.0
    %1809 = vmatpush1.msra.mxu0 0.0
    %1810 = vmatprep.subr.mxu0 0.0
    %1811 = vmatpush1.msra.mxu0 0.0
    %1812 = vmatprep.subr.mxu0 0.0
    %1813 = vmatpush1.msra.mxu0 0.0
    %1814 = vmatprep.subr.mxu0 0.0
    %1815 = vmatpush1.msra.mxu0 0.0
    %1816 = vmatprep.subr.mxu0 0.0
    %1817 = vmatpush1.msra.mxu0 0.0
    %1818 = vmatprep.subr.mxu0 0.0
    %1819 = vmatpush1.msra.mxu0 0.0
    %1820 = vmatprep.subr.mxu0 0.0
    %1821 = vmatpush1.msra.mxu0 0.0
    %1822 = vmatprep.subr.mxu0 0.0
    %1823 = vmatpush1.msra.mxu0 0.0
    %1824 = vmatprep.subr.mxu0 0.0
    %1825 = vmatpush1.msra.mxu0 0.0
    %1826 = vmatprep.subr.mxu0 0.0
    %1827 = vmatpush1.msra.mxu0 0.0
    %1828 = vmatprep.subr.mxu0 0.0
    %1829 = vmatpush1.msra.mxu0 0.0
    %1830 = vmatprep.subr.mxu0 0.0
    %1831 = vmatpush1.msra.mxu0 0.0
    %1832 = vmatprep.subr.mxu0 0.0
    %1833 = vmatpush1.msra.mxu0 0.0
    %1834 = vmatprep.subr.mxu0 0.0
    %1835 = vmatpush1.msra.mxu0 0.0
    %1836 = vmatprep.subr.mxu0 0.0
    %1837 = vmatpush1.msra.mxu0 0.0
    %1838 = vmatprep.subr.mxu0 0.0
    %1839 = vmatpush1.msra.mxu0 0.0
    %1840 = vmatprep.subr.mxu0 0.0
    %1841 = vmatpush1.msra.mxu0 0.0
    %1842 = vmatprep.mubr.f32.mxu0 0.0
    %1843 = vmatmul.mubr.f32.gmra.mrb[0].mxu0 %v1773
    %v1844 = vpop.f32.mrb[0].mxu0
    %v1845 = vadd.f32 %v1770, %v1844
    %v1846 = vpop.f32.mrb[0].mxu0
    %1847 = vmatprep.mubr.f32.mxu0 0.0
    %1848 = vmatmul.mubr.f32.gmra.mrb[0].mxu0 %v1776
    %v1849 = vpop.f32.mrb[0].mxu0
    %v1850 = vadd.f32 %v1770, %v1849
    %v1851 = vpop.f32.mrb[0].mxu0
    %1852 = vdwg.mxu0
    %v1853 = vmul.f32 %v1845, %v1845
    %v1854 = vmul.f32 %v1850, %v1850
    %v1855 = vmul.f32 %v1845, %v1853
    %v1856 = vmul.f32 %v1850, %v1854
    %v1857 = vmul.f32 %v1855, 0.044715
    %v1858 = vmul.f32 %v1856, 0.044715
    %v1859 = vadd.f32 %v1845, %v1857
    %v1860 = vadd.f32 %v1850, %v1858
    %v1861 = vmul.f32 %v1859, 0.7978846
    %v1862 = vmul.f32 %v1860, 0.7978846
    %v1863 = vtanh.pop %v1861
    %v1864 = vtanh.pop %v1862
    %v1865 = vadd.f32 %v1863, 1.0
    %v1866 = vadd.f32 %v1864, 1.0
    %v1867 = vmul.f32 %v1865, 0.5
    %v1868 = vmul.f32 %v1866, 0.5
    %v1869 = vmul.f32 %v1845, %v1867
    %v1870 = vmul.f32 %v1850, %v1868
    %v1871 = vld [vmem:[%s12] sm:$0xff]
    %v1872 = vld [vmem:[%s12 + $0x8] sm:$0xff]
    %v1873 = vld [vmem:[%s12 + $0x10] sm:$0xff]
    %v1874 = vld [vmem:[%s12 + $0x18] sm:$0xff]
    %v1875 = vld [vmem:[%s12 + $0x20] sm:$0xff]
    %v1876 = vld [vmem:[%s12 + $0x28] sm:$0xff]
    %v1877 = vld [vmem:[%s12 + $0x30] sm:$0xff]
    %v1878 = vld [vmem:[%s12 + $0x38] sm:$0xff]
    %v1879 = vld [vmem:[%s13] sm:$0x1]
    %v1881 = vlaneseq
    %v1882 = vshrl.u32 %v1881, 7
    %v1883 = vsub.s32 0, %v1882
    %v1884 = vrot.slane %v1879, %v1883
    %vm1886 = vcmask 523264
    %v1888 = vsel %vm1886, %v1869, 0
    %v1891 = vsel %vm1886, %v1870, 0
    %1893 = vmatprep.subr.mxu0 0.0
    %1894 = vmatpush1.msra.mxu0 %v1871
    %1895 = vmatprep.subr.mxu0 0.0
    %1896 = vmatpush1.msra.mxu0 %v1872
    %1897 = vmatprep.subr.mxu0 0.0
    %1898 = vmatpush1.msra.mxu0 %v1873
    %1899 = vmatprep.subr.mxu0 0.0
    %1900 = vmatpush1.msra.mxu0 %v1874
    %1901 = vmatprep.subr.mxu0 0.0
    %1902 = vmatpush1.msra.mxu0 %v1875
    %1903 = vmatprep.subr.mxu0 0.0
    %1904 = vmatpush1.msra.mxu0 %v1876
    %1905 = vmatprep.subr.mxu0 0.0
    %1906 = vmatpush1.msra.mxu0 %v1877
    %1907 = vmatprep.subr.mxu0 0.0
    %1908 = vmatpush1.msra.mxu0 %v1878
    %1909 = vmatprep.subr.mxu0 0.0
    %1910 = vmatpush1.msra.mxu0 0.0
    %1911 = vmatprep.subr.mxu0 0.0
    %1912 = vmatpush1.msra.mxu0 0.0
    %1913 = vmatprep.subr.mxu0 0.0
    %1914 = vmatpush1.msra.mxu0 0.0
    %1915 = vmatprep.subr.mxu0 0.0
    %1916 = vmatpush1.msra.mxu0 0.0
    %1917 = vmatprep.subr.mxu0 0.0
    %1918 = vmatpush1.msra.mxu0 0.0
    %1919 = vmatprep.subr.mxu0 0.0
    %1920 = vmatpush1.msra.mxu0 0.0
    %1921 = vmatprep.subr.mxu0 0.0
    %1922 = vmatpush1.msra.mxu0 0.0
    %1923 = vmatprep.subr.mxu0 0.0
    %1924 = vmatpush1.msra.mxu0 0.0
    %1925 = vmatprep.subr.mxu0 0.0
    %1926 = vmatpush1.msra.mxu0 0.0
    %1927 = vmatprep.subr.mxu0 0.0
    %1928 = vmatpush1.msra.mxu0 0.0
    %1929 = vmatprep.subr.mxu0 0.0
    %1930 = vmatpush1.msra.mxu0 0.0
    %1931 = vmatprep.subr.mxu0 0.0
    %1932 = vmatpush1.msra.mxu0 0.0
    %1933 = vmatprep.subr.mxu0 0.0
    %1934 = vmatpush1.msra.mxu0 0.0
    %1935 = vmatprep.subr.mxu0 0.0
    %1936 = vmatpush1.msra.mxu0 0.0
    %1937 = vmatprep.subr.mxu0 0.0
    %1938 = vmatpush1.msra.mxu0 0.0
    %1939 = vmatprep.subr.mxu0 0.0
    %1940 = vmatpush1.msra.mxu0 0.0
    %1941 = vmatprep.subr.mxu0 0.0
    %1942 = vmatpush1.msra.mxu0 0.0
    %1943 = vmatprep.subr.mxu0 0.0
    %1944 = vmatpush1.msra.mxu0 0.0
    %1945 = vmatprep.subr.mxu0 0.0
    %1946 = vmatpush1.msra.mxu0 0.0
    %1947 = vmatprep.subr.mxu0 0.0
    %1948 = vmatpush1.msra.mxu0 0.0
    %1949 = vmatprep.subr.mxu0 0.0
    %1950 = vmatpush1.msra.mxu0 0.0
    %1951 = vmatprep.subr.mxu0 0.0
    %1952 = vmatpush1.msra.mxu0 0.0
    %1953 = vmatprep.subr.mxu0 0.0
    %1954 = vmatpush1.msra.mxu0 0.0
    %1955 = vmatprep.subr.mxu0 0.0
    %1956 = vmatpush1.msra.mxu0 0.0
    %1957 = vmatprep.mubr.f32.mxu0 0.0
    %1958 = vmatmul.mubr.f32.gmra.mrb[0].mxu0 %v1888
    %v1959 = vpop.f32.mrb[0].mxu0
    %v1960 = vadd.f32 %v1884, %v1959
    %v1961 = vpop.f32.mrb[0].mxu0
    %1962 = vmatprep.mubr.f32.mxu0 0.0
    %1963 = vmatmul.mubr.f32.gmra.mrb[0].mxu0 %v1891
    %v1964 = vpop.f32.mrb[0].mxu0
    %v1965 = vadd.f32 %v1884, %v1964
    %v1966 = vpop.f32.mrb[0].mxu0
    %1967 = vdwg.mxu0
    %v1968 = vadd.f32 %v1759, %v1960
    %v1969 = vadd.f32 %v1760, %v1965
    %v1970 = vld [vmem:[%s14] sm:$0x1]
    %v1971 = vld [vmem:[%s15] sm:$0x1]
    %v1972 = vsel %vm88, %v1968, 0.0
    %1973 = vadd.xlane.f32.xlu0 %v1972
    %v1974 = vpop.xlane.xlu0 %1973
    %v1975 = vsel %vm88, %v1969, 0.0
    %1976 = vadd.xlane.f32.xlu0 %v1975
    %v1977 = vpop.xlane.xlu0 %1976
    %v1978 = vmul.f32 %v1974, %v95
    %v1979 = vmul.f32 %v1977, %v95
    %v1980 = vsub.f32 %v1968, %v1978
    %v1981 = vsub.f32 %v1969, %v1979
    %v1982 = vmul.f32 %v1980, %v1980
    %v1983 = vmul.f32 %v1981, %v1981
    %v1984 = vsel %vm88, %v1982, 0.0
    %1985 = vadd.xlane.f32.xlu0 %v1984
    %v1986 = vpop.xlane.xlu0 %1985
    %v1987 = vsel %vm88, %v1983, 0.0
    %1988 = vadd.xlane.f32.xlu0 %v1987
    %v1989 = vpop.xlane.xlu0 %1988
    %v1990 = vmul.f32 %v1986, %v95
    %v1991 = vmul.f32 %v1989, %v95
    %v1992 = vadd.f32 %v1990, 1e-12
    %v1993 = vadd.f32 %v1991, 1e-12
    %v1994 = vrsqrt.pop %v1992
    %v1995 = vrsqrt.pop %v1993
    %v1996 = vmul.f32 %v1980, %v1994
    %v1997 = vmul.f32 %v1981, %v1995
    %v1999 = vlaneseq
    %v2000 = vshrl.u32 %v1999, 7
    %v2001 = vsub.s32 0, %v2000
    %v2002 = vrot.slane %v1970, %v2001
    %v2004 = vmul.f32 %v1996, %v2002
    %v2005 = vmul.f32 %v1997, %v2002
    %v2007 = vlaneseq
    %v2008 = vshrl.u32 %v2007, 7
    %v2009 = vsub.s32 0, %v2008
    %v2010 = vrot.slane %v1971, %v2009
    %v2012 = vadd.f32 %v2004, %v2010
    %v2013 = vadd.f32 %v2005, %v2010
    %s2014 = scalar_lea.vmem %s4, 32
    %v2015 = vld [vmem:[%s2014] sm:$0xff]
    %v2016 = vld [vmem:[%s2014 + $0x8] sm:$0xff]
    %v2017 = vld [vmem:[%s2014 + $0x10] sm:$0xff]
    %v2018 = vld [vmem:[%s2014 + $0x18] sm:$0xff]
    %s2019 = scalar_lea.vmem %s5, 1
    %v2020 = vld [vmem:[%s2019] sm:$0x1]
    %v2022 = vlaneseq
    %v2023 = vshrl.u32 %v2022, 7
    %v2024 = vsub.s32 0, %v2023
    %v2025 = vrot.slane %v2020, %v2024
    %v2028 = vsel %vm88, %v2012, 0
    %v2031 = vsel %vm88, %v2013, 0
    %2033 = vmatprep.subr.mxu0 0.0
    %2034 = vmatpush1.msra.mxu0 %v2015
    %2035 = vmatprep.subr.mxu0 0.0
    %2036 = vmatpush1.msra.mxu0 %v2016
    %2037 = vmatprep.subr.mxu0 0.0
    %2038 = vmatpush1.msra.mxu0 %v2017
    %2039 = vmatprep.subr.mxu0 0.0
    %2040 = vmatpush1.msra.mxu0 %v2018
    %2041 = vmatprep.subr.mxu0 0.0
    %2042 = vmatpush1.msra.mxu0 0.0
    %2043 = vmatprep.subr.mxu0 0.0
    %2044 = vmatpush1.msra.mxu0 0.0
    %2045 = vmatprep.subr.mxu0 0.0
    %2046 = vmatpush1.msra.mxu0 0.0
    %2047 = vmatprep.subr.mxu0 0.0
    %2048 = vmatpush1.msra.mxu0 0.0
    %2049 = vmatprep.subr.mxu0 0.0
    %2050 = vmatpush1.msra.mxu0 0.0
    %2051 = vmatprep.subr.mxu0 0.0
    %2052 = vmatpush1.msra.mxu0 0.0
    %2053 = vmatprep.subr.mxu0 0.0
    %2054 = vmatpush1.msra.mxu0 0.0
    %2055 = vmatprep.subr.mxu0 0.0
    %2056 = vmatpush1.msra.mxu0 0.0
    %2057 = vmatprep.subr.mxu0 0.0
    %2058 = vmatpush1.msra.mxu0 0.0
    %2059 = vmatprep.subr.mxu0 0.0
    %2060 = vmatpush1.msra.mxu0 0.0
    %2061 = vmatprep.subr.mxu0 0.0
    %2062 = vmatpush1.msra.mxu0 0.0
    %2063 = vmatprep.subr.mxu0 0.0
    %2064 = vmatpush1.msra.mxu0 0.0
    %2065 = vmatprep.subr.mxu0 0.0
    %2066 = vmatpush1.msra.mxu0 0.0
    %2067 = vmatprep.subr.mxu0 0.0
    %2068 = vmatpush1.msra.mxu0 0.0
    %2069 = vmatprep.subr.mxu0 0.0
    %2070 = vmatpush1.msra.mxu0 0.0
    %2071 = vmatprep.subr.mxu0 0.0
    %2072 = vmatpush1.msra.mxu0 0.0
    %2073 = vmatprep.subr.mxu0 0.0
    %2074 = vmatpush1.msra.mxu0 0.0
    %2075 = vmatprep.subr.mxu0 0.0
    %2076 = vmatpush1.msra.mxu0 0.0
    %2077 = vmatprep.subr.mxu0 0.0
    %2078 = vmatpush1.msra.mxu0 0.0
    %2079 = vmatprep.subr.mxu0 0.0
    %2080 = vmatpush1.msra.mxu0 0.0
    %2081 = vmatprep.subr.mxu0 0.0
    %2082 = vmatpush1.msra.mxu0 0.0
    %2083 = vmatprep.subr.mxu0 0.0
    %2084 = vmatpush1.msra.mxu0 0.0
    %2085 = vmatprep.subr.mxu0 0.0
    %2086 = vmatpush1.msra.mxu0 0.0
    %2087 = vmatprep.subr.mxu0 0.0
    %2088 = vmatpush1.msra.mxu0 0.0
    %2089 = vmatprep.subr.mxu0 0.0
    %2090 = vmatpush1.msra.mxu0 0.0
    %2091 = vmatprep.subr.mxu0 0.0
    %2092 = vmatpush1.msra.mxu0 0.0
    %2093 = vmatprep.subr.mxu0 0.0
    %2094 = vmatpush1.msra.mxu0 0.0
    %2095 = vmatprep.subr.mxu0 0.0
    %2096 = vmatpush1.msra.mxu0 0.0
    %2097 = vmatprep.mubr.f32.mxu0 0.0
    %2098 = vmatmul.mubr.f32.gmra.mrb[0].mxu0 %v2028
    %v2099 = vpop.f32.mrb[0].mxu0
    %v2100 = vadd.f32 %v2025, %v2099
    %v2101 = vpop.f32.mrb[0].mxu0
    %2102 = vmatprep.mubr.f32.mxu0 0.0
    %2103 = vmatmul.mubr.f32.gmra.mrb[0].mxu0 %v2031
    %v2104 = vpop.f32.mrb[0].mxu0
    %v2105 = vadd.f32 %v2025, %v2104
    %v2106 = vpop.f32.mrb[0].mxu0
    %2107 = vdwg.mxu0
    %2108 = vst.msk [vmem:[#allocation2] sm:$0xff] %vm226, %v2100
    %2109 = vst.msk [vmem:[#allocation2 + $0x8] sm:$0xff] %vm226, %v2105
    %v2110 = vld [vmem:[#allocation2] sm:$0xff]
    %2112 = vrot.lane.b32.xlu0 %v2110, 96
    %v2113 = vpop.permute.xlu0 %2112
    %v2114 = vsel %vm233, %v2110, 0
    %v2116 = vsel %vm233, %v2113, 0
    %2118 = vmatprep.subr.mxu0 0.0
    %2119 = vmatpush1.xpose.msra.mxu0 %v2116
    %2120 = vmatprep.subr.mxu0 0.0
    %2121 = vmatpush1.xpose.msra.mxu0 0.0
    %2122 = vmatprep.subr.mxu0 0.0
    %2123 = vmatpush1.xpose.msra.mxu0 0.0
    %2124 = vmatprep.subr.mxu0 0.0
    %2125 = vmatpush1.xpose.msra.mxu0 0.0
    %2126 = vmatprep.subr.mxu0 0.0
    %2127 = vmatpush1.xpose.msra.mxu0 0.0
    %2128 = vmatprep.subr.mxu0 0.0
    %2129 = vmatpush1.xpose.msra.mxu0 0.0
    %2130 = vmatprep.subr.mxu0 0.0
    %2131 = vmatpush1.xpose.msra.mxu0 0.0
    %2132 = vmatprep.subr.mxu0 0.0
    %2133 = vmatpush1.xpose.msra.mxu0 0.0
    %2134 = vmatprep.subr.mxu0 0.0
    %2135 = vmatpush1.xpose.msra.mxu0 0.0
    %2136 = vmatprep.subr.mxu0 0.0
    %2137 = vmatpush1.xpose.msra.mxu0 0.0
    %2138 = vmatprep.subr.mxu0 0.0
    %2139 = vmatpush1.xpose.msra.mxu0 0.0
    %2140 = vmatprep.subr.mxu0 0.0
    %2141 = vmatpush1.xpose.msra.mxu0 0.0
    %2142 = vmatprep.subr.mxu0 0.0
    %2143 = vmatpush1.xpose.msra.mxu0 0.0
    %2144 = vmatprep.subr.mxu0 0.0
    %2145 = vmatpush1.xpose.msra.mxu0 0.0
    %2146 = vmatprep.subr.mxu0 0.0
    %2147 = vmatpush1.xpose.msra.mxu0 0.0
    %2148 = vmatprep.subr.mxu0 0.0
    %2149 = vmatpush1.xpose.msra.mxu0 0.0
    %2150 = vmatprep.subr.mxu0 0.0
    %2151 = vmatpush1.xpose.msra.mxu0 0.0
    %2152 = vmatprep.subr.mxu0 0.0
    %2153 = vmatpush1.xpose.msra.mxu0 0.0
    %2154 = vmatprep.subr.mxu0 0.0
    %2155 = vmatpush1.xpose.msra.mxu0 0.0
    %2156 = vmatprep.subr.mxu0 0.0
    %2157 = vmatpush1.xpose.msra.mxu0 0.0
    %2158 = vmatprep.subr.mxu0 0.0
    %2159 = vmatpush1.xpose.msra.mxu0 0.0
    %2160 = vmatprep.subr.mxu0 0.0
    %2161 = vmatpush1.xpose.msra.mxu0 0.0
    %2162 = vmatprep.subr.mxu0 0.0
    %2163 = vmatpush1.xpose.msra.mxu0 0.0
    %2164 = vmatprep.subr.mxu0 0.0
    %2165 = vmatpush1.xpose.msra.mxu0 0.0
    %2166 = vmatprep.subr.mxu0 0.0
    %2167 = vmatpush1.xpose.msra.mxu0 0.0
    %2168 = vmatprep.subr.mxu0 0.0
    %2169 = vmatpush1.xpose.msra.mxu0 0.0
    %2170 = vmatprep.subr.mxu0 0.0
    %2171 = vmatpush1.xpose.msra.mxu0 0.0
    %2172 = vmatprep.subr.mxu0 0.0
    %2173 = vmatpush1.xpose.msra.mxu0 0.0
    %2174 = vmatprep.subr.mxu0 0.0
    %2175 = vmatpush1.xpose.msra.mxu0 0.0
    %2176 = vmatprep.subr.mxu0 0.0
    %2177 = vmatpush1.xpose.msra.mxu0 0.0
    %2178 = vmatprep.subr.mxu0 0.0
    %2179 = vmatpush1.xpose.msra.mxu0 0.0
    %2180 = vmatprep.subr.mxu0 0.0
    %2181 = vmatpush1.xpose.msra.mxu0 0.0
    %2182 = vmatprep.mubr.f32.mxu0 0.0
    %2183 = vmatmul.mubr.f32.gmra.mrb[0].mxu0 %v2114
    %v2184 = vpop.f32.mrb[0].mxu0
    %v2185 = vadd.f32 0.0, %v2184
    %v2186 = vpop.f32.mrb[0].mxu0
    %2187 = vdwg.mxu0
    %v2188 = vmul.f32 %v2185, 0.35355338
    %v2189 = vadd.f32 %v2188, %v312
    %v2190 = vsel %vm233, %v2189, -inf
    %2191 = vmax.xlane.f32.xlu0 %v2190
    %v2192 = vpop.xlane.xlu0 %2191
    %v2193 = vsub.f32 %v2189, %v2192
    %v2194 = vmul.f32 %v2193, 1.442695
    %v2195 = vpow.pop %v2194
    %v2196 = vsel %vm233, %v2195, 0.0
    %2197 = vadd.xlane.f32.xlu0 %v2196
    %v2198 = vpop.xlane.xlu0 %2197
    %v2199 = vrcp.pop %v2198
    %v2200 = vmul.f32 %v2195, %v2199
    %2201 = vrot.lane.b32.xlu0 %v2110, 64
    %v2202 = vpop.permute.xlu0 %2201
    %v2205 = vsel %vm233, %v2200, 0
    %2207 = vmatprep.subr.mxu0 0.0
    %2208 = vmatpush1.msra.mxu0 %v2202
    %2209 = vmatprep.subr.mxu0 0.0
    %2210 = vmatpush1.msra.mxu0 0.0
    %2211 = vmatprep.subr.mxu0 0.0
    %2212 = vmatpush1.msra.mxu0 0.0
    %2213 = vmatprep.subr.mxu0 0.0
    %2214 = vmatpush1.msra.mxu0 0.0
    %2215 = vmatprep.subr.mxu0 0.0
    %2216 = vmatpush1.msra.mxu0 0.0
    %2217 = vmatprep.subr.mxu0 0.0
    %2218 = vmatpush1.msra.mxu0 0.0
    %2219 = vmatprep.subr.mxu0 0.0
    %2220 = vmatpush1.msra.mxu0 0.0
    %2221 = vmatprep.subr.mxu0 0.0
    %2222 = vmatpush1.msra.mxu0 0.0
    %2223 = vmatprep.subr.mxu0 0.0
    %2224 = vmatpush1.msra.mxu0 0.0
    %2225 = vmatprep.subr.mxu0 0.0
    %2226 = vmatpush1.msra.mxu0 0.0
    %2227 = vmatprep.subr.mxu0 0.0
    %2228 = vmatpush1.msra.mxu0 0.0
    %2229 = vmatprep.subr.mxu0 0.0
    %2230 = vmatpush1.msra.mxu0 0.0
    %2231 = vmatprep.subr.mxu0 0.0
    %2232 = vmatpush1.msra.mxu0 0.0
    %2233 = vmatprep.subr.mxu0 0.0
    %2234 = vmatpush1.msra.mxu0 0.0
    %2235 = vmatprep.subr.mxu0 0.0
    %2236 = vmatpush1.msra.mxu0 0.0
    %2237 = vmatprep.subr.mxu0 0.0
    %2238 = vmatpush1.msra.mxu0 0.0
    %2239 = vmatprep.subr.mxu0 0.0
    %2240 = vmatpush1.msra.mxu0 0.0
    %2241 = vmatprep.subr.mxu0 0.0
    %2242 = vmatpush1.msra.mxu0 0.0
    %2243 = vmatprep.subr.mxu0 0.0
    %2244 = vmatpush1.msra.mxu0 0.0
    %2245 = vmatprep.subr.mxu0 0.0
    %2246 = vmatpush1.msra.mxu0 0.0
    %2247 = vmatprep.subr.mxu0 0.0
    %2248 = vmatpush1.msra.mxu0 0.0
    %2249 = vmatprep.subr.mxu0 0.0
    %2250 = vmatpush1.msra.mxu0 0.0
    %2251 = vmatprep.subr.mxu0 0.0
    %2252 = vmatpush1.msra.mxu0 0.0
    %2253 = vmatprep.subr.mxu0 0.0
    %2254 = vmatpush1.msra.mxu0 0.0
    %2255 = vmatprep.subr.mxu0 0.0
    %2256 = vmatpush1.msra.mxu0 0.0
    %2257 = vmatprep.subr.mxu0 0.0
    %2258 = vmatpush1.msra.mxu0 0.0
    %2259 = vmatprep.subr.mxu0 0.0
    %2260 = vmatpush1.msra.mxu0 0.0
    %2261 = vmatprep.subr.mxu0 0.0
    %2262 = vmatpush1.msra.mxu0 0.0
    %2263 = vmatprep.subr.mxu0 0.0
    %2264 = vmatpush1.msra.mxu0 0.0
    %2265 = vmatprep.subr.mxu0 0.0
    %2266 = vmatpush1.msra.mxu0 0.0
    %2267 = vmatprep.subr.mxu0 0.0
    %2268 = vmatpush1.msra.mxu0 0.0
    %2269 = vmatprep.subr.mxu0 0.0
    %2270 = vmatpush1.msra.mxu0 0.0
    %2271 = vmatprep.mubr.f32.mxu0 0.0
    %2272 = vmatmul.mubr.f32.gmra.mrb[0].mxu0 %v2205
    %v2273 = vpop.f32.mrb[0].mxu0
    %v2274 = vadd.f32 0.0, %v2273
    %v2275 = vpop.f32.mrb[0].mxu0
    %2276 = vdwg.mxu0
    %2277 = vst.msk [vmem:[#allocation3] sm:$0xff] %vm233, %v2274
    %v2278 = vld [vmem:[#allocation2] sm:$0xff]
    %2280 = vrot.lane.b32.xlu0 %v2278, 120
    %v2281 = vpop.permute.xlu0 %2280
    %2282 = vrot.lane.b32.xlu0 %v2278, 88
    %v2283 = vpop.permute.xlu0 %2282
    %v2284 = vsel %vm233, %v2281, 0
    %v2286 = vsel %vm233, %v2283, 0
    %2288 = vmatprep.subr.mxu0 0.0
    %2289 = vmatpush1.xpose.msra.mxu0 %v2286
    %2290 = vmatprep.subr.mxu0 0.0
    %2291 = vmatpush1.xpose.msra.mxu0 0.0
    %2292 = vmatprep.subr.mxu0 0.0
    %2293 = vmatpush1.xpose.msra.mxu0 0.0
    %2294 = vmatprep.subr.mxu0 0.0
    %2295 = vmatpush1.xpose.msra.mxu0 0.0
    %2296 = vmatprep.subr.mxu0 0.0
    %2297 = vmatpush1.xpose.msra.mxu0 0.0
    %2298 = vmatprep.subr.mxu0 0.0
    %2299 = vmatpush1.xpose.msra.mxu0 0.0
    %2300 = vmatprep.subr.mxu0 0.0
    %2301 = vmatpush1.xpose.msra.mxu0 0.0
    %2302 = vmatprep.subr.mxu0 0.0
    %2303 = vmatpush1.xpose.msra.mxu0 0.0
    %2304 = vmatprep.subr.mxu0 0.0
    %2305 = vmatpush1.xpose.msra.mxu0 0.0
    %2306 = vmatprep.subr.mxu0 0.0
    %2307 = vmatpush1.xpose.msra.mxu0 0.0
    %2308 = vmatprep.subr.mxu0 0.0
    %2309 = vmatpush1.xpose.msra.mxu0 0.0
    %2310 = vmatprep.subr.mxu0 0.0
    %2311 = vmatpush1.xpose.msra.mxu0 0.0
    %2312 = vmatprep.subr.mxu0 0.0
    %2313 = vmatpush1.xpose.msra.mxu0 0.0
    %2314 = vmatprep.subr.mxu0 0.0
    %2315 = vmatpush1.xpose.msra.mxu0 0.0
    %2316 = vmatprep.subr.mxu0 0.0
    %2317 = vmatpush1.xpose.msra.mxu0 0.0
    %2318 = vmatprep.subr.mxu0 0.0
    %2319 = vmatpush1.xpose.msra.mxu0 0.0
    %2320 = vmatprep.subr.mxu0 0.0
    %2321 = vmatpush1.xpose.msra.mxu0 0.0
    %2322 = vmatprep.subr.mxu0 0.0
    %2323 = vmatpush1.xpose.msra.mxu0 0.0
    %2324 = vmatprep.subr.mxu0 0.0
    %2325 = vmatpush1.xpose.msra.mxu0 0.0
    %2326 = vmatprep.subr.mxu0 0.0
    %2327 = vmatpush1.xpose.msra.mxu0 0.0
    %2328 = vmatprep.subr.mxu0 0.0
    %2329 = vmatpush1.xpose.msra.mxu0 0.0
    %2330 = vmatprep.subr.mxu0 0.0
    %2331 = vmatpush1.xpose.msra.mxu0 0.0
    %2332 = vmatprep.subr.mxu0 0.0
    %2333 = vmatpush1.xpose.msra.mxu0 0.0
    %2334 = vmatprep.subr.mxu0 0.0
    %2335 = vmatpush1.xpose.msra.mxu0 0.0
    %2336 = vmatprep.subr.mxu0 0.0
    %2337 = vmatpush1.xpose.msra.mxu0 0.0
    %2338 = vmatprep.subr.mxu0 0.0
    %2339 = vmatpush1.xpose.msra.mxu0 0.0
    %2340 = vmatprep.subr.mxu0 0.0
    %2341 = vmatpush1.xpose.msra.mxu0 0.0
    %2342 = vmatprep.subr.mxu0 0.0
    %2343 = vmatpush1.xpose.msra.mxu0 0.0
    %2344 = vmatprep.subr.mxu0 0.0
    %2345 = vmatpush1.xpose.msra.mxu0 0.0
    %2346 = vmatprep.subr.mxu0 0.0
    %2347 = vmatpush1.xpose.msra.mxu0 0.0
    %2348 = vmatprep.subr.mxu0 0.0
    %2349 = vmatpush1.xpose.msra.mxu0 0.0
    %2350 = vmatprep.subr.mxu0 0.0
    %2351 = vmatpush1.xpose.msra.mxu0 0.0
    %2352 = vmatprep.mubr.f32.mxu0 0.0
    %2353 = vmatmul.mubr.f32.gmra.mrb[0].mxu0 %v2284
    %v2354 = vpop.f32.mrb[0].mxu0
    %v2355 = vadd.f32 0.0, %v2354
    %v2356 = vpop.f32.mrb[0].mxu0
    %2357 = vdwg.mxu0
    %v2358 = vmul.f32 %v2355, 0.35355338
    %v2359 = vadd.f32 %v2358, %v312
    %v2360 = vsel %vm233, %v2359, -inf
    %2361 = vmax.xlane.f32.xlu0 %v2360
    %v2362 = vpop.xlane.xlu0 %2361
    %v2363 = vsub.f32 %v2359, %v2362
    %v2364 = vmul.f32 %v2363, 1.442695
    %v2365 = vpow.pop %v2364
    %v2366 = vsel %vm233, %v2365, 0.0
    %2367 = vadd.xlane.f32.xlu0 %v2366
    %v2368 = vpop.xlane.xlu0 %2367
    %v2369 = vrcp.pop %v2368
    %v2370 = vmul.f32 %v2365, %v2369
    %2371 = vrot.lane.b32.xlu0 %v2278, 56
    %v2372 = vpop.permute.xlu0 %2371
    %v2375 = vsel %vm233, %v2370, 0
    %2377 = vmatprep.subr.mxu0 0.0
    %2378 = vmatpush1.msra.mxu0 %v2372
    %2379 = vmatprep.subr.mxu0 0.0
    %2380 = vmatpush1.msra.mxu0 0.0
    %2381 = vmatprep.subr.mxu0 0.0
    %2382 = vmatpush1.msra.mxu0 0.0
    %2383 = vmatprep.subr.mxu0 0.0
    %2384 = vmatpush1.msra.mxu0 0.0
    %2385 = vmatprep.subr.mxu0 0.0
    %2386 = vmatpush1.msra.mxu0 0.0
    %2387 = vmatprep.subr.mxu0 0.0
    %2388 = vmatpush1.msra.mxu0 0.0
    %2389 = vmatprep.subr.mxu0 0.0
    %2390 = vmatpush1.msra.mxu0 0.0
    %2391 = vmatprep.subr.mxu0 0.0
    %2392 = vmatpush1.msra.mxu0 0.0
    %2393 = vmatprep.subr.mxu0 0.0
    %2394 = vmatpush1.msra.mxu0 0.0
    %2395 = vmatprep.subr.mxu0 0.0
    %2396 = vmatpush1.msra.mxu0 0.0
    %2397 = vmatprep.subr.mxu0 0.0
    %2398 = vmatpush1.msra.mxu0 0.0
    %2399 = vmatprep.subr.mxu0 0.0
    %2400 = vmatpush1.msra.mxu0 0.0
    %2401 = vmatprep.subr.mxu0 0.0
    %2402 = vmatpush1.msra.mxu0 0.0
    %2403 = vmatprep.subr.mxu0 0.0
    %2404 = vmatpush1.msra.mxu0 0.0
    %2405 = vmatprep.subr.mxu0 0.0
    %2406 = vmatpush1.msra.mxu0 0.0
    %2407 = vmatprep.subr.mxu0 0.0
    %2408 = vmatpush1.msra.mxu0 0.0
    %2409 = vmatprep.subr.mxu0 0.0
    %2410 = vmatpush1.msra.mxu0 0.0
    %2411 = vmatprep.subr.mxu0 0.0
    %2412 = vmatpush1.msra.mxu0 0.0
    %2413 = vmatprep.subr.mxu0 0.0
    %2414 = vmatpush1.msra.mxu0 0.0
    %2415 = vmatprep.subr.mxu0 0.0
    %2416 = vmatpush1.msra.mxu0 0.0
    %2417 = vmatprep.subr.mxu0 0.0
    %2418 = vmatpush1.msra.mxu0 0.0
    %2419 = vmatprep.subr.mxu0 0.0
    %2420 = vmatpush1.msra.mxu0 0.0
    %2421 = vmatprep.subr.mxu0 0.0
    %2422 = vmatpush1.msra.mxu0 0.0
    %2423 = vmatprep.subr.mxu0 0.0
    %2424 = vmatpush1.msra.mxu0 0.0
    %2425 = vmatprep.subr.mxu0 0.0
    %2426 = vmatpush1.msra.mxu0 0.0
    %2427 = vmatprep.subr.mxu0 0.0
    %2428 = vmatpush1.msra.mxu0 0.0
    %2429 = vmatprep.subr.mxu0 0.0
    %2430 = vmatpush1.msra.mxu0 0.0
    %2431 = vmatprep.subr.mxu0 0.0
    %2432 = vmatpush1.msra.mxu0 0.0
    %2433 = vmatprep.subr.mxu0 0.0
    %2434 = vmatpush1.msra.mxu0 0.0
    %2435 = vmatprep.subr.mxu0 0.0
    %2436 = vmatpush1.msra.mxu0 0.0
    %2437 = vmatprep.subr.mxu0 0.0
    %2438 = vmatpush1.msra.mxu0 0.0
    %2439 = vmatprep.subr.mxu0 0.0
    %2440 = vmatpush1.msra.mxu0 0.0
    %2441 = vmatprep.mubr.f32.mxu0 0.0
    %2442 = vmatmul.mubr.f32.gmra.mrb[0].mxu0 %v2375
    %v2443 = vpop.f32.mrb[0].mxu0
    %v2444 = vadd.f32 0.0, %v2443
    %v2445 = vpop.f32.mrb[0].mxu0
    %2446 = vdwg.mxu0
    %2448 = vrot.lane.b32.xlu0 %v2444, 8
    %v2449 = vpop.permute.xlu0 %2448
    %2451 = vst.msk [vmem:[#allocation3] sm:$0xff] %vm575, %v2449
    %v2452 = vld [vmem:[#allocation2] sm:$0xff]
    %2454 = vrot.lane.b32.xlu0 %v2452, 112
    %v2455 = vpop.permute.xlu0 %2454
    %2456 = vrot.lane.b32.xlu0 %v2452, 80
    %v2457 = vpop.permute.xlu0 %2456
    %v2458 = vsel %vm233, %v2455, 0
    %v2460 = vsel %vm233, %v2457, 0
    %2462 = vmatprep.subr.mxu0 0.0
    %2463 = vmatpush1.xpose.msra.mxu0 %v2460
    %2464 = vmatprep.subr.mxu0 0.0
    %2465 = vmatpush1.xpose.msra.mxu0 0.0
    %2466 = vmatprep.subr.mxu0 0.0
    %2467 = vmatpush1.xpose.msra.mxu0 0.0
    %2468 = vmatprep.subr.mxu0 0.0
    %2469 = vmatpush1.xpose.msra.mxu0 0.0
    %2470 = vmatprep.subr.mxu0 0.0
    %2471 = vmatpush1.xpose.msra.mxu0 0.0
    %2472 = vmatprep.subr.mxu0 0.0
    %2473 = vmatpush1.xpose.msra.mxu0 0.0
    %2474 = vmatprep.subr.mxu0 0.0
    %2475 = vmatpush1.xpose.msra.mxu0 0.0
    %2476 = vmatprep.subr.mxu0 0.0
    %2477 = vmatpush1.xpose.msra.mxu0 0.0
    %2478 = vmatprep.subr.mxu0 0.0
    %2479 = vmatpush1.xpose.msra.mxu0 0.0
    %2480 = vmatprep.subr.mxu0 0.0
    %2481 = vmatpush1.xpose.msra.mxu0 0.0
    %2482 = vmatprep.subr.mxu0 0.0
    %2483 = vmatpush1.xpose.msra.mxu0 0.0
    %2484 = vmatprep.subr.mxu0 0.0
    %2485 = vmatpush1.xpose.msra.mxu0 0.0
    %2486 = vmatprep.subr.mxu0 0.0
    %2487 = vmatpush1.xpose.msra.mxu0 0.0
    %2488 = vmatprep.subr.mxu0 0.0
    %2489 = vmatpush1.xpose.msra.mxu0 0.0
    %2490 = vmatprep.subr.mxu0 0.0
    %2491 = vmatpush1.xpose.msra.mxu0 0.0
    %2492 = vmatprep.subr.mxu0 0.0
    %2493 = vmatpush1.xpose.msra.mxu0 0.0
    %2494 = vmatprep.subr.mxu0 0.0
    %2495 = vmatpush1.xpose.msra.mxu0 0.0
    %2496 = vmatprep.subr.mxu0 0.0
    %2497 = vmatpush1.xpose.msra.mxu0 0.0
    %2498 = vmatprep.subr.mxu0 0.0
    %2499 = vmatpush1.xpose.msra.mxu0 0.0
    %2500 = vmatprep.subr.mxu0 0.0
    %2501 = vmatpush1.xpose.msra.mxu0 0.0
    %2502 = vmatprep.subr.mxu0 0.0
    %2503 = vmatpush1.xpose.msra.mxu0 0.0
    %2504 = vmatprep.subr.mxu0 0.0
    %2505 = vmatpush1.xpose.msra.mxu0 0.0
    %2506 = vmatprep.subr.mxu0 0.0
    %2507 = vmatpush1.xpose.msra.mxu0 0.0
    %2508 = vmatprep.subr.mxu0 0.0
    %2509 = vmatpush1.xpose.msra.mxu0 0.0
    %2510 = vmatprep.subr.mxu0 0.0
    %2511 = vmatpush1.xpose.msra.mxu0 0.0
    %2512 = vmatprep.subr.mxu0 0.0
    %2513 = vmatpush1.xpose.msra.mxu0 0.0
    %2514 = vmatprep.subr.mxu0 0.0
    %2515 = vmatpush1.xpose.msra.mxu0 0.0
    %2516 = vmatprep.subr.mxu0 0.0
    %2517 = vmatpush1.xpose.msra.mxu0 0.0
    %2518 = vmatprep.subr.mxu0 0.0
    %2519 = vmatpush1.xpose.msra.mxu0 0.0
    %2520 = vmatprep.subr.mxu0 0.0
    %2521 = vmatpush1.xpose.msra.mxu0 0.0
    %2522 = vmatprep.subr.mxu0 0.0
    %2523 = vmatpush1.xpose.msra.mxu0 0.0
    %2524 = vmatprep.subr.mxu0 0.0
    %2525 = vmatpush1.xpose.msra.mxu0 0.0
    %2526 = vmatprep.mubr.f32.mxu0 0.0
    %2527 = vmatmul.mubr.f32.gmra.mrb[0].mxu0 %v2458
    %v2528 = vpop.f32.mrb[0].mxu0
    %v2529 = vadd.f32 0.0, %v2528
    %v2530 = vpop.f32.mrb[0].mxu0
    %2531 = vdwg.mxu0
    %v2532 = vmul.f32 %v2529, 0.35355338
    %v2533 = vadd.f32 %v2532, %v312
    %v2534 = vsel %vm233, %v2533, -inf
    %2535 = vmax.xlane.f32.xlu0 %v2534
    %v2536 = vpop.xlane.xlu0 %2535
    %v2537 = vsub.f32 %v2533, %v2536
    %v2538 = vmul.f32 %v2537, 1.442695
    %v2539 = vpow.pop %v2538
    %v2540 = vsel %vm233, %v2539, 0.0
    %2541 = vadd.xlane.f32.xlu0 %v2540
    %v2542 = vpop.xlane.xlu0 %2541
    %v2543 = vrcp.pop %v2542
    %v2544 = vmul.f32 %v2539, %v2543
    %2545 = vrot.lane.b32.xlu0 %v2452, 48
    %v2546 = vpop.permute.xlu0 %2545
    %v2549 = vsel %vm233, %v2544, 0
    %2551 = vmatprep.subr.mxu0 0.0
    %2552 = vmatpush1.msra.mxu0 %v2546
    %2553 = vmatprep.subr.mxu0 0.0
    %2554 = vmatpush1.msra.mxu0 0.0
    %2555 = vmatprep.subr.mxu0 0.0
    %2556 = vmatpush1.msra.mxu0 0.0
    %2557 = vmatprep.subr.mxu0 0.0
    %2558 = vmatpush1.msra.mxu0 0.0
    %2559 = vmatprep.subr.mxu0 0.0
    %2560 = vmatpush1.msra.mxu0 0.0
    %2561 = vmatprep.subr.mxu0 0.0
    %2562 = vmatpush1.msra.mxu0 0.0
    %2563 = vmatprep.subr.mxu0 0.0
    %2564 = vmatpush1.msra.mxu0 0.0
    %2565 = vmatprep.subr.mxu0 0.0
    %2566 = vmatpush1.msra.mxu0 0.0
    %2567 = vmatprep.subr.mxu0 0.0
    %2568 = vmatpush1.msra.mxu0 0.0
    %2569 = vmatprep.subr.mxu0 0.0
    %2570 = vmatpush1.msra.mxu0 0.0
    %2571 = vmatprep.subr.mxu0 0.0
    %2572 = vmatpush1.msra.mxu0 0.0
    %2573 = vmatprep.subr.mxu0 0.0
    %2574 = vmatpush1.msra.mxu0 0.0
    %2575 = vmatprep.subr.mxu0 0.0
    %2576 = vmatpush1.msra.mxu0 0.0
    %2577 = vmatprep.subr.mxu0 0.0
    %2578 = vmatpush1.msra.mxu0 0.0
    %2579 = vmatprep.subr.mxu0 0.0
    %2580 = vmatpush1.msra.mxu0 0.0
    %2581 = vmatprep.subr.mxu0 0.0
    %2582 = vmatpush1.msra.mxu0 0.0
    %2583 = vmatprep.subr.mxu0 0.0
    %2584 = vmatpush1.msra.mxu0 0.0
    %2585 = vmatprep.subr.mxu0 0.0
    %2586 = vmatpush1.msra.mxu0 0.0
    %2587 = vmatprep.subr.mxu0 0.0
    %2588 = vmatpush1.msra.mxu0 0.0
    %2589 = vmatprep.subr.mxu0 0.0
    %2590 = vmatpush1.msra.mxu0 0.0
    %2591 = vmatprep.subr.mxu0 0.0
    %2592 = vmatpush1.msra.mxu0 0.0
    %2593 = vmatprep.subr.mxu0 0.0
    %2594 = vmatpush1.msra.mxu0 0.0
    %2595 = vmatprep.subr.mxu0 0.0
    %2596 = vmatpush1.msra.mxu0 0.0
    %2597 = vmatprep.subr.mxu0 0.0
    %2598 = vmatpush1.msra.mxu0 0.0
    %2599 = vmatprep.subr.mxu0 0.0
    %2600 = vmatpush1.msra.mxu0 0.0
    %2601 = vmatprep.subr.mxu0 0.0
    %2602 = vmatpush1.msra.mxu0 0.0
    %2603 = vmatprep.subr.mxu0 0.0
    %2604 = vmatpush1.msra.mxu0 0.0
    %2605 = vmatprep.subr.mxu0 0.0
    %2606 = vmatpush1.msra.mxu0 0.0
    %2607 = vmatprep.subr.mxu0 0.0
    %2608 = vmatpush1.msra.mxu0 0.0
    %2609 = vmatprep.subr.mxu0 0.0
    %2610 = vmatpush1.msra.mxu0 0.0
    %2611 = vmatprep.subr.mxu0 0.0
    %2612 = vmatpush1.msra.mxu0 0.0
    %2613 = vmatprep.subr.mxu0 0.0
    %2614 = vmatpush1.msra.mxu0 0.0
    %2615 = vmatprep.mubr.f32.mxu0 0.0
    %2616 = vmatmul.mubr.f32.gmra.mrb[0].mxu0 %v2549
    %v2617 = vpop.f32.mrb[0].mxu0
    %v2618 = vadd.f32 0.0, %v2617
    %v2619 = vpop.f32.mrb[0].mxu0
    %2620 = vdwg.mxu0
    %2622 = vrot.lane.b32.xlu0 %v2618, 16
    %v2623 = vpop.permute.xlu0 %2622
    %2625 = vst.msk [vmem:[#allocation3] sm:$0xff] %vm750, %v2623
    %v2626 = vld [vmem:[#allocation2] sm:$0xff]
    %2628 = vrot.lane.b32.xlu0 %v2626, 104
    %v2629 = vpop.permute.xlu0 %2628
    %2630 = vrot.lane.b32.xlu0 %v2626, 72
    %v2631 = vpop.permute.xlu0 %2630
    %v2632 = vsel %vm233, %v2629, 0
    %v2634 = vsel %vm233, %v2631, 0
    %2636 = vmatprep.subr.mxu0 0.0
    %2637 = vmatpush1.xpose.msra.mxu0 %v2634
    %2638 = vmatprep.subr.mxu0 0.0
    %2639 = vmatpush1.xpose.msra.mxu0 0.0
    %2640 = vmatprep.subr.mxu0 0.0
    %2641 = vmatpush1.xpose.msra.mxu0 0.0
    %2642 = vmatprep.subr.mxu0 0.0
    %2643 = vmatpush1.xpose.msra.mxu0 0.0
    %2644 = vmatprep.subr.mxu0 0.0
    %2645 = vmatpush1.xpose.msra.mxu0 0.0
    %2646 = vmatprep.subr.mxu0 0.0
    %2647 = vmatpush1.xpose.msra.mxu0 0.0
    %2648 = vmatprep.subr.mxu0 0.0
    %2649 = vmatpush1.xpose.msra.mxu0 0.0
    %2650 = vmatprep.subr.mxu0 0.0
    %2651 = vmatpush1.xpose.msra.mxu0 0.0
    %2652 = vmatprep.subr.mxu0 0.0
    %2653 = vmatpush1.xpose.msra.mxu0 0.0
    %2654 = vmatprep.subr.mxu0 0.0
    %2655 = vmatpush1.xpose.msra.mxu0 0.0
    %2656 = vmatprep.subr.mxu0 0.0
    %2657 = vmatpush1.xpose.msra.mxu0 0.0
    %2658 = vmatprep.subr.mxu0 0.0
    %2659 = vmatpush1.xpose.msra.mxu0 0.0
    %2660 = vmatprep.subr.mxu0 0.0
    %2661 = vmatpush1.xpose.msra.mxu0 0.0
    %2662 = vmatprep.subr.mxu0 0.0
    %2663 = vmatpush1.xpose.msra.mxu0 0.0
    %2664 = vmatprep.subr.mxu0 0.0
    %2665 = vmatpush1.xpose.msra.mxu0 0.0
    %2666 = vmatprep.subr.mxu0 0.0
    %2667 = vmatpush1.xpose.msra.mxu0 0.0
    %2668 = vmatprep.subr.mxu0 0.0
    %2669 = vmatpush1.xpose.msra.mxu0 0.0
    %2670 = vmatprep.subr.mxu0 0.0
    %2671 = vmatpush1.xpose.msra.mxu0 0.0
    %2672 = vmatprep.subr.mxu0 0.0
    %2673 = vmatpush1.xpose.msra.mxu0 0.0
    %2674 = vmatprep.subr.mxu0 0.0
    %2675 = vmatpush1.xpose.msra.mxu0 0.0
    %2676 = vmatprep.subr.mxu0 0.0
    %2677 = vmatpush1.xpose.msra.mxu0 0.0
    %2678 = vmatprep.subr.mxu0 0.0
    %2679 = vmatpush1.xpose.msra.mxu0 0.0
    %2680 = vmatprep.subr.mxu0 0.0
    %2681 = vmatpush1.xpose.msra.mxu0 0.0
    %2682 = vmatprep.subr.mxu0 0.0
    %2683 = vmatpush1.xpose.msra.mxu0 0.0
    %2684 = vmatprep.subr.mxu0 0.0
    %2685 = vmatpush1.xpose.msra.mxu0 0.0
    %2686 = vmatprep.subr.mxu0 0.0
    %2687 = vmatpush1.xpose.msra.mxu0 0.0
    %2688 = vmatprep.subr.mxu0 0.0
    %2689 = vmatpush1.xpose.msra.mxu0 0.0
    %2690 = vmatprep.subr.mxu0 0.0
    %2691 = vmatpush1.xpose.msra.mxu0 0.0
    %2692 = vmatprep.subr.mxu0 0.0
    %2693 = vmatpush1.xpose.msra.mxu0 0.0
    %2694 = vmatprep.subr.mxu0 0.0
    %2695 = vmatpush1.xpose.msra.mxu0 0.0
    %2696 = vmatprep.subr.mxu0 0.0
    %2697 = vmatpush1.xpose.msra.mxu0 0.0
    %2698 = vmatprep.subr.mxu0 0.0
    %2699 = vmatpush1.xpose.msra.mxu0 0.0
    %2700 = vmatprep.mubr.f32.mxu0 0.0
    %2701 = vmatmul.mubr.f32.gmra.mrb[0].mxu0 %v2632
    %v2702 = vpop.f32.mrb[0].mxu0
    %v2703 = vadd.f32 0.0, %v2702
    %v2704 = vpop.f32.mrb[0].mxu0
    %2705 = vdwg.mxu0
    %v2706 = vmul.f32 %v2703, 0.35355338
    %v2707 = vadd.f32 %v2706, %v312
    %v2708 = vsel %vm233, %v2707, -inf
    %2709 = vmax.xlane.f32.xlu0 %v2708
    %v2710 = vpop.xlane.xlu0 %2709
    %v2711 = vsub.f32 %v2707, %v2710
    %v2712 = vmul.f32 %v2711, 1.442695
    %v2713 = vpow.pop %v2712
    %v2714 = vsel %vm233, %v2713, 0.0
    %2715 = vadd.xlane.f32.xlu0 %v2714
    %v2716 = vpop.xlane.xlu0 %2715
    %v2717 = vrcp.pop %v2716
    %v2718 = vmul.f32 %v2713, %v2717
    %2719 = vrot.lane.b32.xlu0 %v2626, 40
    %v2720 = vpop.permute.xlu0 %2719
    %v2723 = vsel %vm233, %v2718, 0
    %2725 = vmatprep.subr.mxu0 0.0
    %2726 = vmatpush1.msra.mxu0 %v2720
    %2727 = vmatprep.subr.mxu0 0.0
    %2728 = vmatpush1.msra.mxu0 0.0
    %2729 = vmatprep.subr.mxu0 0.0
    %2730 = vmatpush1.msra.mxu0 0.0
    %2731 = vmatprep.subr.mxu0 0.0
    %2732 = vmatpush1.msra.mxu0 0.0
    %2733 = vmatprep.subr.mxu0 0.0
    %2734 = vmatpush1.msra.mxu0 0.0
    %2735 = vmatprep.subr.mxu0 0.0
    %2736 = vmatpush1.msra.mxu0 0.0
    %2737 = vmatprep.subr.mxu0 0.0
    %2738 = vmatpush1.msra.mxu0 0.0
    %2739 = vmatprep.subr.mxu0 0.0
    %2740 = vmatpush1.msra.mxu0 0.0
    %2741 = vmatprep.subr.mxu0 0.0
    %2742 = vmatpush1.msra.mxu0 0.0
    %2743 = vmatprep.subr.mxu0 0.0
    %2744 = vmatpush1.msra.mxu0 0.0
    %2745 = vmatprep.subr.mxu0 0.0
    %2746 = vmatpush1.msra.mxu0 0.0
    %2747 = vmatprep.subr.mxu0 0.0
    %2748 = vmatpush1.msra.mxu0 0.0
    %2749 = vmatprep.subr.mxu0 0.0
    %2750 = vmatpush1.msra.mxu0 0.0
    %2751 = vmatprep.subr.mxu0 0.0
    %2752 = vmatpush1.msra.mxu0 0.0
    %2753 = vmatprep.subr.mxu0 0.0
    %2754 = vmatpush1.msra.mxu0 0.0
    %2755 = vmatprep.subr.mxu0 0.0
    %2756 = vmatpush1.msra.mxu0 0.0
    %2757 = vmatprep.subr.mxu0 0.0
    %2758 = vmatpush1.msra.mxu0 0.0
    %2759 = vmatprep.subr.mxu0 0.0
    %2760 = vmatpush1.msra.mxu0 0.0
    %2761 = vmatprep.subr.mxu0 0.0
    %2762 = vmatpush1.msra.mxu0 0.0
    %2763 = vmatprep.subr.mxu0 0.0
    %2764 = vmatpush1.msra.mxu0 0.0
    %2765 = vmatprep.subr.mxu0 0.0
    %2766 = vmatpush1.msra.mxu0 0.0
    %2767 = vmatprep.subr.mxu0 0.0
    %2768 = vmatpush1.msra.mxu0 0.0
    %2769 = vmatprep.subr.mxu0 0.0
    %2770 = vmatpush1.msra.mxu0 0.0
    %2771 = vmatprep.subr.mxu0 0.0
    %2772 = vmatpush1.msra.mxu0 0.0
    %2773 = vmatprep.subr.mxu0 0.0
    %2774 = vmatpush1.msra.mxu0 0.0
    %2775 = vmatprep.subr.mxu0 0.0
    %2776 = vmatpush1.msra.mxu0 0.0
    %2777 = vmatprep.subr.mxu0 0.0
    %2778 = vmatpush1.msra.mxu0 0.0
    %2779 = vmatprep.subr.mxu0 0.0
    %2780 = vmatpush1.msra.mxu0 0.0
    %2781 = vmatprep.subr.mxu0 0.0
    %2782 = vmatpush1.msra.mxu0 0.0
    %2783 = vmatprep.subr.mxu0 0.0
    %2784 = vmatpush1.msra.mxu0 0.0
    %2785 = vmatprep.subr.mxu0 0.0
    %2786 = vmatpush1.msra.mxu0 0.0
    %2787 = vmatprep.subr.mxu0 0.0
    %2788 = vmatpush1.msra.mxu0 0.0
    %2789 = vmatprep.mubr.f32.mxu0 0.0
    %2790 = vmatmul.mubr.f32.gmra.mrb[0].mxu0 %v2723
    %v2791 = vpop.f32.mrb[0].mxu0
    %v2792 = vadd.f32 0.0, %v2791
    %v2793 = vpop.f32.mrb[0].mxu0
    %2794 = vdwg.mxu0
    %2796 = vrot.lane.b32.xlu0 %v2792, 24
    %v2797 = vpop.permute.xlu0 %2796
    %2799 = vst.msk [vmem:[#allocation3] sm:$0xff] %vm925, %v2797
    %v2800 = vld [vmem:[#allocation2 + $0x8] sm:$0xff]
    %2802 = vrot.lane.b32.xlu0 %v2800, 96
    %v2803 = vpop.permute.xlu0 %2802
    %v2804 = vsel %vm233, %v2800, 0
    %v2806 = vsel %vm233, %v2803, 0
    %2808 = vmatprep.subr.mxu0 0.0
    %2809 = vmatpush1.xpose.msra.mxu0 %v2806
    %2810 = vmatprep.subr.mxu0 0.0
    %2811 = vmatpush1.xpose.msra.mxu0 0.0
    %2812 = vmatprep.subr.mxu0 0.0
    %2813 = vmatpush1.xpose.msra.mxu0 0.0
    %2814 = vmatprep.subr.mxu0 0.0
    %2815 = vmatpush1.xpose.msra.mxu0 0.0
    %2816 = vmatprep.subr.mxu0 0.0
    %2817 = vmatpush1.xpose.msra.mxu0 0.0
    %2818 = vmatprep.subr.mxu0 0.0
    %2819 = vmatpush1.xpose.msra.mxu0 0.0
    %2820 = vmatprep.subr.mxu0 0.0
    %2821 = vmatpush1.xpose.msra.mxu0 0.0
    %2822 = vmatprep.subr.mxu0 0.0
    %2823 = vmatpush1.xpose.msra.mxu0 0.0
    %2824 = vmatprep.subr.mxu0 0.0
    %2825 = vmatpush1.xpose.msra.mxu0 0.0
    %2826 = vmatprep.subr.mxu0 0.0
    %2827 = vmatpush1.xpose.msra.mxu0 0.0
    %2828 = vmatprep.subr.mxu0 0.0
    %2829 = vmatpush1.xpose.msra.mxu0 0.0
    %2830 = vmatprep.subr.mxu0 0.0
    %2831 = vmatpush1.xpose.msra.mxu0 0.0
    %2832 = vmatprep.subr.mxu0 0.0
    %2833 = vmatpush1.xpose.msra.mxu0 0.0
    %2834 = vmatprep.subr.mxu0 0.0
    %2835 = vmatpush1.xpose.msra.mxu0 0.0
    %2836 = vmatprep.subr.mxu0 0.0
    %2837 = vmatpush1.xpose.msra.mxu0 0.0
    %2838 = vmatprep.subr.mxu0 0.0
    %2839 = vmatpush1.xpose.msra.mxu0 0.0
    %2840 = vmatprep.subr.mxu0 0.0
    %2841 = vmatpush1.xpose.msra.mxu0 0.0
    %2842 = vmatprep.subr.mxu0 0.0
    %2843 = vmatpush1.xpose.msra.mxu0 0.0
    %2844 = vmatprep.subr.mxu0 0.0
    %2845 = vmatpush1.xpose.msra.mxu0 0.0
    %2846 = vmatprep.subr.mxu0 0.0
    %2847 = vmatpush1.xpose.msra.mxu0 0.0
    %2848 = vmatprep.subr.mxu0 0.0
    %2849 = vmatpush1.xpose.msra.mxu0 0.0
    %2850 = vmatprep.subr.mxu0 0.0
    %2851 = vmatpush1.xpose.msra.mxu0 0.0
    %2852 = vmatprep.subr.mxu0 0.0
    %2853 = vmatpush1.xpose.msra.mxu0 0.0
    %2854 = vmatprep.subr.mxu0 0.0
    %2855 = vmatpush1.xpose.msra.mxu0 0.0
    %2856 = vmatprep.subr.mxu0 0.0
    %2857 = vmatpush1.xpose.msra.mxu0 0.0
    %2858 = vmatprep.subr.mxu0 0.0
    %2859 = vmatpush1.xpose.msra.mxu0 0.0
    %2860 = vmatprep.subr.mxu0 0.0
    %2861 = vmatpush1.xpose.msra.mxu0 0.0
    %2862 = vmatprep.subr.mxu0 0.0
    %2863 = vmatpush1.xpose.msra.mxu0 0.0
    %2864 = vmatprep.subr.mxu0 0.0
    %2865 = vmatpush1.xpose.msra.mxu0 0.0
    %2866 = vmatprep.subr.mxu0 0.0
    %2867 = vmatpush1.xpose.msra.mxu0 0.0
    %2868 = vmatprep.subr.mxu0 0.0
    %2869 = vmatpush1.xpose.msra.mxu0 0.0
    %2870 = vmatprep.subr.mxu0 0.0
    %2871 = vmatpush1.xpose.msra.mxu0 0.0
    %2872 = vmatprep.mubr.f32.mxu0 0.0
    %2873 = vmatmul.mubr.f32.gmra.mrb[0].mxu0 %v2804
    %v2874 = vpop.f32.mrb[0].mxu0
    %v2875 = vadd.f32 0.0, %v2874
    %v2876 = vpop.f32.mrb[0].mxu0
    %2877 = vdwg.mxu0
    %v2878 = vmul.f32 %v2875, 0.35355338
    %v2879 = vadd.f32 %v2878, %v1009
    %v2880 = vsel %vm233, %v2879, -inf
    %2881 = vmax.xlane.f32.xlu0 %v2880
    %v2882 = vpop.xlane.xlu0 %2881
    %v2883 = vsub.f32 %v2879, %v2882
    %v2884 = vmul.f32 %v2883, 1.442695
    %v2885 = vpow.pop %v2884
    %v2886 = vsel %vm233, %v2885, 0.0
    %2887 = vadd.xlane.f32.xlu0 %v2886
    %v2888 = vpop.xlane.xlu0 %2887
    %v2889 = vrcp.pop %v2888
    %v2890 = vmul.f32 %v2885, %v2889
    %2891 = vrot.lane.b32.xlu0 %v2800, 64
    %v2892 = vpop.permute.xlu0 %2891
    %v2895 = vsel %vm233, %v2890, 0
    %2897 = vmatprep.subr.mxu0 0.0
    %2898 = vmatpush1.msra.mxu0 %v2892
    %2899 = vmatprep.subr.mxu0 0.0
    %2900 = vmatpush1.msra.mxu0 0.0
    %2901 = vmatprep.subr.mxu0 0.0
    %2902 = vmatpush1.msra.mxu0 0.0
    %2903 = vmatprep.subr.mxu0 0.0
    %2904 = vmatpush1.msra.mxu0 0.0
    %2905 = vmatprep.subr.mxu0 0.0
    %2906 = vmatpush1.msra.mxu0 0.0
    %2907 = vmatprep.subr.mxu0 0.0
    %2908 = vmatpush1.msra.mxu0 0.0
    %2909 = vmatprep.subr.mxu0 0.0
    %2910 = vmatpush1.msra.mxu0 0.0
    %2911 = vmatprep.subr.mxu0 0.0
    %2912 = vmatpush1.msra.mxu0 0.0
    %2913 = vmatprep.subr.mxu0 0.0
    %2914 = vmatpush1.msra.mxu0 0.0
    %2915 = vmatprep.subr.mxu0 0.0
    %2916 = vmatpush1.msra.mxu0 0.0
    %2917 = vmatprep.subr.mxu0 0.0
    %2918 = vmatpush1.msra.mxu0 0.0
    %2919 = vmatprep.subr.mxu0 0.0
    %2920 = vmatpush1.msra.mxu0 0.0
    %2921 = vmatprep.subr.mxu0 0.0
    %2922 = vmatpush1.msra.mxu0 0.0
    %2923 = vmatprep.subr.mxu0 0.0
    %2924 = vmatpush1.msra.mxu0 0.0
    %2925 = vmatprep.subr.mxu0 0.0
    %2926 = vmatpush1.msra.mxu0 0.0
    %2927 = vmatprep.subr.mxu0 0.0
    %2928 = vmatpush1.msra.mxu0 0.0
    %2929 = vmatprep.subr.mxu0 0.0
    %2930 = vmatpush1.msra.mxu0 0.0
    %2931 = vmatprep.subr.mxu0 0.0
    %2932 = vmatpush1.msra.mxu0 0.0
    %2933 = vmatprep.subr.mxu0 0.0
    %2934 = vmatpush1.msra.mxu0 0.0
    %2935 = vmatprep.subr.mxu0 0.0
    %2936 = vmatpush1.msra.mxu0 0.0
    %2937 = vmatprep.subr.mxu0 0.0
    %2938 = vmatpush1.msra.mxu0 0.0
    %2939 = vmatprep.subr.mxu0 0.0
    %2940 = vmatpush1.msra.mxu0 0.0
    %2941 = vmatprep.subr.mxu0 0.0
    %2942 = vmatpush1.msra.mxu0 0.0
    %2943 = vmatprep.subr.mxu0 0.0
    %2944 = vmatpush1.msra.mxu0 0.0
    %2945 = vmatprep.subr.mxu0 0.0
    %2946 = vmatpush1.msra.mxu0 0.0
    %2947 = vmatprep.subr.mxu0 0.0
    %2948 = vmatpush1.msra.mxu0 0.0
    %2949 = vmatprep.subr.mxu0 0.0
    %2950 = vmatpush1.msra.mxu0 0.0
    %2951 = vmatprep.subr.mxu0 0.0
    %2952 = vmatpush1.msra.mxu0 0.0
    %2953 = vmatprep.subr.mxu0 0.0
    %2954 = vmatpush1.msra.mxu0 0.0
    %2955 = vmatprep.subr.mxu0 0.0
    %2956 = vmatpush1.msra.mxu0 0.0
    %2957 = vmatprep.subr.mxu0 0.0
    %2958 = vmatpush1.msra.mxu0 0.0
    %2959 = vmatprep.subr.mxu0 0.0
    %2960 = vmatpush1.msra.mxu0 0.0
    %2961 = vmatprep.mubr.f32.mxu0 0.0
    %2962 = vmatmul.mubr.f32.gmra.mrb[0].mxu0 %v2895
    %v2963 = vpop.f32.mrb[0].mxu0
    %v2964 = vadd.f32 0.0, %v2963
    %v2965 = vpop.f32.mrb[0].mxu0
    %2966 = vdwg.mxu0
    %2967 = vst.msk [vmem:[#allocation3 + $0x8] sm:$0xff] %vm233, %v2964
    %v2968 = vld [vmem:[#allocation2 + $0x8] sm:$0xff]
    %2970 = vrot.lane.b32.xlu0 %v2968, 120
    %v2971 = vpop.permute.xlu0 %2970
    %2972 = vrot.lane.b32.xlu0 %v2968, 88
    %v2973 = vpop.permute.xlu0 %2972
    %v2974 = vsel %vm233, %v2971, 0
    %v2976 = vsel %vm233, %v2973, 0
    %2978 = vmatprep.subr.mxu0 0.0
    %2979 = vmatpush1.xpose.msra.mxu0 %v2976
    %2980 = vmatprep.subr.mxu0 0.0
    %2981 = vmatpush1.xpose.msra.mxu0 0.0
    %2982 = vmatprep.subr.mxu0 0.0
    %2983 = vmatpush1.xpose.msra.mxu0 0.0
    %2984 = vmatprep.subr.mxu0 0.0
    %2985 = vmatpush1.xpose.msra.mxu0 0.0
    %2986 = vmatprep.subr.mxu0 0.0
    %2987 = vmatpush1.xpose.msra.mxu0 0.0
    %2988 = vmatprep.subr.mxu0 0.0
    %2989 = vmatpush1.xpose.msra.mxu0 0.0
    %2990 = vmatprep.subr.mxu0 0.0
    %2991 = vmatpush1.xpose.msra.mxu0 0.0
    %2992 = vmatprep.subr.mxu0 0.0
    %2993 = vmatpush1.xpose.msra.mxu0 0.0
    %2994 = vmatprep.subr.mxu0 0.0
    %2995 = vmatpush1.xpose.msra.mxu0 0.0
    %2996 = vmatprep.subr.mxu0 0.0
    %2997 = vmatpush1.xpose.msra.mxu0 0.0
    %2998 = vmatprep.subr.mxu0 0.0
    %2999 = vmatpush1.xpose.msra.mxu0 0.0
    %3000 = vmatprep.subr.mxu0 0.0
    %3001 = vmatpush1.xpose.msra.mxu0 0.0
    %3002 = vmatprep.subr.mxu0 0.0
    %3003 = vmatpush1.xpose.msra.mxu0 0.0
    %3004 = vmatprep.subr.mxu0 0.0
    %3005 = vmatpush1.xpose.msra.mxu0 0.0
    %3006 = vmatprep.subr.mxu0 0.0
    %3007 = vmatpush1.xpose.msra.mxu0 0.0
    %3008 = vmatprep.subr.mxu0 0.0
    %3009 = vmatpush1.xpose.msra.mxu0 0.0
    %3010 = vmatprep.subr.mxu0 0.0
    %3011 = vmatpush1.xpose.msra.mxu0 0.0
    %3012 = vmatprep.subr.mxu0 0.0
    %3013 = vmatpush1.xpose.msra.mxu0 0.0
    %3014 = vmatprep.subr.mxu0 0.0
    %3015 = vmatpush1.xpose.msra.mxu0 0.0
    %3016 = vmatprep.subr.mxu0 0.0
    %3017 = vmatpush1.xpose.msra.mxu0 0.0
    %3018 = vmatprep.subr.mxu0 0.0
    %3019 = vmatpush1.xpose.msra.mxu0 0.0
    %3020 = vmatprep.subr.mxu0 0.0
    %3021 = vmatpush1.xpose.msra.mxu0 0.0
    %3022 = vmatprep.subr.mxu0 0.0
    %3023 = vmatpush1.xpose.msra.mxu0 0.0
    %3024 = vmatprep.subr.mxu0 0.0
    %3025 = vmatpush1.xpose.msra.mxu0 0.0
    %3026 = vmatprep.subr.mxu0 0.0
    %3027 = vmatpush1.xpose.msra.mxu0 0.0
    %3028 = vmatprep.subr.mxu0 0.0
    %3029 = vmatpush1.xpose.msra.mxu0 0.0
    %3030 = vmatprep.subr.mxu0 0.0
    %3031 = vmatpush1.xpose.msra.mxu0 0.0
    %3032 = vmatprep.subr.mxu0 0.0
    %3033 = vmatpush1.xpose.msra.mxu0 0.0
    %3034 = vmatprep.subr.mxu0 0.0
    %3035 = vmatpush1.xpose.msra.mxu0 0.0
    %3036 = vmatprep.subr.mxu0 0.0
    %3037 = vmatpush1.xpose.msra.mxu0 0.0
    %3038 = vmatprep.subr.mxu0 0.0
    %3039 = vmatpush1.xpose.msra.mxu0 0.0
    %3040 = vmatprep.subr.mxu0 0.0
    %3041 = vmatpush1.xpose.msra.mxu0 0.0
    %3042 = vmatprep.mubr.f32.mxu0 0.0
    %3043 = vmatmul.mubr.f32.gmra.mrb[0].mxu0 %v2974
    %v3044 = vpop.f32.mrb[0].mxu0
    %v3045 = vadd.f32 0.0, %v3044
    %v3046 = vpop.f32.mrb[0].mxu0
    %3047 = vdwg.mxu0
    %v3048 = vmul.f32 %v3045, 0.35355338
    %v3049 = vadd.f32 %v3048, %v1009
    %v3050 = vsel %vm233, %v3049, -inf
    %3051 = vmax.xlane.f32.xlu0 %v3050
    %v3052 = vpop.xlane.xlu0 %3051
    %v3053 = vsub.f32 %v3049, %v3052
    %v3054 = vmul.f32 %v3053, 1.442695
    %v3055 = vpow.pop %v3054
    %v3056 = vsel %vm233, %v3055, 0.0
    %3057 = vadd.xlane.f32.xlu0 %v3056
    %v3058 = vpop.xlane.xlu0 %3057
    %v3059 = vrcp.pop %v3058
    %v3060 = vmul.f32 %v3055, %v3059
    %3061 = vrot.lane.b32.xlu0 %v2968, 56
    %v3062 = vpop.permute.xlu0 %3061
    %v3065 = vsel %vm233, %v3060, 0
    %3067 = vmatprep.subr.mxu0 0.0
    %3068 = vmatpush1.msra.mxu0 %v3062
    %3069 = vmatprep.subr.mxu0 0.0
    %3070 = vmatpush1.msra.mxu0 0.0
    %3071 = vmatprep.subr.mxu0 0.0
    %3072 = vmatpush1.msra.mxu0 0.0
    %3073 = vmatprep.subr.mxu0 0.0
    %3074 = vmatpush1.msra.mxu0 0.0
    %3075 = vmatprep.subr.mxu0 0.0
    %3076 = vmatpush1.msra.mxu0 0.0
    %3077 = vmatprep.subr.mxu0 0.0
    %3078 = vmatpush1.msra.mxu0 0.0
    %3079 = vmatprep.subr.mxu0 0.0
    %3080 = vmatpush1.msra.mxu0 0.0
    %3081 = vmatprep.subr.mxu0 0.0
    %3082 = vmatpush1.msra.mxu0 0.0
    %3083 = vmatprep.subr.mxu0 0.0
    %3084 = vmatpush1.msra.mxu0 0.0
    %3085 = vmatprep.subr.mxu0 0.0
    %3086 = vmatpush1.msra.mxu0 0.0
    %3087 = vmatprep.subr.mxu0 0.0
    %3088 = vmatpush1.msra.mxu0 0.0
    %3089 = vmatprep.subr.mxu0 0.0
    %3090 = vmatpush1.msra.mxu0 0.0
    %3091 = vmatprep.subr.mxu0 0.0
    %3092 = vmatpush1.msra.mxu0 0.0
    %3093 = vmatprep.subr.mxu0 0.0
    %3094 = vmatpush1.msra.mxu0 0.0
    %3095 = vmatprep.subr.mxu0 0.0
    %3096 = vmatpush1.msra.mxu0 0.0
    %3097 = vmatprep.subr.mxu0 0.0
    %3098 = vmatpush1.msra.mxu0 0.0
    %3099 = vmatprep.subr.mxu0 0.0
    %3100 = vmatpush1.msra.mxu0 0.0
    %3101 = vmatprep.subr.mxu0 0.0
    %3102 = vmatpush1.msra.mxu0 0.0
    %3103 = vmatprep.subr.mxu0 0.0
    %3104 = vmatpush1.msra.mxu0 0.0
    %3105 = vmatprep.subr.mxu0 0.0
    %3106 = vmatpush1.msra.mxu0 0.0
    %3107 = vmatprep.subr.mxu0 0.0
    %3108 = vmatpush1.msra.mxu0 0.0
    %3109 = vmatprep.subr.mxu0 0.0
    %3110 = vmatpush1.msra.mxu0 0.0
    %3111 = vmatprep.subr.mxu0 0.0
    %3112 = vmatpush1.msra.mxu0 0.0
    %3113 = vmatprep.subr.mxu0 0.0
    %3114 = vmatpush1.msra.mxu0 0.0
    %3115 = vmatprep.subr.mxu0 0.0
    %3116 = vmatpush1.msra.mxu0 0.0
    %3117 = vmatprep.subr.mxu0 0.0
    %3118 = vmatpush1.msra.mxu0 0.0
    %3119 = vmatprep.subr.mxu0 0.0
    %3120 = vmatpush1.msra.mxu0 0.0
    %3121 = vmatprep.subr.mxu0 0.0
    %3122 = vmatpush1.msra.mxu0 0.0
    %3123 = vmatprep.subr.mxu0 0.0
    %3124 = vmatpush1.msra.mxu0 0.0
    %3125 = vmatprep.subr.mxu0 0.0
    %3126 = vmatpush1.msra.mxu0 0.0
    %3127 = vmatprep.subr.mxu0 0.0
    %3128 = vmatpush1.msra.mxu0 0.0
    %3129 = vmatprep.subr.mxu0 0.0
    %3130 = vmatpush1.msra.mxu0 0.0
    %3131 = vmatprep.mubr.f32.mxu0 0.0
    %3132 = vmatmul.mubr.f32.gmra.mrb[0].mxu0 %v3065
    %v3133 = vpop.f32.mrb[0].mxu0
    %v3134 = vadd.f32 0.0, %v3133
    %v3135 = vpop.f32.mrb[0].mxu0
    %3136 = vdwg.mxu0
    %3138 = vrot.lane.b32.xlu0 %v3134, 8
    %v3139 = vpop.permute.xlu0 %3138
    %3141 = vst.msk [vmem:[#allocation3 + $0x8] sm:$0xff] %vm575, %v3139
    %v3142 = vld [vmem:[#allocation2 + $0x8] sm:$0xff]
    %3144 = vrot.lane.b32.xlu0 %v3142, 112
    %v3145 = vpop.permute.xlu0 %3144
    %3146 = vrot.lane.b32.xlu0 %v3142, 80
    %v3147 = vpop.permute.xlu0 %3146
    %v3148 = vsel %vm233, %v3145, 0
    %v3150 = vsel %vm233, %v3147, 0
    %3152 = vmatprep.subr.mxu0 0.0
    %3153 = vmatpush1.xpose.msra.mxu0 %v3150
    %3154 = vmatprep.subr.mxu0 0.0
    %3155 = vmatpush1.xpose.msra.mxu0 0.0
    %3156 = vmatprep.subr.mxu0 0.0
    %3157 = vmatpush1.xpose.msra.mxu0 0.0
    %3158 = vmatprep.subr.mxu0 0.0
    %3159 = vmatpush1.xpose.msra.mxu0 0.0
    %3160 = vmatprep.subr.mxu0 0.0
    %3161 = vmatpush1.xpose.msra.mxu0 0.0
    %3162 = vmatprep.subr.mxu0 0.0
    %3163 = vmatpush1.xpose.msra.mxu0 0.0
    %3164 = vmatprep.subr.mxu0 0.0
    %3165 = vmatpush1.xpose.msra.mxu0 0.0
    %3166 = vmatprep.subr.mxu0 0.0
    %3167 = vmatpush1.xpose.msra.mxu0 0.0
    %3168 = vmatprep.subr.mxu0 0.0
    %3169 = vmatpush1.xpose.msra.mxu0 0.0
    %3170 = vmatprep.subr.mxu0 0.0
    %3171 = vmatpush1.xpose.msra.mxu0 0.0
    %3172 = vmatprep.subr.mxu0 0.0
    %3173 = vmatpush1.xpose.msra.mxu0 0.0
    %3174 = vmatprep.subr.mxu0 0.0
    %3175 = vmatpush1.xpose.msra.mxu0 0.0
    %3176 = vmatprep.subr.mxu0 0.0
    %3177 = vmatpush1.xpose.msra.mxu0 0.0
    %3178 = vmatprep.subr.mxu0 0.0
    %3179 = vmatpush1.xpose.msra.mxu0 0.0
    %3180 = vmatprep.subr.mxu0 0.0
    %3181 = vmatpush1.xpose.msra.mxu0 0.0
    %3182 = vmatprep.subr.mxu0 0.0
    %3183 = vmatpush1.xpose.msra.mxu0 0.0
    %3184 = vmatprep.subr.mxu0 0.0
    %3185 = vmatpush1.xpose.msra.mxu0 0.0
    %3186 = vmatprep.subr.mxu0 0.0
    %3187 = vmatpush1.xpose.msra.mxu0 0.0
    %3188 = vmatprep.subr.mxu0 0.0
    %3189 = vmatpush1.xpose.msra.mxu0 0.0
    %3190 = vmatprep.subr.mxu0 0.0
    %3191 = vmatpush1.xpose.msra.mxu0 0.0
    %3192 = vmatprep.subr.mxu0 0.0
    %3193 = vmatpush1.xpose.msra.mxu0 0.0
    %3194 = vmatprep.subr.mxu0 0.0
    %3195 = vmatpush1.xpose.msra.mxu0 0.0
    %3196 = vmatprep.subr.mxu0 0.0
    %3197 = vmatpush1.xpose.msra.mxu0 0.0
    %3198 = vmatprep.subr.mxu0 0.0
    %3199 = vmatpush1.xpose.msra.mxu0 0.0
    %3200 = vmatprep.subr.mxu0 0.0
    %3201 = vmatpush1.xpose.msra.mxu0 0.0
    %3202 = vmatprep.subr.mxu0 0.0
    %3203 = vmatpush1.xpose.msra.mxu0 0.0
    %3204 = vmatprep.subr.mxu0 0.0
    %3205 = vmatpush1.xpose.msra.mxu0 0.0
    %3206 = vmatprep.subr.mxu0 0.0
    %3207 = vmatpush1.xpose.msra.mxu0 0.0
    %3208 = vmatprep.subr.mxu0 0.0
    %3209 = vmatpush1.xpose.msra.mxu0 0.0
    %3210 = vmatprep.subr.mxu0 0.0
    %3211 = vmatpush1.xpose.msra.mxu0 0.0
    %3212 = vmatprep.subr.mxu0 0.0
    %3213 = vmatpush1.xpose.msra.mxu0 0.0
    %3214 = vmatprep.subr.mxu0 0.0
    %3215 = vmatpush1.xpose.msra.mxu0 0.0
    %3216 = vmatprep.mubr.f32.mxu0 0.0
    %3217 = vmatmul.mubr.f32.gmra.mrb[0].mxu0 %v3148
    %v3218 = vpop.f32.mrb[0].mxu0
    %v3219 = vadd.f32 0.0, %v3218
    %v3220 = vpop.f32.mrb[0].mxu0
    %3221 = vdwg.mxu0
    %v3222 = vmul.f32 %v3219, 0.35355338
    %v3223 = vadd.f32 %v3222, %v1009
    %v3224 = vsel %vm233, %v3223, -inf
    %3225 = vmax.xlane.f32.xlu0 %v3224
    %v3226 = vpop.xlane.xlu0 %3225
    %v3227 = vsub.f32 %v3223, %v3226
    %v3228 = vmul.f32 %v3227, 1.442695
    %v3229 = vpow.pop %v3228
    %v3230 = vsel %vm233, %v3229, 0.0
    %3231 = vadd.xlane.f32.xlu0 %v3230
    %v3232 = vpop.xlane.xlu0 %3231
    %v3233 = vrcp.pop %v3232
    %v3234 = vmul.f32 %v3229, %v3233
    %3235 = vrot.lane.b32.xlu0 %v3142, 48
    %v3236 = vpop.permute.xlu0 %3235
    %v3239 = vsel %vm233, %v3234, 0
    %3241 = vmatprep.subr.mxu0 0.0
    %3242 = vmatpush1.msra.mxu0 %v3236
    %3243 = vmatprep.subr.mxu0 0.0
    %3244 = vmatpush1.msra.mxu0 0.0
    %3245 = vmatprep.subr.mxu0 0.0
    %3246 = vmatpush1.msra.mxu0 0.0
    %3247 = vmatprep.subr.mxu0 0.0
    %3248 = vmatpush1.msra.mxu0 0.0
    %3249 = vmatprep.subr.mxu0 0.0
    %3250 = vmatpush1.msra.mxu0 0.0
    %3251 = vmatprep.subr.mxu0 0.0
    %3252 = vmatpush1.msra.mxu0 0.0
    %3253 = vmatprep.subr.mxu0 0.0
    %3254 = vmatpush1.msra.mxu0 0.0
    %3255 = vmatprep.subr.mxu0 0.0
    %3256 = vmatpush1.msra.mxu0 0.0
    %3257 = vmatprep.subr.mxu0 0.0
    %3258 = vmatpush1.msra.mxu0 0.0
    %3259 = vmatprep.subr.mxu0 0.0
    %3260 = vmatpush1.msra.mxu0 0.0
    %3261 = vmatprep.subr.mxu0 0.0
    %3262 = vmatpush1.msra.mxu0 0.0
    %3263 = vmatprep.subr.mxu0 0.0
    %3264 = vmatpush1.msra.mxu0 0.0
    %3265 = vmatprep.subr.mxu0 0.0
    %3266 = vmatpush1.msra.mxu0 0.0
    %3267 = vmatprep.subr.mxu0 0.0
    %3268 = vmatpush1.msra.mxu0 0.0
    %3269 = vmatprep.subr.mxu0 0.0
    %3270 = vmatpush1.msra.mxu0 0.0
    %3271 = vmatprep.subr.mxu0 0.0
    %3272 = vmatpush1.msra.mxu0 0.0
    %3273 = vmatprep.subr.mxu0 0.0
    %3274 = vmatpush1.msra.mxu0 0.0
    %3275 = vmatprep.subr.mxu0 0.0
    %3276 = vmatpush1.msra.mxu0 0.0
    %3277 = vmatprep.subr.mxu0 0.0
    %3278 = vmatpush1.msra.mxu0 0.0
    %3279 = vmatprep.subr.mxu0 0.0
    %3280 = vmatpush1.msra.mxu0 0.0
    %3281 = vmatprep.subr.mxu0 0.0
    %3282 = vmatpush1.msra.mxu0 0.0
    %3283 = vmatprep.subr.mxu0 0.0
    %3284 = vmatpush1.msra.mxu0 0.0
    %3285 = vmatprep.subr.mxu0 0.0
    %3286 = vmatpush1.msra.mxu0 0.0
    %3287 = vmatprep.subr.mxu0 0.0
    %3288 = vmatpush1.msra.mxu0 0.0
    %3289 = vmatprep.subr.mxu0 0.0
    %3290 = vmatpush1.msra.mxu0 0.0
    %3291 = vmatprep.subr.mxu0 0.0
    %3292 = vmatpush1.msra.mxu0 0.0
    %3293 = vmatprep.subr.mxu0 0.0
    %3294 = vmatpush1.msra.mxu0 0.0
    %3295 = vmatprep.subr.mxu0 0.0
    %3296 = vmatpush1.msra.mxu0 0.0
    %3297 = vmatprep.subr.mxu0 0.0
    %3298 = vmatpush1.msra.mxu0 0.0
    %3299 = vmatprep.subr.mxu0 0.0
    %3300 = vmatpush1.msra.mxu0 0.0
    %3301 = vmatprep.subr.mxu0 0.0
    %3302 = vmatpush1.msra.mxu0 0.0
    %3303 = vmatprep.subr.mxu0 0.0
    %3304 = vmatpush1.msra.mxu0 0.0
    %3305 = vmatprep.mubr.f32.mxu0 0.0
    %3306 = vmatmul.mubr.f32.gmra.mrb[0].mxu0 %v3239
    %v3307 = vpop.f32.mrb[0].mxu0
    %v3308 = vadd.f32 0.0, %v3307
    %v3309 = vpop.f32.mrb[0].mxu0
    %3310 = vdwg.mxu0
    %3312 = vrot.lane.b32.xlu0 %v3308, 16
    %v3313 = vpop.permute.xlu0 %3312
    %3315 = vst.msk [vmem:[#allocation3 + $0x8] sm:$0xff] %vm750, %v3313
    %v3316 = vld [vmem:[#allocation2 + $0x8] sm:$0xff]
    %3318 = vrot.lane.b32.xlu0 %v3316, 104
    %v3319 = vpop.permute.xlu0 %3318
    %3320 = vrot.lane.b32.xlu0 %v3316, 72
    %v3321 = vpop.permute.xlu0 %3320
    %v3322 = vsel %vm233, %v3319, 0
    %v3324 = vsel %vm233, %v3321, 0
    %3326 = vmatprep.subr.mxu0 0.0
    %3327 = vmatpush1.xpose.msra.mxu0 %v3324
    %3328 = vmatprep.subr.mxu0 0.0
    %3329 = vmatpush1.xpose.msra.mxu0 0.0
    %3330 = vmatprep.subr.mxu0 0.0
    %3331 = vmatpush1.xpose.msra.mxu0 0.0
    %3332 = vmatprep.subr.mxu0 0.0
    %3333 = vmatpush1.xpose.msra.mxu0 0.0
    %3334 = vmatprep.subr.mxu0 0.0
    %3335 = vmatpush1.xpose.msra.mxu0 0.0
    %3336 = vmatprep.subr.mxu0 0.0
    %3337 = vmatpush1.xpose.msra.mxu0 0.0
    %3338 = vmatprep.subr.mxu0 0.0
    %3339 = vmatpush1.xpose.msra.mxu0 0.0
    %3340 = vmatprep.subr.mxu0 0.0
    %3341 = vmatpush1.xpose.msra.mxu0 0.0
    %3342 = vmatprep.subr.mxu0 0.0
    %3343 = vmatpush1.xpose.msra.mxu0 0.0
    %3344 = vmatprep.subr.mxu0 0.0
    %3345 = vmatpush1.xpose.msra.mxu0 0.0
    %3346 = vmatprep.subr.mxu0 0.0
    %3347 = vmatpush1.xpose.msra.mxu0 0.0
    %3348 = vmatprep.subr.mxu0 0.0
    %3349 = vmatpush1.xpose.msra.mxu0 0.0
    %3350 = vmatprep.subr.mxu0 0.0
    %3351 = vmatpush1.xpose.msra.mxu0 0.0
    %3352 = vmatprep.subr.mxu0 0.0
    %3353 = vmatpush1.xpose.msra.mxu0 0.0
    %3354 = vmatprep.subr.mxu0 0.0
    %3355 = vmatpush1.xpose.msra.mxu0 0.0
    %3356 = vmatprep.subr.mxu0 0.0
    %3357 = vmatpush1.xpose.msra.mxu0 0.0
    %3358 = vmatprep.subr.mxu0 0.0
    %3359 = vmatpush1.xpose.msra.mxu0 0.0
    %3360 = vmatprep.subr.mxu0 0.0
    %3361 = vmatpush1.xpose.msra.mxu0 0.0
    %3362 = vmatprep.subr.mxu0 0.0
    %3363 = vmatpush1.xpose.msra.mxu0 0.0
    %3364 = vmatprep.subr.mxu0 0.0
    %3365 = vmatpush1.xpose.msra.mxu0 0.0
    %3366 = vmatprep.subr.mxu0 0.0
    %3367 = vmatpush1.xpose.msra.mxu0 0.0
    %3368 = vmatprep.subr.mxu0 0.0
    %3369 = vmatpush1.xpose.msra.mxu0 0.0
    %3370 = vmatprep.subr.mxu0 0.0
    %3371 = vmatpush1.xpose.msra.mxu0 0.0
    %3372 = vmatprep.subr.mxu0 0.0
    %3373 = vmatpush1.xpose.msra.mxu0 0.0
    %3374 = vmatprep.subr.mxu0 0.0
    %3375 = vmatpush1.xpose.msra.mxu0 0.0
    %3376 = vmatprep.subr.mxu0 0.0
    %3377 = vmatpush1.xpose.msra.mxu0 0.0
    %3378 = vmatprep.subr.mxu0 0.0
    %3379 = vmatpush1.xpose.msra.mxu0 0.0
    %3380 = vmatprep.subr.mxu0 0.0
    %3381 = vmatpush1.xpose.msra.mxu0 0.0
    %3382 = vmatprep.subr.mxu0 0.0
    %3383 = vmatpush1.xpose.msra.mxu0 0.0
    %3384 = vmatprep.subr.mxu0 0.0
    %3385 = vmatpush1.xpose.msra.mxu0 0.0
    %3386 = vmatprep.subr.mxu0 0.0
    %3387 = vmatpush1.xpose.msra.mxu0 0.0
    %3388 = vmatprep.subr.mxu0 0.0
    %3389 = vmatpush1.xpose.msra.mxu0 0.0
    %3390 = vmatprep.mubr.f32.mxu0 0.0
    %3391 = vmatmul.mubr.f32.gmra.mrb[0].mxu0 %v3322
    %v3392 = vpop.f32.mrb[0].mxu0
    %v3393 = vadd.f32 0.0, %v3392
    %v3394 = vpop.f32.mrb[0].mxu0
    %3395 = vdwg.mxu0
    %v3396 = vmul.f32 %v3393, 0.35355338
    %v3397 = vadd.f32 %v3396, %v1009
    %v3398 = vsel %vm233, %v3397, -inf
    %3399 = vmax.xlane.f32.xlu0 %v3398
    %v3400 = vpop.xlane.xlu0 %3399
    %v3401 = vsub.f32 %v3397, %v3400
    %v3402 = vmul.f32 %v3401, 1.442695
    %v3403 = vpow.pop %v3402
    %v3404 = vsel %vm233, %v3403, 0.0
    %3405 = vadd.xlane.f32.xlu0 %v3404
    %v3406 = vpop.xlane.xlu0 %3405
    %v3407 = vrcp.pop %v3406
    %v3408 = vmul.f32 %v3403, %v3407
    %3409 = vrot.lane.b32.xlu0 %v3316, 40
    %v3410 = vpop.permute.xlu0 %3409
    %v3413 = vsel %vm233, %v3408, 0
    %3415 = vmatprep.subr.mxu0 0.0
    %3416 = vmatpush1.msra.mxu0 %v3410
    %3417 = vmatprep.subr.mxu0 0.0
    %3418 = vmatpush1.msra.mxu0 0.0
    %3419 = vmatprep.subr.mxu0 0.0
    %3420 = vmatpush1.msra.mxu0 0.0
    %3421 = vmatprep.subr.mxu0 0.0
    %3422 = vmatpush1.msra.mxu0 0.0
    %3423 = vmatprep.subr.mxu0 0.0
    %3424 = vmatpush1.msra.mxu0 0.0
    %3425 = vmatprep.subr.mxu0 0.0
    %3426 = vmatpush1.msra.mxu0 0.0
    %3427 = vmatprep.subr.mxu0 0.0
    %3428 = vmatpush1.msra.mxu0 0.0
    %3429 = vmatprep.subr.mxu0 0.0
    %3430 = vmatpush1.msra.mxu0 0.0
    %3431 = vmatprep.subr.mxu0 0.0
    %3432 = vmatpush1.msra.mxu0 0.0
    %3433 = vmatprep.subr.mxu0 0.0
    %3434 = vmatpush1.msra.mxu0 0.0
    %3435 = vmatprep.subr.mxu0 0.0
    %3436 = vmatpush1.msra.mxu0 0.0
    %3437 = vmatprep.subr.mxu0 0.0
    %3438 = vmatpush1.msra.mxu0 0.0
    %3439 = vmatprep.subr.mxu0 0.0
    %3440 = vmatpush1.msra.mxu0 0.0
    %3441 = vmatprep.subr.mxu0 0.0
    %3442 = vmatpush1.msra.mxu0 0.0
    %3443 = vmatprep.subr.mxu0 0.0
    %3444 = vmatpush1.msra.mxu0 0.0
    %3445 = vmatprep.subr.mxu0 0.0
    %3446 = vmatpush1.msra.mxu0 0.0
    %3447 = vmatprep.subr.mxu0 0.0
    %3448 = vmatpush1.msra.mxu0 0.0
    %3449 = vmatprep.subr.mxu0 0.0
    %3450 = vmatpush1.msra.mxu0 0.0
    %3451 = vmatprep.subr.mxu0 0.0
    %3452 = vmatpush1.msra.mxu0 0.0
    %3453 = vmatprep.subr.mxu0 0.0
    %3454 = vmatpush1.msra.mxu0 0.0
    %3455 = vmatprep.subr.mxu0 0.0
    %3456 = vmatpush1.msra.mxu0 0.0
    %3457 = vmatprep.subr.mxu0 0.0
    %3458 = vmatpush1.msra.mxu0 0.0
    %3459 = vmatprep.subr.mxu0 0.0
    %3460 = vmatpush1.msra.mxu0 0.0
    %3461 = vmatprep.subr.mxu0 0.0
    %3462 = vmatpush1.msra.mxu0 0.0
    %3463 = vmatprep.subr.mxu0 0.0
    %3464 = vmatpush1.msra.mxu0 0.0
    %3465 = vmatprep.subr.mxu0 0.0
    %3466 = vmatpush1.msra.mxu0 0.0
    %3467 = vmatprep.subr.mxu0 0.0
    %3468 = vmatpush1.msra.mxu0 0.0
    %3469 = vmatprep.subr.mxu0 0.0
    %3470 = vmatpush1.msra.mxu0 0.0
    %3471 = vmatprep.subr.mxu0 0.0
    %3472 = vmatpush1.msra.mxu0 0.0
    %3473 = vmatprep.subr.mxu0 0.0
    %3474 = vmatpush1.msra.mxu0 0.0
    %3475 = vmatprep.subr.mxu0 0.0
    %3476 = vmatpush1.msra.mxu0 0.0
    %3477 = vmatprep.subr.mxu0 0.0
    %3478 = vmatpush1.msra.mxu0 0.0
    %3479 = vmatprep.mubr.f32.mxu0 0.0
    %3480 = vmatmul.mubr.f32.gmra.mrb[0].mxu0 %v3413
    %v3481 = vpop.f32.mrb[0].mxu0
    %v3482 = vadd.f32 0.0, %v3481
    %v3483 = vpop.f32.mrb[0].mxu0
    %3484 = vdwg.mxu0
    %3486 = vrot.lane.b32.xlu0 %v3482, 24
    %v3487 = vpop.permute.xlu0 %3486
    %3489 = vst.msk [vmem:[#allocation3 + $0x8] sm:$0xff] %vm925, %v3487
    %v3490 = vld [vmem:[#allocation3] sm:$0xff]
    %v3491 = vld [vmem:[#allocation3 + $0x8] sm:$0xff]
    %s3492 = scalar_lea.vmem %s6, 32
    %v3493 = vld [vmem:[%s3492] sm:$0xff]
    %v3494 = vld [vmem:[%s3492 + $0x8] sm:$0xff]
    %v3495 = vld [vmem:[%s3492 + $0x10] sm:$0xff]
    %v3496 = vld [vmem:[%s3492 + $0x18] sm:$0xff]
    %s3497 = scalar_lea.vmem %s7, 1
    %v3498 = vld [vmem:[%s3497] sm:$0x1]
    %v3500 = vlaneseq
    %v3501 = vshrl.u32 %v3500, 7
    %v3502 = vsub.s32 0, %v3501
    %v3503 = vrot.slane %v3498, %v3502
    %v3506 = vsel %vm88, %v3490, 0
    %v3509 = vsel %vm88, %v3491, 0
    %3511 = vmatprep.subr.mxu0 0.0
    %3512 = vmatpush1.msra.mxu0 %v3493
    %3513 = vmatprep.subr.mxu0 0.0
    %3514 = vmatpush1.msra.mxu0 %v3494
    %3515 = vmatprep.subr.mxu0 0.0
    %3516 = vmatpush1.msra.mxu0 %v3495
    %3517 = vmatprep.subr.mxu0 0.0
    %3518 = vmatpush1.msra.mxu0 %v3496
    %3519 = vmatprep.subr.mxu0 0.0
    %3520 = vmatpush1.msra.mxu0 0.0
    %3521 = vmatprep.subr.mxu0 0.0
    %3522 = vmatpush1.msra.mxu0 0.0
    %3523 = vmatprep.subr.mxu0 0.0
    %3524 = vmatpush1.msra.mxu0 0.0
    %3525 = vmatprep.subr.mxu0 0.0
    %3526 = vmatpush1.msra.mxu0 0.0
    %3527 = vmatprep.subr.mxu0 0.0
    %3528 = vmatpush1.msra.mxu0 0.0
    %3529 = vmatprep.subr.mxu0 0.0
    %3530 = vmatpush1.msra.mxu0 0.0
    %3531 = vmatprep.subr.mxu0 0.0
    %3532 = vmatpush1.msra.mxu0 0.0
    %3533 = vmatprep.subr.mxu0 0.0
    %3534 = vmatpush1.msra.mxu0 0.0
    %3535 = vmatprep.subr.mxu0 0.0
    %3536 = vmatpush1.msra.mxu0 0.0
    %3537 = vmatprep.subr.mxu0 0.0
    %3538 = vmatpush1.msra.mxu0 0.0
    %3539 = vmatprep.subr.mxu0 0.0
    %3540 = vmatpush1.msra.mxu0 0.0
    %3541 = vmatprep.subr.mxu0 0.0
    %3542 = vmatpush1.msra.mxu0 0.0
    %3543 = vmatprep.subr.mxu0 0.0
    %3544 = vmatpush1.msra.mxu0 0.0
    %3545 = vmatprep.subr.mxu0 0.0
    %3546 = vmatpush1.msra.mxu0 0.0
    %3547 = vmatprep.subr.mxu0 0.0
    %3548 = vmatpush1.msra.mxu0 0.0
    %3549 = vmatprep.subr.mxu0 0.0
    %3550 = vmatpush1.msra.mxu0 0.0
    %3551 = vmatprep.subr.mxu0 0.0
    %3552 = vmatpush1.msra.mxu0 0.0
    %3553 = vmatprep.subr.mxu0 0.0
    %3554 = vmatpush1.msra.mxu0 0.0
    %3555 = vmatprep.subr.mxu0 0.0
    %3556 = vmatpush1.msra.mxu0 0.0
    %3557 = vmatprep.subr.mxu0 0.0
    %3558 = vmatpush1.msra.mxu0 0.0
    %3559 = vmatprep.subr.mxu0 0.0
    %3560 = vmatpush1.msra.mxu0 0.0
    %3561 = vmatprep.subr.mxu0 0.0
    %3562 = vmatpush1.msra.mxu0 0.0
    %3563 = vmatprep.subr.mxu0 0.0
    %3564 = vmatpush1.msra.mxu0 0.0
    %3565 = vmatprep.subr.mxu0 0.0
    %3566 = vmatpush1.msra.mxu0 0.0
    %3567 = vmatprep.subr.mxu0 0.0
    %3568 = vmatpush1.msra.mxu0 0.0
    %3569 = vmatprep.subr.mxu0 0.0
    %3570 = vmatpush1.msra.mxu0 0.0
    %3571 = vmatprep.subr.mxu0 0.0
    %3572 = vmatpush1.msra.mxu0 0.0
    %3573 = vmatprep.subr.mxu0 0.0
    %3574 = vmatpush1.msra.mxu0 0.0
    %3575 = vmatprep.mubr.f32.mxu0 0.0
    %3576 = vmatmul.mubr.f32.gmra.mrb[0].mxu0 %v3506
    %v3577 = vpop.f32.mrb[0].mxu0
    %v3578 = vadd.f32 %v3503, %v3577
    %v3579 = vpop.f32.mrb[0].mxu0
    %3580 = vmatprep.mubr.f32.mxu0 0.0
    %3581 = vmatmul.mubr.f32.gmra.mrb[0].mxu0 %v3509
    %v3582 = vpop.f32.mrb[0].mxu0
    %v3583 = vadd.f32 %v3503, %v3582
    %v3584 = vpop.f32.mrb[0].mxu0
    %3585 = vdwg.mxu0
    %v3586 = vadd.f32 %v2012, %v3578
    %v3587 = vadd.f32 %v2013, %v3583
    %s3588 = scalar_lea.vmem %s8, 1
    %v3589 = vld [vmem:[%s3588] sm:$0x1]
    %s3590 = scalar_lea.vmem %s9, 1
    %v3591 = vld [vmem:[%s3590] sm:$0x1]
    %v3592 = vsel %vm88, %v3586, 0.0
    %3593 = vadd.xlane.f32.xlu0 %v3592
    %v3594 = vpop.xlane.xlu0 %3593
    %v3595 = vsel %vm88, %v3587, 0.0
    %3596 = vadd.xlane.f32.xlu0 %v3595
    %v3597 = vpop.xlane.xlu0 %3596
    %v3598 = vmul.f32 %v3594, %v95
    %v3599 = vmul.f32 %v3597, %v95
    %v3600 = vsub.f32 %v3586, %v3598
    %v3601 = vsub.f32 %v3587, %v3599
    %v3602 = vmul.f32 %v3600, %v3600
    %v3603 = vmul.f32 %v3601, %v3601
    %v3604 = vsel %vm88, %v3602, 0.0
    %3605 = vadd.xlane.f32.xlu0 %v3604
    %v3606 = vpop.xlane.xlu0 %3605
    %v3607 = vsel %vm88, %v3603, 0.0
    %3608 = vadd.xlane.f32.xlu0 %v3607
    %v3609 = vpop.xlane.xlu0 %3608
    %v3610 = vmul.f32 %v3606, %v95
    %v3611 = vmul.f32 %v3609, %v95
    %v3612 = vadd.f32 %v3610, 1e-12
    %v3613 = vadd.f32 %v3611, 1e-12
    %v3614 = vrsqrt.pop %v3612
    %v3615 = vrsqrt.pop %v3613
    %v3616 = vmul.f32 %v3600, %v3614
    %v3617 = vmul.f32 %v3601, %v3615
    %v3619 = vlaneseq
    %v3620 = vshrl.u32 %v3619, 7
    %v3621 = vsub.s32 0, %v3620
    %v3622 = vrot.slane %v3589, %v3621
    %v3624 = vmul.f32 %v3616, %v3622
    %v3625 = vmul.f32 %v3617, %v3622
    %v3627 = vlaneseq
    %v3628 = vshrl.u32 %v3627, 7
    %v3629 = vsub.s32 0, %v3628
    %v3630 = vrot.slane %v3591, %v3629
    %v3632 = vadd.f32 %v3624, %v3630
    %v3633 = vadd.f32 %v3625, %v3630
    %s3634 = scalar_lea.vmem %s10, 32
    %v3635 = vld [vmem:[%s3634] sm:$0xff]
    %v3636 = vld [vmem:[%s3634 + $0x8] sm:$0xff]
    %v3637 = vld [vmem:[%s3634 + $0x10] sm:$0xff]
    %v3638 = vld [vmem:[%s3634 + $0x18] sm:$0xff]
    %s3639 = scalar_lea.vmem %s11, 1
    %v3640 = vld [vmem:[%s3639] sm:$0x1]
    %v3642 = vlaneseq
    %v3643 = vshrl.u32 %v3642, 7
    %v3644 = vsub.s32 0, %v3643
    %v3645 = vrot.slane %v3640, %v3644
    %v3648 = vsel %vm88, %v3632, 0
    %v3651 = vsel %vm88, %v3633, 0
    %3653 = vmatprep.subr.mxu0 0.0
    %3654 = vmatpush1.msra.mxu0 %v3635
    %3655 = vmatprep.subr.mxu0 0.0
    %3656 = vmatpush1.msra.mxu0 %v3636
    %3657 = vmatprep.subr.mxu0 0.0
    %3658 = vmatpush1.msra.mxu0 %v3637
    %3659 = vmatprep.subr.mxu0 0.0
    %3660 = vmatpush1.msra.mxu0 %v3638
    %3661 = vmatprep.subr.mxu0 0.0
    %3662 = vmatpush1.msra.mxu0 0.0
    %3663 = vmatprep.subr.mxu0 0.0
    %3664 = vmatpush1.msra.mxu0 0.0
    %3665 = vmatprep.subr.mxu0 0.0
    %3666 = vmatpush1.msra.mxu0 0.0
    %3667 = vmatprep.subr.mxu0 0.0
    %3668 = vmatpush1.msra.mxu0 0.0
    %3669 = vmatprep.subr.mxu0 0.0
    %3670 = vmatpush1.msra.mxu0 0.0
    %3671 = vmatprep.subr.mxu0 0.0
    %3672 = vmatpush1.msra.mxu0 0.0
    %3673 = vmatprep.subr.mxu0 0.0
    %3674 = vmatpush1.msra.mxu0 0.0
    %3675 = vmatprep.subr.mxu0 0.0
    %3676 = vmatpush1.msra.mxu0 0.0
    %3677 = vmatprep.subr.mxu0 0.0
    %3678 = vmatpush1.msra.mxu0 0.0
    %3679 = vmatprep.subr.mxu0 0.0
    %3680 = vmatpush1.msra.mxu0 0.0
    %3681 = vmatprep.subr.mxu0 0.0
    %3682 = vmatpush1.msra.mxu0 0.0
    %3683 = vmatprep.subr.mxu0 0.0
    %3684 = vmatpush1.msra.mxu0 0.0
    %3685 = vmatprep.subr.mxu0 0.0
    %3686 = vmatpush1.msra.mxu0 0.0
    %3687 = vmatprep.subr.mxu0 0.0
    %3688 = vmatpush1.msra.mxu0 0.0
    %3689 = vmatprep.subr.mxu0 0.0
    %3690 = vmatpush1.msra.mxu0 0.0
    %3691 = vmatprep.subr.mxu0 0.0
    %3692 = vmatpush1.msra.mxu0 0.0
    %3693 = vmatprep.subr.mxu0 0.0
    %3694 = vmatpush1.msra.mxu0 0.0
    %3695 = vmatprep.subr.mxu0 0.0
    %3696 = vmatpush1.msra.mxu0 0.0
    %3697 = vmatprep.subr.mxu0 0.0
    %3698 = vmatpush1.msra.mxu0 0.0
    %3699 = vmatprep.subr.mxu0 0.0
    %3700 = vmatpush1.msra.mxu0 0.0
    %3701 = vmatprep.subr.mxu0 0.0
    %3702 = vmatpush1.msra.mxu0 0.0
    %3703 = vmatprep.subr.mxu0 0.0
    %3704 = vmatpush1.msra.mxu0 0.0
    %3705 = vmatprep.subr.mxu0 0.0
    %3706 = vmatpush1.msra.mxu0 0.0
    %3707 = vmatprep.subr.mxu0 0.0
    %3708 = vmatpush1.msra.mxu0 0.0
    %3709 = vmatprep.subr.mxu0 0.0
    %3710 = vmatpush1.msra.mxu0 0.0
    %3711 = vmatprep.subr.mxu0 0.0
    %3712 = vmatpush1.msra.mxu0 0.0
    %3713 = vmatprep.subr.mxu0 0.0
    %3714 = vmatpush1.msra.mxu0 0.0
    %3715 = vmatprep.subr.mxu0 0.0
    %3716 = vmatpush1.msra.mxu0 0.0
    %3717 = vmatprep.mubr.f32.mxu0 0.0
    %3718 = vmatmul.mubr.f32.gmra.mrb[0].mxu0 %v3648
    %v3719 = vpop.f32.mrb[0].mxu0
    %v3720 = vadd.f32 %v3645, %v3719
    %v3721 = vpop.f32.mrb[0].mxu0
    %3722 = vmatprep.mubr.f32.mxu0 0.0
    %3723 = vmatmul.mubr.f32.gmra.mrb[0].mxu0 %v3651
    %v3724 = vpop.f32.mrb[0].mxu0
    %v3725 = vadd.f32 %v3645, %v3724
    %v3726 = vpop.f32.mrb[0].mxu0
    %3727 = vdwg.mxu0
    %v3728 = vmul.f32 %v3720, %v3720
    %v3729 = vmul.f32 %v3725, %v3725
    %v3730 = vmul.f32 %v3720, %v3728
    %v3731 = vmul.f32 %v3725, %v3729
    %v3732 = vmul.f32 %v3730, 0.044715
    %v3733 = vmul.f32 %v3731, 0.044715
    %v3734 = vadd.f32 %v3720, %v3732
    %v3735 = vadd.f32 %v3725, %v3733
    %v3736 = vmul.f32 %v3734, 0.7978846
    %v3737 = vmul.f32 %v3735, 0.7978846
    %v3738 = vtanh.pop %v3736
    %v3739 = vtanh.pop %v3737
    %v3740 = vadd.f32 %v3738, 1.0
    %v3741 = vadd.f32 %v3739, 1.0
    %v3742 = vmul.f32 %v3740, 0.5
    %v3743 = vmul.f32 %v3741, 0.5
    %v3744 = vmul.f32 %v3720, %v3742
    %v3745 = vmul.f32 %v3725, %v3743
    %s3746 = scalar_lea.vmem %s12, 64
    %v3747 = vld [vmem:[%s3746] sm:$0xff]
    %v3748 = vld [vmem:[%s3746 + $0x8] sm:$0xff]
    %v3749 = vld [vmem:[%s3746 + $0x10] sm:$0xff]
    %v3750 = vld [vmem:[%s3746 + $0x18] sm:$0xff]
    %v3751 = vld [vmem:[%s3746 + $0x20] sm:$0xff]
    %v3752 = vld [vmem:[%s3746 + $0x28] sm:$0xff]
    %v3753 = vld [vmem:[%s3746 + $0x30] sm:$0xff]
    %v3754 = vld [vmem:[%s3746 + $0x38] sm:$0xff]
    %s3755 = scalar_lea.vmem %s13, 1
    %v3756 = vld [vmem:[%s3755] sm:$0x1]
    %v3758 = vlaneseq
    %v3759 = vshrl.u32 %v3758, 7
    %v3760 = vsub.s32 0, %v3759
    %v3761 = vrot.slane %v3756, %v3760
    %v3764 = vsel %vm1886, %v3744, 0
    %v3767 = vsel %vm1886, %v3745, 0
    %3769 = vmatprep.subr.mxu0 0.0
    %3770 = vmatpush1.msra.mxu0 %v3747
    %3771 = vmatprep.subr.mxu0 0.0
    %3772 = vmatpush1.msra.mxu0 %v3748
    %3773 = vmatprep.subr.mxu0 0.0
    %3774 = vmatpush1.msra.mxu0 %v3749
    %3775 = vmatprep.subr.mxu0 0.0
    %3776 = vmatpush1.msra.mxu0 %v3750
    %3777 = vmatprep.subr.mxu0 0.0
    %3778 = vmatpush1.msra.mxu0 %v3751
    %3779 = vmatprep.subr.mxu0 0.0
    %3780 = vmatpush1.msra.mxu0 %v3752
    %3781 = vmatprep.subr.mxu0 0.0
    %3782 = vmatpush1.msra.mxu0 %v3753
    %3783 = vmatprep.subr.mxu0 0.0
    %3784 = vmatpush1.msra.mxu0 %v3754
    %3785 = vmatprep.subr.mxu0 0.0
    %3786 = vmatpush1.msra.mxu0 0.0
    %3787 = vmatprep.subr.mxu0 0.0
    %3788 = vmatpush1.msra.mxu0 0.0
    %3789 = vmatprep.subr.mxu0 0.0
    %3790 = vmatpush1.msra.mxu0 0.0
    %3791 = vmatprep.subr.mxu0 0.0
    %3792 = vmatpush1.msra.mxu0 0.0
    %3793 = vmatprep.subr.mxu0 0.0
    %3794 = vmatpush1.msra.mxu0 0.0
    %3795 = vmatprep.subr.mxu0 0.0
    %3796 = vmatpush1.msra.mxu0 0.0
    %3797 = vmatprep.subr.mxu0 0.0
    %3798 = vmatpush1.msra.mxu0 0.0
    %3799 = vmatprep.subr.mxu0 0.0
    %3800 = vmatpush1.msra.mxu0 0.0
    %3801 = vmatprep.subr.mxu0 0.0
    %3802 = vmatpush1.msra.mxu0 0.0
    %3803 = vmatprep.subr.mxu0 0.0
    %3804 = vmatpush1.msra.mxu0 0.0
    %3805 = vmatprep.subr.mxu0 0.0
    %3806 = vmatpush1.msra.mxu0 0.0
    %3807 = vmatprep.subr.mxu0 0.0
    %3808 = vmatpush1.msra.mxu0 0.0
    %3809 = vmatprep.subr.mxu0 0.0
    %3810 = vmatpush1.msra.mxu0 0.0
    %3811 = vmatprep.subr.mxu0 0.0
    %3812 = vmatpush1.msra.mxu0 0.0
    %3813 = vmatprep.subr.mxu0 0.0
    %3814 = vmatpush1.msra.mxu0 0.0
    %3815 = vmatprep.subr.mxu0 0.0
    %3816 = vmatpush1.msra.mxu0 0.0
    %3817 = vmatprep.subr.mxu0 0.0
    %3818 = vmatpush1.msra.mxu0 0.0
    %3819 = vmatprep.subr.mxu0 0.0
    %3820 = vmatpush1.msra.mxu0 0.0
    %3821 = vmatprep.subr.mxu0 0.0
    %3822 = vmatpush1.msra.mxu0 0.0
    %3823 = vmatprep.subr.mxu0 0.0
    %3824 = vmatpush1.msra.mxu0 0.0
    %3825 = vmatprep.subr.mxu0 0.0
    %3826 = vmatpush1.msra.mxu0 0.0
    %3827 = vmatprep.subr.mxu0 0.0
    %3828 = vmatpush1.msra.mxu0 0.0
    %3829 = vmatprep.subr.mxu0 0.0
    %3830 = vmatpush1.msra.mxu0 0.0
    %3831 = vmatprep.subr.mxu0 0.0
    %3832 = vmatpush1.msra.mxu0 0.0
    %3833 = vmatprep.mubr.f32.mxu0 0.0
    %3834 = vmatmul.mubr.f32.gmra.mrb[0].mxu0 %v3764
    %v3835 = vpop.f32.mrb[0].mxu0
    %v3836 = vadd.f32 %v3761, %v3835
    %v3837 = vpop.f32.mrb[0].mxu0
    %3838 = vmatprep.mubr.f32.mxu0 0.0
    %3839 = vmatmul.mubr.f32.gmra.mrb[0].mxu0 %v3767
    %v3840 = vpop.f32.mrb[0].mxu0
    %v3841 = vadd.f32 %v3761, %v3840
    %v3842 = vpop.f32.mrb[0].mxu0
    %3843 = vdwg.mxu0
    %v3844 = vadd.f32 %v3632, %v3836
    %v3845 = vadd.f32 %v3633, %v3841
    %s3846 = scalar_lea.vmem %s14, 1
    %v3847 = vld [vmem:[%s3846] sm:$0x1]
    %s3848 = scalar_lea.vmem %s15, 1
    %v3849 = vld [vmem:[%s3848] sm:$0x1]
    %v3850 = vsel %vm88, %v3844, 0.0
    %3851 = vadd.xlane.f32.xlu0 %v3850
    %v3852 = vpop.xlane.xlu0 %3851
    %v3853 = vsel %vm88, %v3845, 0.0
    %3854 = vadd.xlane.f32.xlu0 %v3853
    %v3855 = vpop.xlane.xlu0 %3854
    %v3856 = vmul.f32 %v3852, %v95
    %v3857 = vmul.f32 %v3855, %v95
    %v3858 = vsub.f32 %v3844, %v3856
    %v3859 = vsub.f32 %v3845, %v3857
    %v3860 = vmul.f32 %v3858, %v3858
    %v3861 = vmul.f32 %v3859, %v3859
    %v3862 = vsel %vm88, %v3860, 0.0
    %3863 = vadd.xlane.f32.xlu0 %v3862
    %v3864 = vpop.xlane.xlu0 %3863
    %v3865 = vsel %vm88, %v3861, 0.0
    %3866 = vadd.xlane.f32.xlu0 %v3865
    %v3867 = vpop.xlane.xlu0 %3866
    %v3868 = vmul.f32 %v3864, %v95
    %v3869 = vmul.f32 %v3867, %v95
    %v3870 = vadd.f32 %v3868, 1e-12
    %v3871 = vadd.f32 %v3869, 1e-12
    %v3872 = vrsqrt.pop %v3870
    %v3873 = vrsqrt.pop %v3871
    %v3874 = vmul.f32 %v3858, %v3872
    %v3875 = vmul.f32 %v3859, %v3873
    %v3877 = vlaneseq
    %v3878 = vshrl.u32 %v3877, 7
    %v3879 = vsub.s32 0, %v3878
    %v3880 = vrot.slane %v3847, %v3879
    %v3882 = vmul.f32 %v3874, %v3880
    %v3883 = vmul.f32 %v3875, %v3880
    %v3885 = vlaneseq
    %v3886 = vshrl.u32 %v3885, 7
    %v3887 = vsub.s32 0, %v3886
    %v3888 = vrot.slane %v3849, %v3887
    %v3890 = vadd.f32 %v3882, %v3888
    %v3891 = vadd.f32 %v3883, %v3888
    %v3892 = vlaneseq
    %v3893 = vshrl.u32 %v3892, 7
    %v3894 = vlaneseq
    %v3895 = vand.u32 %v3894, 127
    %v3896 = vmul.u32 %v3893, 8
    %vm3897 = vcmp.eq.s32.totalorder %v3895, %v3896
    %v3898 = vsel %vm3897, 1, 0
    %v3899 = vcvt.s32.f32 %v3898
    %vm3900 = vcmask 130048
    %v3902 = vsel %vm3900, %v3899, 0
    %3904 = vmatprep.subr.mxu0 0.0
    %3905 = vmatpush1.msra.mxu0 %v3890
    %3906 = vmatprep.subr.mxu0 0.0
    %3907 = vmatpush1.msra.mxu0 %v3891
    %3908 = vmatprep.subr.mxu0 0.0
    %3909 = vmatpush1.msra.mxu0 0.0
    %3910 = vmatprep.subr.mxu0 0.0
    %3911 = vmatpush1.msra.mxu0 0.0
    %3912 = vmatprep.subr.mxu0 0.0
    %3913 = vmatpush1.msra.mxu0 0.0
    %3914 = vmatprep.subr.mxu0 0.0
    %3915 = vmatpush1.msra.mxu0 0.0
    %3916 = vmatprep.subr.mxu0 0.0
    %3917 = vmatpush1.msra.mxu0 0.0
    %3918 = vmatprep.subr.mxu0 0.0
    %3919 = vmatpush1.msra.mxu0 0.0
    %3920 = vmatprep.subr.mxu0 0.0
    %3921 = vmatpush1.msra.mxu0 0.0
    %3922 = vmatprep.subr.mxu0 0.0
    %3923 = vmatpush1.msra.mxu0 0.0
    %3924 = vmatprep.subr.mxu0 0.0
    %3925 = vmatpush1.msra.mxu0 0.0
    %3926 = vmatprep.subr.mxu0 0.0
    %3927 = vmatpush1.msra.mxu0 0.0
    %3928 = vmatprep.subr.mxu0 0.0
    %3929 = vmatpush1.msra.mxu0 0.0
    %3930 = vmatprep.subr.mxu0 0.0
    %3931 = vmatpush1.msra.mxu0 0.0
    %3932 = vmatprep.subr.mxu0 0.0
    %3933 = vmatpush1.msra.mxu0 0.0
    %3934 = vmatprep.subr.mxu0 0.0
    %3935 = vmatpush1.msra.mxu0 0.0
    %3936 = vmatprep.subr.mxu0 0.0
    %3937 = vmatpush1.msra.mxu0 0.0
    %3938 = vmatprep.subr.mxu0 0.0
    %3939 = vmatpush1.msra.mxu0 0.0
    %3940 = vmatprep.subr.mxu0 0.0
    %3941 = vmatpush1.msra.mxu0 0.0
    %3942 = vmatprep.subr.mxu0 0.0
    %3943 = vmatpush1.msra.mxu0 0.0
    %3944 = vmatprep.subr.mxu0 0.0
    %3945 = vmatpush1.msra.mxu0 0.0
    %3946 = vmatprep.subr.mxu0 0.0
    %3947 = vmatpush1.msra.mxu0 0.0
    %3948 = vmatprep.subr.mxu0 0.0
    %3949 = vmatpush1.msra.mxu0 0.0
    %3950 = vmatprep.subr.mxu0 0.0
    %3951 = vmatpush1.msra.mxu0 0.0
    %3952 = vmatprep.subr.mxu0 0.0
    %3953 = vmatpush1.msra.mxu0 0.0
    %3954 = vmatprep.subr.mxu0 0.0
    %3955 = vmatpush1.msra.mxu0 0.0
    %3956 = vmatprep.subr.mxu0 0.0
    %3957 = vmatpush1.msra.mxu0 0.0
    %3958 = vmatprep.subr.mxu0 0.0
    %3959 = vmatpush1.msra.mxu0 0.0
    %3960 = vmatprep.subr.mxu0 0.0
    %3961 = vmatpush1.msra.mxu0 0.0
    %3962 = vmatprep.subr.mxu0 0.0
    %3963 = vmatpush1.msra.mxu0 0.0
    %3964 = vmatprep.subr.mxu0 0.0
    %3965 = vmatpush1.msra.mxu0 0.0
    %3966 = vmatprep.subr.mxu0 0.0
    %3967 = vmatpush1.msra.mxu0 0.0
    %3968 = vmatprep.mubr.f32.mxu0 0.0
    %3969 = vmatmul.mubr.f32.gmra.mrb[0].mxu0 %v3902
    %v3970 = vpop.f32.mrb[0].mxu0
    %v3971 = vadd.f32 0.0, %v3970
    %v3972 = vpop.f32.mrb[0].mxu0
    %3973 = vdwg.mxu0
    %v3974 = vld [vmem:[%s16] sm:$0xff]
    %v3975 = vld [vmem:[%s16 + $0x8] sm:$0xff]
    %v3976 = vld [vmem:[%s16 + $0x10] sm:$0xff]
    %v3977 = vld [vmem:[%s16 + $0x18] sm:$0xff]
    %v3978 = vld [vmem:[%s17] sm:$0x1]
    %v3980 = vlaneseq
    %v3981 = vshrl.u32 %v3980, 7
    %v3982 = vsub.s32 0, %v3981
    %v3983 = vrot.slane %v3978, %v3982
    %v3986 = vsel %vm88, %v3971, 0
    %3988 = vmatprep.subr.mxu0 0.0
    %3989 = vmatpush1.msra.mxu0 %v3974
    %3990 = vmatprep.subr.mxu0 0.0
    %3991 = vmatpush1.msra.mxu0 %v3975
    %3992 = vmatprep.subr.mxu0 0.0
    %3993 = vmatpush1.msra.mxu0 %v3976
    %3994 = vmatprep.subr.mxu0 0.0
    %3995 = vmatpush1.msra.mxu0 %v3977
    %3996 = vmatprep.subr.mxu0 0.0
    %3997 = vmatpush1.msra.mxu0 0.0
    %3998 = vmatprep.subr.mxu0 0.0
    %3999 = vmatpush1.msra.mxu0 0.0
    %4000 = vmatprep.subr.mxu0 0.0
    %4001 = vmatpush1.msra.mxu0 0.0
    %4002 = vmatprep.subr.mxu0 0.0
    %4003 = vmatpush1.msra.mxu0 0.0
    %4004 = vmatprep.subr.mxu0 0.0
    %4005 = vmatpush1.msra.mxu0 0.0
    %4006 = vmatprep.subr.mxu0 0.0
    %4007 = vmatpush1.msra.mxu0 0.0
    %4008 = vmatprep.subr.mxu0 0.0
    %4009 = vmatpush1.msra.mxu0 0.0
    %4010 = vmatprep.subr.mxu0 0.0
    %4011 = vmatpush1.msra.mxu0 0.0
    %4012 = vmatprep.subr.mxu0 0.0
    %4013 = vmatpush1.msra.mxu0 0.0
    %4014 = vmatprep.subr.mxu0 0.0
    %4015 = vmatpush1.msra.mxu0 0.0
    %4016 = vmatprep.subr.mxu0 0.0
    %4017 = vmatpush1.msra.mxu0 0.0
    %4018 = vmatprep.subr.mxu0 0.0
    %4019 = vmatpush1.msra.mxu0 0.0
    %4020 = vmatprep.subr.mxu0 0.0
    %4021 = vmatpush1.msra.mxu0 0.0
    %4022 = vmatprep.subr.mxu0 0.0
    %4023 = vmatpush1.msra.mxu0 0.0
    %4024 = vmatprep.subr.mxu0 0.0
    %4025 = vmatpush1.msra.mxu0 0.0
    %4026 = vmatprep.subr.mxu0 0.0
    %4027 = vmatpush1.msra.mxu0 0.0
    %4028 = vmatprep.subr.mxu0 0.0
    %4029 = vmatpush1.msra.mxu0 0.0
    %4030 = vmatprep.subr.mxu0 0.0
    %4031 = vmatpush1.msra.mxu0 0.0
    %4032 = vmatprep.subr.mxu0 0.0
    %4033 = vmatpush1.msra.mxu0 0.0
    %4034 = vmatprep.subr.mxu0 0.0
    %4035 = vmatpush1.msra.mxu0 0.0
    %4036 = vmatprep.subr.mxu0 0.0
    %4037 = vmatpush1.msra.mxu0 0.0
    %4038 = vmatprep.subr.mxu0 0.0
    %4039 = vmatpush1.msra.mxu0 0.0
    %4040 = vmatprep.subr.mxu0 0.0
    %4041 = vmatpush1.msra.mxu0 0.0
    %4042 = vmatprep.subr.mxu0 0.0
    %4043 = vmatpush1.msra.mxu0 0.0
    %4044 = vmatprep.subr.mxu0 0.0
    %4045 = vmatpush1.msra.mxu0 0.0
    %4046 = vmatprep.subr.mxu0 0.0
    %4047 = vmatpush1.msra.mxu0 0.0
    %4048 = vmatprep.subr.mxu0 0.0
    %4049 = vmatpush1.msra.mxu0 0.0
    %4050 = vmatprep.subr.mxu0 0.0
    %4051 = vmatpush1.msra.mxu0 0.0
    %4052 = vmatprep.mubr.f32.mxu0 0.0
    %4053 = vmatmul.mubr.f32.gmra.mrb[0].mxu0 %v3986
    %v4054 = vpop.f32.mrb[0].mxu0
    %v4055 = vadd.f32 %v3983, %v4054
    %v4056 = vpop.f32.mrb[0].mxu0
    %4057 = vdwg.mxu0
    %v4058 = vmul.f32 %v4055, %v4055
    %v4059 = vmul.f32 %v4055, %v4058
    %v4060 = vmul.f32 %v4059, 0.044715
    %v4061 = vadd.f32 %v4055, %v4060
    %v4062 = vmul.f32 %v4061, 0.7978846
    %v4063 = vtanh.pop %v4062
    %v4064 = vadd.f32 %v4063, 1.0
    %v4065 = vmul.f32 %v4064, 0.5
    %v4066 = vmul.f32 %v4055, %v4065
    %v4067 = vld [vmem:[%s18] sm:$0x1]
    %v4068 = vld [vmem:[%s19] sm:$0x1]
    %vm4069 = vcmask 123904
    %v4070 = vsel %vm4069, %v4066, 0.0
    %4071 = vadd.xlane.f32.xlu0 %v4070
    %v4072 = vpop.xlane.xlu0 %4071
    %v4073 = vrcp.pop 16.0
    %v4074 = vmul.f32 %v4072, %v4073
    %v4075 = vsub.f32 %v4066, %v4074
    %v4076 = vmul.f32 %v4075, %v4075
    %v4077 = vsel %vm4069, %v4076, 0.0
    %4078 = vadd.xlane.f32.xlu0 %v4077
    %v4079 = vpop.xlane.xlu0 %4078
    %v4080 = vmul.f32 %v4079, %v4073
    %v4081 = vadd.f32 %v4080, 1e-12
    %v4082 = vrsqrt.pop %v4081
    %v4083 = vmul.f32 %v4075, %v4082
    %v4085 = vlaneseq
    %v4086 = vshrl.u32 %v4085, 7
    %v4087 = vsub.s32 0, %v4086
    %v4088 = vrot.slane %v4067, %v4087
    %v4090 = vmul.f32 %v4083, %v4088
    %v4092 = vlaneseq
    %v4093 = vshrl.u32 %v4092, 7
    %v4094 = vsub.s32 0, %v4093
    %v4095 = vrot.slane %v4068, %v4094
    %v4097 = vadd.f32 %v4090, %v4095
    %v4098 = vld [vmem:[%s20] sm:$0xff]
    %v4099 = vld [vmem:[%s20 + $0x8] sm:$0xff]
    %v4100 = vld [vmem:[%s21] sm:$0x1]
    %v4102 = vlaneseq
    %v4103 = vshrl.u32 %v4102, 7
    %v4104 = vsub.s32 0, %v4103
    %v4105 = vrot.slane %v4100, %v4104
    %v4108 = vsel %vm3900, %v4097, 0
    %4110 = vmatprep.subr.mxu0 0.0
    %4111 = vmatpush1.msra.mxu0 %v4098
    %4112 = vmatprep.subr.mxu0 0.0
    %4113 = vmatpush1.msra.mxu0 %v4099
    %4114 = vmatprep.subr.mxu0 0.0
    %4115 = vmatpush1.msra.mxu0 0.0
    %4116 = vmatprep.subr.mxu0 0.0
    %4117 = vmatpush1.msra.mxu0 0.0
    %4118 = vmatprep.subr.mxu0 0.0
    %4119 = vmatpush1.msra.mxu0 0.0
    %4120 = vmatprep.subr.mxu0 0.0
    %4121 = vmatpush1.msra.mxu0 0.0
    %4122 = vmatprep.subr.mxu0 0.0
    %4123 = vmatpush1.msra.mxu0 0.0
    %4124 = vmatprep.subr.mxu0 0.0
    %4125 = vmatpush1.msra.mxu0 0.0
    %4126 = vmatprep.subr.mxu0 0.0
    %4127 = vmatpush1.msra.mxu0 0.0
    %4128 = vmatprep.subr.mxu0 0.0
    %4129 = vmatpush1.msra.mxu0 0.0
    %4130 = vmatprep.subr.mxu0 0.0
    %4131 = vmatpush1.msra.mxu0 0.0
    %4132 = vmatprep.subr.mxu0 0.0
    %4133 = vmatpush1.msra.mxu0 0.0
    %4134 = vmatprep.subr.mxu0 0.0
    %4135 = vmatpush1.msra.mxu0 0.0
    %4136 = vmatprep.subr.mxu0 0.0
    %4137 = vmatpush1.msra.mxu0 0.0
    %4138 = vmatprep.subr.mxu0 0.0
    %4139 = vmatpush1.msra.mxu0 0.0
    %4140 = vmatprep.subr.mxu0 0.0
    %4141 = vmatpush1.msra.mxu0 0.0
    %4142 = vmatprep.subr.mxu0 0.0
    %4143 = vmatpush1.msra.mxu0 0.0
    %4144 = vmatprep.subr.mxu0 0.0
    %4145 = vmatpush1.msra.mxu0 0.0
    %4146 = vmatprep.subr.mxu0 0.0
    %4147 = vmatpush1.msra.mxu0 0.0
    %4148 = vmatprep.subr.mxu0 0.0
    %4149 = vmatpush1.msra.mxu0 0.0
    %4150 = vmatprep.subr.mxu0 0.0
    %4151 = vmatpush1.msra.mxu0 0.0
    %4152 = vmatprep.subr.mxu0 0.0
    %4153 = vmatpush1.msra.mxu0 0.0
    %4154 = vmatprep.subr.mxu0 0.0
    %4155 = vmatpush1.msra.mxu0 0.0
    %4156 = vmatprep.subr.mxu0 0.0
    %4157 = vmatpush1.msra.mxu0 0.0
    %4158 = vmatprep.subr.mxu0 0.0
    %4159 = vmatpush1.msra.mxu0 0.0
    %4160 = vmatprep.subr.mxu0 0.0
    %4161 = vmatpush1.msra.mxu0 0.0
    %4162 = vmatprep.subr.mxu0 0.0
    %4163 = vmatpush1.msra.mxu0 0.0
    %4164 = vmatprep.subr.mxu0 0.0
    %4165 = vmatpush1.msra.mxu0 0.0
    %4166 = vmatprep.subr.mxu0 0.0
    %4167 = vmatpush1.msra.mxu0 0.0
    %4168 = vmatprep.subr.mxu0 0.0
    %4169 = vmatpush1.msra.mxu0 0.0
    %4170 = vmatprep.subr.mxu0 0.0
    %4171 = vmatpush1.msra.mxu0 0.0
    %4172 = vmatprep.subr.mxu0 0.0
    %4173 = vmatpush1.msra.mxu0 0.0
    %4174 = vmatprep.mubr.f32.mxu0 0.0
    %4175 = vmatmul.mubr.f32.gmra.mrb[0].mxu0 %v4108
    %v4176 = vpop.f32.mrb[0].mxu0
    %v4177 = vadd.f32 %v4105, %v4176
    %v4178 = vpop.f32.mrb[0].mxu0
    %4179 = vdwg.mxu0
    %v4180 = vld [vmem:[%s22] sm:$0xff]
    %v4181 = vld [vmem:[%s22 + $0x8] sm:$0xff]
    %v4182 = vld [vmem:[%s23] sm:$0x1]
    %v4184 = vlaneseq
    %v4185 = vshrl.u32 %v4184, 7
    %v4186 = vsub.s32 0, %v4185
    %v4187 = vrot.slane %v4182, %v4186
    %v4190 = vsel %vm3900, %v4177, 0
    %4192 = vmatprep.subr.mxu0 0.0
    %4193 = vmatpush1.msra.mxu0 %v4180
    %4194 = vmatprep.subr.mxu0 0.0
    %4195 = vmatpush1.msra.mxu0 %v4181
    %4196 = vmatprep.subr.mxu0 0.0
    %4197 = vmatpush1.msra.mxu0 0.0
    %4198 = vmatprep.subr.mxu0 0.0
    %4199 = vmatpush1.msra.mxu0 0.0
    %4200 = vmatprep.subr.mxu0 0.0
    %4201 = vmatpush1.msra.mxu0 0.0
    %4202 = vmatprep.subr.mxu0 0.0
    %4203 = vmatpush1.msra.mxu0 0.0
    %4204 = vmatprep.subr.mxu0 0.0
    %4205 = vmatpush1.msra.mxu0 0.0
    %4206 = vmatprep.subr.mxu0 0.0
    %4207 = vmatpush1.msra.mxu0 0.0
    %4208 = vmatprep.subr.mxu0 0.0
    %4209 = vmatpush1.msra.mxu0 0.0
    %4210 = vmatprep.subr.mxu0 0.0
    %4211 = vmatpush1.msra.mxu0 0.0
    %4212 = vmatprep.subr.mxu0 0.0
    %4213 = vmatpush1.msra.mxu0 0.0
    %4214 = vmatprep.subr.mxu0 0.0
    %4215 = vmatpush1.msra.mxu0 0.0
    %4216 = vmatprep.subr.mxu0 0.0
    %4217 = vmatpush1.msra.mxu0 0.0
    %4218 = vmatprep.subr.mxu0 0.0
    %4219 = vmatpush1.msra.mxu0 0.0
    %4220 = vmatprep.subr.mxu0 0.0
    %4221 = vmatpush1.msra.mxu0 0.0
    %4222 = vmatprep.subr.mxu0 0.0
    %4223 = vmatpush1.msra.mxu0 0.0
    %4224 = vmatprep.subr.mxu0 0.0
    %4225 = vmatpush1.msra.mxu0 0.0
    %4226 = vmatprep.subr.mxu0 0.0
    %4227 = vmatpush1.msra.mxu0 0.0
    %4228 = vmatprep.subr.mxu0 0.0
    %4229 = vmatpush1.msra.mxu0 0.0
    %4230 = vmatprep.subr.mxu0 0.0
    %4231 = vmatpush1.msra.mxu0 0.0
    %4232 = vmatprep.subr.mxu0 0.0
    %4233 = vmatpush1.msra.mxu0 0.0
    %4234 = vmatprep.subr.mxu0 0.0
    %4235 = vmatpush1.msra.mxu0 0.0
    %4236 = vmatprep.subr.mxu0 0.0
    %4237 = vmatpush1.msra.mxu0 0.0
    %4238 = vmatprep.subr.mxu0 0.0
    %4239 = vmatpush1.msra.mxu0 0.0
    %4240 = vmatprep.subr.mxu0 0.0
    %4241 = vmatpush1.msra.mxu0 0.0
    %4242 = vmatprep.subr.mxu0 0.0
    %4243 = vmatpush1.msra.mxu0 0.0
    %4244 = vmatprep.subr.mxu0 0.0
    %4245 = vmatpush1.msra.mxu0 0.0
    %4246 = vmatprep.subr.mxu0 0.0
    %4247 = vmatpush1.msra.mxu0 0.0
    %4248 = vmatprep.subr.mxu0 0.0
    %4249 = vmatpush1.msra.mxu0 0.0
    %4250 = vmatprep.subr.mxu0 0.0
    %4251 = vmatpush1.msra.mxu0 0.0
    %4252 = vmatprep.subr.mxu0 0.0
    %4253 = vmatpush1.msra.mxu0 0.0
    %4254 = vmatprep.subr.mxu0 0.0
    %4255 = vmatpush1.msra.mxu0 0.0
    %4256 = vmatprep.mubr.f32.mxu0 0.0
    %4257 = vmatmul.mubr.f32.gmra.mrb[0].mxu0 %v4190
    %v4258 = vpop.f32.mrb[0].mxu0
    %v4259 = vadd.f32 %v4187, %v4258
    %v4260 = vpop.f32.mrb[0].mxu0
    %4261 = vdwg.mxu0
    %vm4262 = vcmask 17408
    %4263 = vst.msk [vmem:[#allocation6] sm:$0x3] %vm4262, %v4259
    %v4264 = vld [vmem:[%s24] sm:$0x3]
    %v4265 = vsel %vm4262, %v4259, -inf
    %4266 = vmax.xlane.f32.xlu0 %v4265
    %v4267 = vpop.xlane.xlu0 %4266
    %v4268 = vsub.f32 %v4259, %v4267
    %v4269 = vmul.f32 %v4268, 1.442695
    %v4270 = vpow.pop %v4269
    %v4271 = vsel %vm4262, %v4270, 0.0
    %4272 = vadd.xlane.f32.xlu0 %v4271
    %v4273 = vpop.xlane.xlu0 %4272
    %v4274 = vlog2.pop %v4273
    %v4275 = vmul.f32 %v4274, 0.6931472
    %v4276 = vadd.f32 %v4267, %v4275
    %v4277 = vmul.f32 %v4264, %v4259
    %v4278 = vsel %vm4262, %v4277, 0.0
    %4279 = vadd.xlane.f32.xlu0 %v4278
    %v4280 = vpop.xlane.xlu0 %4279
    %v4281 = vsub.f32 %v4276, %v4280
    %vm4282 = vcmask 1024
    %v4283 = vsel %vm4282, %v4281, 0.0
    %4284 = vadd.xlane.f32.xlu0 %v4283
    %v4285 = vpop.xlane.xlu0 %4284
    %v4286 = vrot.slane %v4285, 4
    %v4287 = vadd.f32 %v4285, %v4286
    %v4288 = vrot.slane %v4287, 2
    %v4289 = vadd.f32 %v4287, %v4288
    %v4290 = vrot.slane %v4289, 1
    %v4291 = vadd.f32 %v4289, %v4290
    %s4292 = vtos %v4291
    %v4293 = vstv %s4292
    %v4294 = vrcp.pop 2.0
    %v4295 = vmul.f32 %v4293, %v4294
    %vm4296 = vcmask 0
    %4297 = vst.msk [vmem:[#allocation4] sm:$0x1] %vm4296, %v4295
    // Predicated region
    $region102: #{cxrbert_nli_forward.1} parent=1 // pred_check
      _
    $region103: #{cxrbert_nli_forward.1} parent=1 // pred_check_branch
      %4299 = sbr.rel (0) target = $region105
    $region104: #{cxrbert_nli_forward.1} parent=1 // pred_region
      %s4301 = ssub.s32 16, 16
      %4302 = vsyncadd [#allocation5], %s4301
      %s4304 = sshll.u32 [#allocation4], 4
      %s4305 = int_to_ptr.vmem [resolvable:$true] %s4304
      %4307 = dma.vmem_to_hbm [thread:$0]  %s4305, 16, %s25, [#allocation5]
    $region105: #{cxrbert_nli_forward.1} parent=1 // pred_fallthru
      _
    // Predicated region
    $region106: #{cxrbert_nli_forward.1} parent=1 // pred_check
      _
    $region107: #{cxrbert_nli_forward.1} parent=1 // pred_check_branch
      %4309 = sbr.rel (0) target = $region109
    $region108: #{cxrbert_nli_forward.1} parent=1 // pred_region
      %s4311 = ssub.s32 32, 32
      %4312 = vsyncadd [#allocation7], %s4311
      %s4314 = sshll.u32 [#allocation6], 4
      %s4315 = int_to_ptr.vmem [resolvable:$true] %s4314
      %4317 = dma.vmem_to_hbm [thread:$0]  %s4315, 32, %s26, [#allocation7]
    $region109: #{cxrbert_nli_forward.1} parent=1 // pred_fallthru
      _
    // Predicated region
    $region110: #{cxrbert_nli_forward.1} parent=1 // pred_check
      _
    $region111: #{cxrbert_nli_forward.1} parent=1 // pred_check_branch
      %4319 = sbr.rel (0) target = $region113
    $region112: #{cxrbert_nli_forward.1} parent=1 // pred_region
      %4320 = dma.done [#allocation5], 16
    $region113: #{cxrbert_nli_forward.1} parent=1 // pred_fallthru
      _
    // Predicated region
    $region114: #{cxrbert_nli_forward.1} parent=1 // pred_check
      _
    $region115: #{cxrbert_nli_forward.1} parent=1 // pred_check_branch
      %4322 = sbr.rel (0) target = $region117
    $region116: #{cxrbert_nli_forward.1} parent=1 // pred_region
      %4323 = dma.done [#allocation7], 32
    $region117: #{cxrbert_nli_forward.1} parent=1 // pred_fallthru
      _
    %4324 = vsyncpa [#allocation5], 1
    %4325 = vsyncpa [#allocation7], 1

</llo_original>
